<compile_context>
chip_gen: v7x
topology: tpu7x:2x2x1
jax: 0.10.0
libtpu: 0.0.40
codegen_flags: <defaults>
</compile_context>

<pallas_src>
import functools
import math

import jax
import jax.numpy as jnp
from jax.experimental import pallas as pl
from jax.experimental.pallas import tpu as pltpu


# ----------------------------- Pallas kernel ------------------------------ #

def _point_encoder_kernel(pc_ref, w1t_ref, b1_ref, w2_ref, b2_ref,
                          out_ref, acc_ref, xp_ref, *, inv_n):
    """One (batch-tile, point-chunk) grid step.

    pc_ref  : (TB, C, CHUNK) VMEM  channel-major point chunk (points on lanes)
    w1t_ref : (H, CK) VMEM  layer-1 weight, transposed + sublane-padded (CK=8)
    b1_ref  : (H, 1)  VMEM
    w2_ref  : (H, D)  VMEM
    b2_ref  : (1, D)  VMEM
    out_ref : (TB, D) VMEM  written only on the last point chunk
    acc_ref : (TB, H) f32 scratch; running sum of GELU activations over points
    xp_ref  : (TB, CK, CHUNK) scratch; sublane-aligned staging for the chunk
    """
    k = pl.program_id(1)
    TB, C, CHUNK = pc_ref.shape
    H = w1t_ref.shape[0]
    CK = xp_ref.shape[1]

    @pl.when(k == 0)
    def _init():
        acc_ref[...] = jnp.zeros_like(acc_ref)
        xp_ref[...] = jnp.zeros_like(xp_ref)     # padding channels stay zero

    # Stage the chunk into the sublane-aligned buffer (tiny VMEM->VMEM copy;
    # keeps the MXU contraction dim at CK=8 without any HBM-side padding).
    xp_ref[:, :C, :] = pc_ref[...]
    x = xp_ref[...]                              # (TB, CK, CHUNK), lane-dense

    # Layer 1 on the MXU in transposed orientation: (H, CK) @ (CK, CHUNK) per
    # cloud ('bmk,bkn->bmn', no in-kernel transposes).  MXU utilization is low
    # (K=8) but the MXU is otherwise idle and this keeps the VPU/EUP free for
    # the GELU, which is the actual compute limiter.
    w1t_b = jnp.broadcast_to(w1t_ref[...][None], (TB, H, CK)).astype(x.dtype)
    h = jax.lax.dot_general(
        w1t_b, x,
        dimension_numbers=(((2,), (1,)), ((0,), (0,))),
        preferred_element_type=jnp.float32)      # (TB, H, CHUNK) f32
    h = h + b1_ref[...][None, :, :]              # (H, 1) bias, lane broadcast

    # TODO(synk): PyTorch nn.GELU defaults to exact erf; the tanh approximation
    # is used for this synthetic encoder (clean EUP lowering).
    g = jax.nn.gelu(h, approximate=True)

    # Streaming pool: per-chunk sum over the point (lane) axis (XLU reduce),
    # accumulated in f32.  The 1/N mean scale is applied once at finalize.
    acc_ref[...] += jnp.sum(g, axis=-1)          # (TB, H)

    @pl.when(k == pl.num_programs(1) - 1)
    def _finalize():
        pooled = acc_ref[...] * inv_n            # mean over points
        out_ref[...] = (jnp.dot(pooled.astype(w2_ref.dtype), w2_ref[...],
                                preferred_element_type=jnp.float32)
                        + b2_ref[...]).astype(out_ref.dtype)


def encode_pc_pallas(params, pc, *, tb=8, max_chunk=512):
    """Mirrors Uni3D.encode_pc: pc (B, N, 6) -> pc_embed (B, D)."""
    w1, b1, w2, b2 = params["w1"], params["b1"], params["w2"], params["b2"]
    B, N, C = pc.shape
    H = w1.shape[1]
    D = w2.shape[1]
    compute_dtype = w1.dtype
    CK = 8                                        # sublane-aligned channel count

    # Channel-major + compute-dtype cast: one fused XLA pass over pc.
    # TODO(synk): have the upstream pipeline emit channel-major (bf16) pc
    # directly so even this single extra HBM pass disappears.
    pc_cm = jnp.transpose(pc, (0, 2, 1)).astype(compute_dtype)      # (B, C, N)

    # Layer-1 weight, transposed + sublane-padded (weights only, tiny).
    w1t = jnp.concatenate(
        [jnp.transpose(w1), jnp.zeros((H, CK - C), w1.dtype)], axis=1)  # (H, CK)
    b1c = jnp.reshape(b1, (H, 1)).astype(jnp.float32)                   # (H, 1)

    # Batch tile: output block (tb, D) needs tb % 8 == 0 or tb == B.  Fall back
    # to a single batch step rather than padding B (no extra HBM traffic).
    if B % tb != 0 or tb % 8 != 0:
        tb = B

    # Point chunk: a multiple of 128 dividing N (or all of N if unaligned).
    if N % 128 == 0:
        chunk = max(128, (min(max_chunk, N) // 128) * 128)
        while N % chunk != 0:
            chunk -= 128
    else:
        chunk = N

    grid = (B // tb, N // chunk)

    # Explicit scoped-VMEM budget (2x headroom) -- stays well inside v7x's
    # 64 MiB physical VMEM and the 32 MiB scoped defaults on v5e/v6e.
    itemsize = jnp.dtype(compute_dtype).itemsize
    lane = 128
    vmem_est = (
        2 * tb * CK * chunk * itemsize            # pc chunk (double-buffered)
        + tb * CK * chunk * itemsize              # staging scratch
        + 2 * tb * H * chunk * 4                  # layer-1 act + GELU temps (f32)
        + tb * H * max(CK, lane) * itemsize       # broadcast weight temp
        + tb * H * 4                              # accumulator scratch
        + 2 * tb * max(D, lane) * 4               # output block (double-buffered)
        + (2 * H * lane + H * max(D, lane) + max(D, lane)) * 4   # weights/biases
    )
    vmem_limit = int(min(max(2 * vmem_est, 4 << 20), 32 << 20))

    cost = pl.CostEstimate(
        flops=2 * B * N * CK * H + B * N * H + 2 * B * H * D,
        transcendentals=B * N * H,
        bytes_accessed=(pc_cm.size * itemsize + (w1t.size + w2.size) * itemsize
                        + (b1c.size + b2.size) * 4 + B * D * 4),
    )

    kernel = functools.partial(_point_encoder_kernel, inv_n=1.0 / N)
    out = pl.pallas_call(
        kernel,
        out_shape=jax.ShapeDtypeStruct((B, D), jnp.float32),
        grid_spec=pltpu.PrefetchScalarGridSpec(
            num_scalar_prefetch=0,
            grid=grid,
            in_specs=[
                # Point-chunk stream.  If profiling shows exposed DMA here, add
                # pipeline_mode=pl.Buffered(3).
                pl.BlockSpec((tb, C, chunk), lambda b, k: (b, 0, k)),
                pl.BlockSpec((H, CK), lambda b, k: (0, 0)),     # W1^T (padded)
                pl.BlockSpec((H, 1), lambda b, k: (0, 0)),      # b1
                pl.BlockSpec((H, D), lambda b, k: (0, 0)),      # W2
                pl.BlockSpec((1, D), lambda b, k: (0, 0)),      # b2
            ],
            out_specs=pl.BlockSpec((tb, D), lambda b, k: (b, 0)),
            scratch_shapes=[
                pltpu.VMEM((tb, H), jnp.float32),               # pooled-sum acc
                pltpu.VMEM((tb, CK, chunk), compute_dtype),     # staging buffer
            ],
        ),
        compiler_params=pltpu.CompilerParams(
            dimension_semantics=("parallel", "arbitrary"),
            vmem_limit_bytes=vmem_limit),
        cost_estimate=cost,
    )(pc_cm, w1t, b1c, w2, b2)
    return out


# --------------------------- Uni3D forward glue ---------------------------- #

def init_uni3d_params(key, hidden=128, embed_dim=128, compute_dtype=jnp.float32):
    """Synthetic point-encoder weights + Uni3D logit_scale.

    W1 is the natural (6, hidden) weight (rows 0:3 act on xyz, 3:6 on color).
    Pass compute_dtype=bfloat16 to drive the MXU / HBM stream in bf16.
    """
    k1, k2 = jax.random.split(key, 2)
    w1 = 0.1 * jax.random.normal(k1, (6, hidden), dtype=jnp.float32)
    w2 = 0.1 * jax.random.normal(k2, (hidden, embed_dim), dtype=jnp.float32)
    return {
        # logit_scale = log(1 / 0.07), as in nn.Parameter(ones([]) * log(1/0.07))
        "logit_scale": jnp.asarray(math.log(1.0 / 0.07), dtype=jnp.float32),
        "w1": w1.astype(compute_dtype),
        "b1": jnp.zeros((1, hidden), dtype=jnp.float32),
        "w2": w2.astype(compute_dtype),
        "b2": jnp.zeros((1, embed_dim), dtype=jnp.float32),
    }


def uni3d_forward(params, pc, text, image=None):
    """Mirrors Uni3D.forward.

    pc   : (B, N, 6)   xyz in channels 0:3, color in channels 3:6
    text : passed through unchanged
    image: optional, passed through unchanged
    """
    pc_embed = encode_pc_pallas(params, pc)        # encode_pc (Pallas kernel)
    logit_scale = jnp.exp(params["logit_scale"])

    if image is not None:
        return {"text_embed": text, "pc_embed": pc_embed,
                "image_embed": image, "logit_scale": logit_scale}
    return {"text_embed": text, "pc_embed": pc_embed,
            "logit_scale": logit_scale}


# --------------------------------- main ------------------------------------ #

if __name__ == "__main__":
    key = jax.random.PRNGKey(0)
    k_pc, k_text, k_params = jax.random.split(key, 3)

    B, N, C = 16, 128, 6          # batch, points per cloud, channels (xyz+rgb)
    HIDDEN, EMBED = 128, 128

    pc = jax.random.normal(k_pc, (B, N, C), dtype=jnp.float32)
    text = jax.random.normal(k_text, (B, EMBED), dtype=jnp.float32)

    # ---- f32 path: tight check against the original encoder ordering ------ #
    params = init_uni3d_params(k_params, hidden=HIDDEN, embed_dim=EMBED)
    out = uni3d_forward(params, pc, text)
    jax.block_until_ready(out["pc_embed"])
    jax.block_until_ready(out["logit_scale"])

    # Pure-JAX reference in the ORIGINAL order (split xyz/color, pool AFTER the
    # second matmul) -- validates the channel-major / streaming-pool refactor.
    xyz, color = pc[:, :, :3], pc[:, :, 3:]
    w1f = params["w1"].astype(jnp.float32)
    w2f = params["w2"].astype(jnp.float32)
    h_ref = jax.nn.gelu(xyz @ w1f[:3] + color @ w1f[3:] + params["b1"],
                        approximate=True)
    ref = jnp.mean(h_ref @ w2f + params["b2"], axis=1)

    assert out["pc_embed"].shape == (B, EMBED)
    assert jnp.allclose(out["pc_embed"], ref, atol=1e-4, rtol=1e-4)
    assert out["text_embed"].shape == text.shape
    assert float(out["logit_scale"]) > 0.0

    # ---- bf16 path: exercises the reduced-HBM-traffic configuration ------- #
    params_bf16 = dict(params,
                       w1=params["w1"].astype(jnp.bfloat16),
                       w2=params["w2"].astype(jnp.bfloat16))
    out_bf16 = uni3d_forward(params_bf16, pc, text)["pc_embed"]
    jax.block_until_ready(out_bf16)
    assert out_bf16.shape == (B, EMBED)
    assert bool(jnp.all(jnp.isfinite(out_bf16)))
    assert jnp.allclose(out_bf16, ref, atol=5e-2, rtol=5e-2)

    print("KERNEL_OK")
</pallas_src>

<mosaic_0001>
module attributes {stable_mosaic.version = 11 : i64} {
  func.func @_point_encoder_kernel(%arg0: i32, %arg1: i32, %arg2: memref<8x6x128xf32, #tpu.memory_space<vmem>>, %arg3: memref<128x8xf32, #tpu.memory_space<vmem>>, %arg4: memref<128x1xf32, #tpu.memory_space<vmem>>, %arg5: memref<128x128xf32, #tpu.memory_space<vmem>>, %arg6: memref<1x128xf32, #tpu.memory_space<vmem>>, %arg7: memref<8x128xf32, #tpu.memory_space<vmem>>, %arg8: memref<8x128xf32, #tpu.memory_space<vmem>>, %arg9: memref<8x8x128xf32, #tpu.memory_space<vmem>>) attributes {dimension_semantics = [#tpu.dimension_semantics<parallel>, #tpu.dimension_semantics<arbitrary>], iteration_bounds = array<i64: 2, 1>, scalar_prefetch = 0 : i64, scratch_operands = 2 : i64, tpu.core_type = #tpu.core_type<tc>, window_params = [{transform_indices = @transform_0, window_bounds = array<i64: 8, 6, 128>}, {pipeline_mode = #tpu.pipeline_mode<synchronous>, transform_indices = @transform_1, window_bounds = array<i64: 128, 8>}, {pipeline_mode = #tpu.pipeline_mode<synchronous>, transform_indices = @transform_2, window_bounds = array<i64: 128, 1>}, {pipeline_mode = #tpu.pipeline_mode<synchronous>, transform_indices = @transform_3, window_bounds = array<i64: 128, 128>}, {pipeline_mode = #tpu.pipeline_mode<synchronous>, transform_indices = @transform_4, window_bounds = array<i64: 1, 128>}, {transform_indices = @transform_5, window_bounds = array<i64: 8, 128>}]} {
    %c0_i32 = arith.constant 0 : i32
    %0 = arith.cmpi eq, %arg1, %c0_i32 : i32
    %1 = arith.extui %0 : i1 to i32
    %c0_i32_0 = arith.constant 0 : i32
    %2 = arith.cmpi ne, %1, %c0_i32_0 : i32
    scf.if %2 {
      %cst_24 = arith.constant 0.000000e+00 : f32
      %35 = vector.broadcast %cst_24 : f32 to vector<8x128xf32>
      %c0_25 = arith.constant 0 : index
      %c0_26 = arith.constant 0 : index
      %36 = vector.load %arg8[%c0_25, %c0_26] : memref<8x128xf32, #tpu.memory_space<vmem>>, vector<8x128xf32>
      tpu.vector_store %arg8[%c0_25, %c0_26], %35 {strides = array<i32>} : memref<8x128xf32, #tpu.memory_space<vmem>>, vector<8x128xf32>,
      %cst_27 = arith.constant 0.000000e+00 : f32
      %37 = vector.broadcast %cst_27 : f32 to vector<8x8x128xf32>
      %c0_28 = arith.constant 0 : index
      %c0_29 = arith.constant 0 : index
      %c0_30 = arith.constant 0 : index
      %38 = vector.load %arg9[%c0_28, %c0_29, %c0_30] : memref<8x8x128xf32, #tpu.memory_space<vmem>>, vector<8x8x128xf32>
      tpu.vector_store %arg9[%c0_28, %c0_29, %c0_30], %37 {strides = array<i32>} : memref<8x8x128xf32, #tpu.memory_space<vmem>>, vector<8x8x128xf32>,
    } else {
    }
    %c0 = arith.constant 0 : index
    %c0_1 = arith.constant 0 : index
    %c0_2 = arith.constant 0 : index
    %3 = vector.load %arg2[%c0, %c0_1, %c0_2] : memref<8x6x128xf32, #tpu.memory_space<vmem>>, vector<8x6x128xf32>
    %c0_3 = arith.constant 0 : index
    %c0_4 = arith.constant 0 : index
    %c0_5 = arith.constant 0 : index
    %4 = vector.load %arg9[%c0_3, %c0_4, %c0_5] : memref<8x8x128xf32, #tpu.memory_space<vmem>>, vector<8x6x128xf32>
    tpu.vector_store %arg9[%c0_3, %c0_4, %c0_5], %3 {strides = array<i32>} : memref<8x8x128xf32, #tpu.memory_space<vmem>>, vector<8x6x128xf32>,
    %c0_6 = arith.constant 0 : index
    %c0_7 = arith.constant 0 : index
    %c0_8 = arith.constant 0 : index
    %5 = vector.load %arg9[%c0_6, %c0_7, %c0_8] : memref<8x8x128xf32, #tpu.memory_space<vmem>>, vector<8x8x128xf32>
    %c0_9 = arith.constant 0 : index
    %c0_10 = arith.constant 0 : index
    %6 = vector.load %arg3[%c0_9, %c0_10] : memref<128x8xf32, #tpu.memory_space<vmem>>, vector<128x8xf32>
    %7 = vector.shape_cast %6 : vector<128x8xf32> to vector<1x128x8xf32>
    %8 = vector.shape_cast %7 : vector<1x128x8xf32> to vector<1x128x8xf32>
    %9 = vector.broadcast %8 : vector<1x128x8xf32> to vector<8x128x8xf32>
    %cst = arith.constant dense<0.000000e+00> : vector<8x128x128xf32>
    %10 = tpu.matmul %9, %5, %cst {dimension_numbers = #tpu.dot_dimension_numbers<[2], [1], [1], [2], [0, 0, 0, 1, 1, 2], [0], [0]>} : vector<8x128x8xf32>, vector<8x8x128xf32>, vector<8x128x128xf32> -> vector<8x128x128xf32>
    %c0_11 = arith.constant 0 : index
    %c0_12 = arith.constant 0 : index
    %11 = vector.load %arg4[%c0_11, %c0_12] : memref<128x1xf32, #tpu.memory_space<vmem>>, vector<128x1xf32>
    %12 = vector.shape_cast %11 : vector<128x1xf32> to vector<1x128x1xf32>
    %13 = vector.broadcast %12 : vector<1x128x1xf32> to vector<8x128x128xf32>
    %14 = arith.addf %10, %13 : vector<8x128x128xf32>
    %15 = arith.mulf %14, %14 : vector<8x128x128xf32>
    %16 = arith.mulf %14, %15 : vector<8x128x128xf32>
    %cst_13 = arith.constant 4.471500e-02 : f32
    %17 = vector.broadcast %cst_13 : f32 to vector<8x128x128xf32>
    %18 = arith.mulf %17, %16 : vector<8x128x128xf32>
    %19 = arith.addf %14, %18 : vector<8x128x128xf32>
    %cst_14 = arith.constant 0.797884583 : f32
    %20 = vector.broadcast %cst_14 : f32 to vector<8x128x128xf32>
    %21 = arith.mulf %20, %19 : vector<8x128x128xf32>
    %22 = math.tanh %21 : vector<8x128x128xf32>
    %cst_15 = arith.constant 1.000000e+00 : f32
    %23 = vector.broadcast %cst_15 : f32 to vector<8x128x128xf32>
    %24 = arith.addf %23, %22 : vector<8x128x128xf32>
    %cst_16 = arith.constant 5.000000e-01 : f32
    %25 = vector.broadcast %cst_16 : f32 to vector<8x128x128xf32>
    %26 = arith.mulf %25, %24 : vector<8x128x128xf32>
    %27 = arith.mulf %14, %26 : vector<8x128x128xf32>
    %c0_17 = arith.constant 0 : index
    %c0_18 = arith.constant 0 : index
    %28 = vector.load %arg8[%c0_17, %c0_18] : memref<8x128xf32, #tpu.memory_space<vmem>>, vector<8x128xf32>
    %cst_19 = arith.constant dense<0.000000e+00> : vector<8x128xf32>
    %29 = vector.multi_reduction <add>, %27, %cst_19 [2] : vector<8x128x128xf32> to vector<8x128xf32>
    %30 = arith.addf %28, %29 : vector<8x128xf32>
    %c0_20 = arith.constant 0 : index
    %c0_21 = arith.constant 0 : index
    %31 = vector.load %arg8[%c0_20, %c0_21] : memref<8x128xf32, #tpu.memory_space<vmem>>, vector<8x128xf32>
    tpu.vector_store %arg8[%c0_20, %c0_21], %30 {strides = array<i32>} : memref<8x128xf32, #tpu.memory_space<vmem>>, vector<8x128xf32>,
    %c0_i32_22 = arith.constant 0 : i32
    %32 = arith.cmpi eq, %arg1, %c0_i32_22 : i32
    %33 = arith.extui %32 : i1 to i32
    %c0_i32_23 = arith.constant 0 : i32
    %34 = arith.cmpi ne, %33, %c0_i32_23 : i32
    scf.if %34 {
      %c0_24 = arith.constant 0 : index
      %c0_25 = arith.constant 0 : index
      %35 = vector.load %arg8[%c0_24, %c0_25] : memref<8x128xf32, #tpu.memory_space<vmem>>, vector<8x128xf32>
      %cst_26 = arith.constant 7.812500e-03 : f32
      %36 = vector.broadcast %cst_26 : f32 to vector<8x128xf32>
      %37 = arith.mulf %35, %36 : vector<8x128xf32>
      %c0_27 = arith.constant 0 : index
      %c0_28 = arith.constant 0 : index
      %38 = vector.load %arg5[%c0_27, %c0_28] : memref<128x128xf32, #tpu.memory_space<vmem>>, vector<128x128xf32>
      %cst_29 = arith.constant dense<0.000000e+00> : vector<8x128xf32>
      %39 = tpu.matmul %37, %38, %cst_29 {dimension_numbers = #tpu.dot_dimension_numbers<[1], [0], [0], [1], [0, 0, 1, 1], [], []>} : vector<8x128xf32>, vector<128x128xf32>, vector<8x128xf32> -> vector<8x128xf32>
      %c0_30 = arith.constant 0 : index
      %c0_31 = arith.constant 0 : index
      %40 = vector.load %arg6[%c0_30, %c0_31] : memref<1x128xf32, #tpu.memory_space<vmem>>, vector<1x128xf32>
      %41 = vector.broadcast %40 : vector<1x128xf32> to vector<8x128xf32>
      %42 = arith.addf %39, %41 : vector<8x128xf32>
      %c0_32 = arith.constant 0 : index
      %c0_33 = arith.constant 0 : index
      %43 = vector.load %arg7[%c0_32, %c0_33] : memref<8x128xf32, #tpu.memory_space<vmem>>, vector<8x128xf32>
      tpu.vector_store %arg7[%c0_32, %c0_33], %42 {strides = array<i32>} : memref<8x128xf32, #tpu.memory_space<vmem>>, vector<8x128xf32>,
    } else {
    }
    return
  }
  func.func @transform_0(%arg0: i32, %arg1: i32) -> (i32, i32, i32) {
    %c0_i32 = arith.constant 0 : i32
    %c0_i32_0 = arith.constant 0 : i32
    return %arg0, %c0_i32, %arg1 : i32, i32, i32
  }
  func.func @transform_1(%arg0: i32, %arg1: i32) -> (i32, i32) {
    %c0_i32 = arith.constant 0 : i32
    %c0_i32_0 = arith.constant 0 : i32
    %c0_i32_1 = arith.constant 0 : i32
    return %c0_i32, %c0_i32_0 : i32, i32
  }
  func.func @transform_2(%arg0: i32, %arg1: i32) -> (i32, i32) {
    %c0_i32 = arith.constant 0 : i32
    %c0_i32_0 = arith.constant 0 : i32
    %c0_i32_1 = arith.constant 0 : i32
    return %c0_i32, %c0_i32_0 : i32, i32
  }
  func.func @transform_3(%arg0: i32, %arg1: i32) -> (i32, i32) {
    %c0_i32 = arith.constant 0 : i32
    %c0_i32_0 = arith.constant 0 : i32
    %c0_i32_1 = arith.constant 0 : i32
    return %c0_i32, %c0_i32_0 : i32, i32
  }
  func.func @transform_4(%arg0: i32, %arg1: i32) -> (i32, i32) {
    %c0_i32 = arith.constant 0 : i32
    %c0_i32_0 = arith.constant 0 : i32
    %c0_i32_1 = arith.constant 0 : i32
    return %c0_i32, %c0_i32_0 : i32, i32
  }
  func.func @transform_5(%arg0: i32, %arg1: i32) -> (i32, i32) {
    %c0_i32 = arith.constant 0 : i32
    %c0_i32_0 = arith.constant 0 : i32
    return %arg0, %c0_i32 : i32, i32
  }
}

</mosaic_0001>

<llo_original>
// kernel: tpu_custom_call.1
$region0: #{tpu_custom_call.1}
  #allocation0 [shape = 'u32[]', space=smem, size = 0x4, offset = 0x4, fixed_abs, tag = 'smem constant byte address 0x4 - core index']
  #allocation1 [shape = 'u32[144,128]{1,0:T(1,128)}', space=vmem, size = 0x12000, scoped, tag = 'internal scratch']
  #allocation2 [shape = 'f32[8,128]{1,0:T(8,128)}', space=vmem, size = 0x1000, scoped, tag = 'scratch operand']
  #allocation3 [shape = 'f32[8,8,128]{2,1,0:T(8,128)}', space=vmem, size = 0x8000, scoped, tag = 'scratch operand']
  %s0 = inlined_call_operand.vmem [shape: f32[16,6,128], index: 0, kind: input, shape index: {}]
  %s1 = inlined_call_operand.vmem [shape: f32[128,8], index: 1, kind: input, shape index: {}]
  %s2 = inlined_call_operand.vmem [shape: f32[128,1], index: 2, kind: input, shape index: {}]
  %s3 = inlined_call_operand.vmem [shape: f32[128,128], index: 3, kind: input, shape index: {}]
  %s4 = inlined_call_operand.vmem [shape: f32[1,128], index: 4, kind: input, shape index: {}]
  %s5 = inlined_call_operand.hbm [shape: f32[16,128], index: 5, kind: output, shape index: {}]
  %s6 = sld [smem:[#allocation0]]
  $region61: #{tpu_custom_call.1} parent=0
    _
  %s8 = ssub.s32 1, %s6
  %s9 = scalar_select 0, %s8, %s6
  $region1: #{tpu_custom_call.1} parent=0
    #allocation4 [shape = 'u8[8192]{0}', space=vmem, size = 0x2000, scoped, tag = 'output window, operand 0']
    #allocation5 [shape = 's32[2]{0}', space=sflag, size = 0x8, scoped, tag = 'scoped memory for tpu_custom_call.1']
    %10 = vsyncpa [#allocation5], 0
    %s11 = scalar_lea.sflag [#allocation5], 1
    %12 = vsyncpa %s11, 0
    loop: start=0, step=1, limit=4
    $region2: #{tpu_custom_call.1} parent=1 // loop_pre_header
      _
    $region3: #{tpu_custom_call.1} parent=1 // loop_header
      %s14 = sphi 0, %s18
      %p15 = scmp.ge.s32.totalorder %s14, 4
      %s21 = sphi 0, %s33
      %s22 = sphi 0, %s29
      %s23 = sphi 0, %s21
      %s24 = sphi 0, %s22
      %s25 = sphi 0, %s23
      %s26 = sphi 0, %s24
      %s38 = sphi 0, %s40
      %s41 = sphi 0, %s38
      %s42 = sphi 0, %s41
      %s58 = sphi 0, %s42
      %s62 = sphi 0, %s62
      %s64 = sphi 0, %s62
      %s65 = sphi 0, %s64
      %s79 = sphi 0, %s65
      %s83 = sphi 0, %s83
      %s85 = sphi 0, %s83
      %s86 = sphi 0, %s85
      %s100 = sphi 0, %s86
      %s104 = sphi 0, %s104
      %s106 = sphi 0, %s104
      %s107 = sphi 0, %s106
      %s121 = sphi 0, %s107
      %s125 = sphi 0, %s125
      %s127 = sphi 0, %s125
      %s128 = sphi 0, %s127
      %s142 = sphi 0, %s128
      %s148 = sphi 0, %s150
      %s151 = sphi 0, %s148
      %s152 = sphi 0, %s151
      %s168 = sphi 0, %s152
    $region4: #{tpu_custom_call.1} parent=1 // loop_header_branch
      %17 = sbr.rel (%p15) target = $region8
    $region5: #{tpu_custom_call.1} parent=1 // loop_body
      %s19 = ssub.s32 %s14, 1
      %s20 = ssub.s32 %s14, 2
      %s27 = sadd.s32 1, %s22
      %p28 = scmp.ge.s32.totalorder %s27, 1
      %s29 = scalar_select %p28, 0, %s27
      %s30 = sadd.s32 1, %s21
      %s31 = scalar_select %p28, %s30, %s21
      %p32 = scmp.ge.s32.totalorder %s31, 2
      %s33 = scalar_select %p32, 0, %s31
      %s34 = ssub.s32 %s21, %s33
      %s35 = ssub.s32 %s22, %s29
      %s36 = sor.u32 %s34, %s35
      %p37 = scmp.eq.s32.totalorder %s36, 0
      %s39 = sadd.s32 %s38, 1
      %s40 = scalar_select %p37, %s38, %s39
      %p43 = pneg %p37
      %p44 = scmp.eq.s32.totalorder %s14, 1
      %p45 = por %p43, %p44
      %p46 = scmp.ne.s32.totalorder %s38, %s41
      %p47 = scmp.eq.s32.totalorder %s14, 0
      %p48 = por %p46, %p47
      %p49 = scmp.ne.s32.totalorder %s38, %s41
      %p50 = scmp.eq.s32.totalorder %s19, 1
      %p51 = por %p49, %p50
      %p52 = scmp.ne.s32.totalorder %s41, %s42
      %p53 = scmp.eq.s32.totalorder %s19, 0
      %p54 = por %p52, %p53
      %p55 = scmp.ne.s32.totalorder %s41, %s42
      %p56 = scmp.eq.s32.totalorder %s20, 1
      %p57 = por %p55, %p56
      %p59 = scmp.ne.s32.totalorder %s42, %s58
      %p60 = scmp.eq.s32.totalorder %s20, 0
      %p61 = por %p59, %p60
      %s63 = sadd.s32 %s62, 1
      %p66 = scmp.eq.s32.totalorder %s14, 1
      %p67 = scmp.ne.s32.totalorder %s62, %s64
      %p68 = scmp.eq.s32.totalorder %s14, 0
      %p69 = por %p67, %p68
      %p70 = scmp.ne.s32.totalorder %s62, %s64
      %p71 = scmp.eq.s32.totalorder %s19, 1
      %p72 = por %p70, %p71
      %p73 = scmp.ne.s32.totalorder %s64, %s65
      %p74 = scmp.eq.s32.totalorder %s19, 0
      %p75 = por %p73, %p74
      %p76 = scmp.ne.s32.totalorder %s64, %s65
      %p77 = scmp.eq.s32.totalorder %s20, 1
      %p78 = por %p76, %p77
      %p80 = scmp.ne.s32.totalorder %s65, %s79
      %p81 = scmp.eq.s32.totalorder %s20, 0
      %p82 = por %p80, %p81
      %s84 = sadd.s32 %s83, 1
      %p87 = scmp.eq.s32.totalorder %s14, 1
      %p88 = scmp.ne.s32.totalorder %s83, %s85
      %p89 = scmp.eq.s32.totalorder %s14, 0
      %p90 = por %p88, %p89
      %p91 = scmp.ne.s32.totalorder %s83, %s85
      %p92 = scmp.eq.s32.totalorder %s19, 1
      %p93 = por %p91, %p92
      %p94 = scmp.ne.s32.totalorder %s85, %s86
      %p95 = scmp.eq.s32.totalorder %s19, 0
      %p96 = por %p94, %p95
      %p97 = scmp.ne.s32.totalorder %s85, %s86
      %p98 = scmp.eq.s32.totalorder %s20, 1
      %p99 = por %p97, %p98
      %p101 = scmp.ne.s32.totalorder %s86, %s100
      %p102 = scmp.eq.s32.totalorder %s20, 0
      %p103 = por %p101, %p102
      %s105 = sadd.s32 %s104, 1
      %p108 = scmp.eq.s32.totalorder %s14, 1
      %p109 = scmp.ne.s32.totalorder %s104, %s106
      %p110 = scmp.eq.s32.totalorder %s14, 0
      %p111 = por %p109, %p110
      %p112 = scmp.ne.s32.totalorder %s104, %s106
      %p113 = scmp.eq.s32.totalorder %s19, 1
      %p114 = por %p112, %p113
      %p115 = scmp.ne.s32.totalorder %s106, %s107
      %p116 = scmp.eq.s32.totalorder %s19, 0
      %p117 = por %p115, %p116
      %p118 = scmp.ne.s32.totalorder %s106, %s107
      %p119 = scmp.eq.s32.totalorder %s20, 1
      %p120 = por %p118, %p119
      %p122 = scmp.ne.s32.totalorder %s107, %s121
      %p123 = scmp.eq.s32.totalorder %s20, 0
      %p124 = por %p122, %p123
      %s126 = sadd.s32 %s125, 1
      %p129 = scmp.eq.s32.totalorder %s14, 1
      %p130 = scmp.ne.s32.totalorder %s125, %s127
      %p131 = scmp.eq.s32.totalorder %s14, 0
      %p132 = por %p130, %p131
      %p133 = scmp.ne.s32.totalorder %s125, %s127
      %p134 = scmp.eq.s32.totalorder %s19, 1
      %p135 = por %p133, %p134
      %p136 = scmp.ne.s32.totalorder %s127, %s128
      %p137 = scmp.eq.s32.totalorder %s19, 0
      %p138 = por %p136, %p137
      %p139 = scmp.ne.s32.totalorder %s127, %s128
      %p140 = scmp.eq.s32.totalorder %s20, 1
      %p141 = por %p139, %p140
      %p143 = scmp.ne.s32.totalorder %s128, %s142
      %p144 = scmp.eq.s32.totalorder %s20, 0
      %p145 = por %p143, %p144
      %s146 = ssub.s32 %s21, %s33
      %p147 = scmp.eq.s32.totalorder %s146, 0
      %s149 = sadd.s32 %s148, 1
      %s150 = scalar_select %p147, %s148, %s149
      %p153 = pneg %p147
      %p154 = scmp.eq.s32.totalorder %s14, 1
      %p155 = por %p153, %p154
      %p156 = scmp.ne.s32.totalorder %s148, %s151
      %p157 = scmp.eq.s32.totalorder %s14, 0
      %p158 = por %p156, %p157
      %p159 = scmp.ne.s32.totalorder %s148, %s151
      %p160 = scmp.eq.s32.totalorder %s19, 1
      %p161 = por %p159, %p160
      %p162 = scmp.ne.s32.totalorder %s151, %s152
      %p163 = scmp.eq.s32.totalorder %s19, 0
      %p164 = por %p162, %p163
      %p165 = scmp.ne.s32.totalorder %s151, %s152
      %p166 = scmp.eq.s32.totalorder %s20, 1
      %p167 = por %p165, %p166
      %p169 = scmp.ne.s32.totalorder %s152, %s168
      %p170 = scmp.eq.s32.totalorder %s20, 0
      %p171 = por %p169, %p170
      %p172 = scmp.le.s32.totalorder 1, %s14
      %p173 = scmp.lt.s32.totalorder %s14, 3
      %p174 = pnand %p172, %p173
      %p175 = pneg %p174
      // Predicated region
      $region9: #{tpu_custom_call.1} parent=5 // pred_check
        _
      $region10: #{tpu_custom_call.1} parent=5 // pred_check_branch
        %177 = sbr.rel (%p174) target = $region12
      $region11: #{tpu_custom_call.1} parent=5 // pred_region
        %s178 = ssub.s32 %s14, 1
        // Predicated region
        $region13: #{tpu_custom_call.1} parent=11 // pred_check
          %p179 = pneg %p75
        $region14: #{tpu_custom_call.1} parent=11 // pred_check_branch
          %181 = sbr.rel (%p179) target = $region16
        $region15: #{tpu_custom_call.1} parent=11 // pred_region
          _
        $region16: #{tpu_custom_call.1} parent=11 // pred_fallthru
          _
        // Predicated region
        $region17: #{tpu_custom_call.1} parent=11 // pred_check
          %p182 = pneg %p96
        $region18: #{tpu_custom_call.1} parent=11 // pred_check_branch
          %184 = sbr.rel (%p182) target = $region20
        $region19: #{tpu_custom_call.1} parent=11 // pred_region
          _
        $region20: #{tpu_custom_call.1} parent=11 // pred_fallthru
          _
        // Predicated region
        $region21: #{tpu_custom_call.1} parent=11 // pred_check
          %p185 = pneg %p117
        $region22: #{tpu_custom_call.1} parent=11 // pred_check_branch
          %187 = sbr.rel (%p185) target = $region24
        $region23: #{tpu_custom_call.1} parent=11 // pred_region
          _
        $region24: #{tpu_custom_call.1} parent=11 // pred_fallthru
          _
        // Predicated region
        $region25: #{tpu_custom_call.1} parent=11 // pred_check
          %p188 = pneg %p138
        $region26: #{tpu_custom_call.1} parent=11 // pred_check_branch
          %190 = sbr.rel (%p188) target = $region28
        $region27: #{tpu_custom_call.1} parent=11 // pred_region
          _
        $region28: #{tpu_custom_call.1} parent=11 // pred_fallthru
          _
      $region12: #{tpu_custom_call.1} parent=5 // pred_fallthru
        _
      %p191 = scmp.lt.s32.totalorder %s14, 2
      // Predicated region
      $region29: #{tpu_custom_call.1} parent=5 // pred_check
        %p192 = pneg %p191
      $region30: #{tpu_custom_call.1} parent=5 // pred_check_branch
        %194 = sbr.rel (%p192) target = $region32
      $region31: #{tpu_custom_call.1} parent=5 // pred_region
        // Predicated region
        $region33: #{tpu_custom_call.1} parent=31 // pred_check
          %p195 = pneg %p48
        $region34: #{tpu_custom_call.1} parent=31 // pred_check_branch
          %197 = sbr.rel (%p195) target = $region36
        $region35: #{tpu_custom_call.1} parent=31 // pred_region
          %s198 = smul.u32 8, %s21
          %p199 = scmp.lt.s32.totalorder %s198, 15
          %s200 = scalar_select %p199, %s198, 15
          %p201 = scmp.lt.s32.totalorder %s22, 0
          %s202 = scalar_select %p201, %s22, 0
          %s203 = sadd.s32 %s202, %s200
          %s204 = smul.addr %s203, 8
          %s205 = scalar_lea.vmem %s0, %s204
          %s206 = smul.u32 8, %s21
        $region36: #{tpu_custom_call.1} parent=31 // pred_fallthru
          _
      $region32: #{tpu_custom_call.1} parent=5 // pred_fallthru
        _
      %p207 = scmp.le.s32.totalorder 1, %s14
      %p208 = scmp.lt.s32.totalorder %s14, 3
      %p209 = pnand %p207, %p208
      %p210 = pneg %p209
      // Predicated region
      $region37: #{tpu_custom_call.1} parent=5 // pred_check
        _
      $region38: #{tpu_custom_call.1} parent=5 // pred_check_branch
        %212 = sbr.rel (%p209) target = $region40
      $region39: #{tpu_custom_call.1} parent=5 // pred_region
        %s213 = ssub.s32 %s14, 1
        %s214 = smul.u32 8, %s23
        %p215 = scmp.lt.s32.totalorder %s214, 15
        %s216 = scalar_select %p215, %s214, 15
        %p217 = scmp.lt.s32.totalorder %s24, 0
        %s218 = scalar_select %p217, %s24, 0
        %s219 = sadd.s32 %s218, %s216
        %s220 = smul.addr %s219, 8
        %s221 = scalar_lea.vmem %s0, %s220
        %p222 = pneg %p54
        %p223 = pneg %p51
        %p224 = pneg %p75
        %p225 = pneg %p72
        %p226 = pneg %p96
        %p227 = pneg %p93
        %p228 = pneg %p117
        %p229 = pneg %p114
        %p230 = pneg %p138
        %p231 = pneg %p135
        %p232 = pneg %p164
        %p233 = pneg %p161
        %s234 = sand.u32 %s151, 1
        %s235 = scalar_lea.sflag [#allocation5], %s234
        %s236 = sand.u32 %s151, 1
        %s237 = smul.addr %s236, 8
        %s238 = scalar_lea.vmem [#allocation4], %s237
        %s239 = smul.u32 8, %s23
        %p240 = scmp.lt.s32.totalorder %s239, 15
        %s241 = scalar_select %p240, %s239, 15
        %p242 = scmp.lt.s32.totalorder %s24, 0
        %s243 = scalar_select %p242, %s24, 0
        %s244 = sadd.s32 %s243, %s241
        %s245 = smul.addr %s244, 8
        %s246 = scalar_lea.vmem %s0, %s245
        %s247 = smul.u32 8, %s23
        %p248 = scmp.eq.s32.totalorder %s24, 0
        // Predicated region
        $region41: #{tpu_custom_call.1} parent=39 // pred_check
          %p249 = pneg %p248
        $region42: #{tpu_custom_call.1} parent=39 // pred_check_branch
          %251 = sbr.rel (%p249) target = $region44
        $region43: #{tpu_custom_call.1} parent=39 // pred_region
          %252 = vst [vmem:[#allocation2] sm:$0xff] 0.0
          %253 = vst [vmem:[#allocation3] sm:$0xff] 0.0
          %254 = vst [vmem:[#allocation3 + $0x8] sm:$0xff] 0.0
          %255 = vst [vmem:[#allocation3 + $0x10] sm:$0xff] 0.0
          %256 = vst [vmem:[#allocation3 + $0x18] sm:$0xff] 0.0
          %257 = vst [vmem:[#allocation3 + $0x20] sm:$0xff] 0.0
          %258 = vst [vmem:[#allocation3 + $0x28] sm:$0xff] 0.0
          %259 = vst [vmem:[#allocation3 + $0x30] sm:$0xff] 0.0
          %260 = vst [vmem:[#allocation3 + $0x38] sm:$0xff] 0.0
        $region44: #{tpu_custom_call.1} parent=39 // pred_fallthru
          _
        %v261 = vld [vmem:[%s246] sm:$0x3f]
        %v262 = vld [vmem:[%s246 + $0x8] sm:$0x3f]
        %v263 = vld [vmem:[%s246 + $0x10] sm:$0x3f]
        %v264 = vld [vmem:[%s246 + $0x18] sm:$0x3f]
        %v265 = vld [vmem:[%s246 + $0x20] sm:$0x3f]
        %v266 = vld [vmem:[%s246 + $0x28] sm:$0x3f]
        %v267 = vld [vmem:[%s246 + $0x30] sm:$0x3f]
        %v268 = vld [vmem:[%s246 + $0x38] sm:$0x3f]
        %269 = vst [vmem:[#allocation3] sm:$0x3f] %v261
        %270 = vst [vmem:[#allocation3 + $0x8] sm:$0x3f] %v262
        %271 = vst [vmem:[#allocation3 + $0x10] sm:$0x3f] %v263
        %272 = vst [vmem:[#allocation3 + $0x18] sm:$0x3f] %v264
        %273 = vst [vmem:[#allocation3 + $0x20] sm:$0x3f] %v265
        %274 = vst [vmem:[#allocation3 + $0x28] sm:$0x3f] %v266
        %275 = vst [vmem:[#allocation3 + $0x30] sm:$0x3f] %v267
        %276 = vst [vmem:[#allocation3 + $0x38] sm:$0x3f] %v268
        %v277 = vld [vmem:[#allocation3] sm:$0xff]
        %v278 = vld [vmem:[#allocation3 + $0x8] sm:$0xff]
        %v279 = vld [vmem:[#allocation3 + $0x10] sm:$0xff]
        %v280 = vld [vmem:[#allocation3 + $0x18] sm:$0xff]
        %v281 = vld [vmem:[#allocation3 + $0x20] sm:$0xff]
        %v282 = vld [vmem:[#allocation3 + $0x28] sm:$0xff]
        %v283 = vld [vmem:[#allocation3 + $0x30] sm:$0xff]
        %v284 = vld [vmem:[#allocation3 + $0x38] sm:$0xff]
        %v285 = vld [vmem:[%s1] sm:$0xff]
        %v286 = vld [vmem:[%s1 + $0x8] sm:$0xff]
        %v287 = vld [vmem:[%s1 + $0x10] sm:$0xff]
        %v288 = vld [vmem:[%s1 + $0x18] sm:$0xff]
        %v289 = vld [vmem:[%s1 + $0x20] sm:$0xff]
        %v290 = vld [vmem:[%s1 + $0x28] sm:$0xff]
        %v291 = vld [vmem:[%s1 + $0x30] sm:$0xff]
        %v292 = vld [vmem:[%s1 + $0x38] sm:$0xff]
        %v293 = vld [vmem:[%s1 + $0x40] sm:$0xff]
        %v294 = vld [vmem:[%s1 + $0x48] sm:$0xff]
        %v295 = vld [vmem:[%s1 + $0x50] sm:$0xff]
        %v296 = vld [vmem:[%s1 + $0x58] sm:$0xff]
        %v297 = vld [vmem:[%s1 + $0x60] sm:$0xff]
        %v298 = vld [vmem:[%s1 + $0x68] sm:$0xff]
        %v299 = vld [vmem:[%s1 + $0x70] sm:$0xff]
        %v300 = vld [vmem:[%s1 + $0x78] sm:$0xff]
        %v301 = vld [vmem:[%s2] sm:$0xff]
        %v302 = vld [vmem:[%s2 + $0x8] sm:$0xff]
        %v303 = vld [vmem:[%s2 + $0x10] sm:$0xff]
        %v304 = vld [vmem:[%s2 + $0x18] sm:$0xff]
        %v305 = vld [vmem:[%s2 + $0x20] sm:$0xff]
        %v306 = vld [vmem:[%s2 + $0x28] sm:$0xff]
        %v307 = vld [vmem:[%s2 + $0x30] sm:$0xff]
        %v308 = vld [vmem:[%s2 + $0x38] sm:$0xff]
        %v309 = vld [vmem:[%s2 + $0x40] sm:$0xff]
        %v310 = vld [vmem:[%s2 + $0x48] sm:$0xff]
        %v311 = vld [vmem:[%s2 + $0x50] sm:$0xff]
        %v312 = vld [vmem:[%s2 + $0x58] sm:$0xff]
        %v313 = vld [vmem:[%s2 + $0x60] sm:$0xff]
        %v314 = vld [vmem:[%s2 + $0x68] sm:$0xff]
        %v315 = vld [vmem:[%s2 + $0x70] sm:$0xff]
        %v316 = vld [vmem:[%s2 + $0x78] sm:$0xff]
        %318 = vset.pattern.permute.xlu0 0
        %319 = vperm.xlu0 %318, %v301
        %v320 = vpop.permute.xlu0 %319
        %323 = vset.pattern.permute.xlu0 0
        %324 = vperm.xlu0 %323, %v302
        %v325 = vpop.permute.xlu0 %324
        %328 = vset.pattern.permute.xlu0 0
        %329 = vperm.xlu0 %328, %v303
        %v330 = vpop.permute.xlu0 %329
        %333 = vset.pattern.permute.xlu0 0
        %334 = vperm.xlu0 %333, %v304
        %v335 = vpop.permute.xlu0 %334
        %338 = vset.pattern.permute.xlu0 0
        %339 = vperm.xlu0 %338, %v305
        %v340 = vpop.permute.xlu0 %339
        %343 = vset.pattern.permute.xlu0 0
        %344 = vperm.xlu0 %343, %v306
        %v345 = vpop.permute.xlu0 %344
        %348 = vset.pattern.permute.xlu0 0
        %349 = vperm.xlu0 %348, %v307
        %v350 = vpop.permute.xlu0 %349
        %353 = vset.pattern.permute.xlu0 0
        %354 = vperm.xlu0 %353, %v308
        %v355 = vpop.permute.xlu0 %354
        %358 = vset.pattern.permute.xlu0 0
        %359 = vperm.xlu0 %358, %v309
        %v360 = vpop.permute.xlu0 %359
        %363 = vset.pattern.permute.xlu0 0
        %364 = vperm.xlu0 %363, %v310
        %v365 = vpop.permute.xlu0 %364
        %368 = vset.pattern.permute.xlu0 0
        %369 = vperm.xlu0 %368, %v311
        %v370 = vpop.permute.xlu0 %369
        %373 = vset.pattern.permute.xlu0 0
        %374 = vperm.xlu0 %373, %v312
        %v375 = vpop.permute.xlu0 %374
        %378 = vset.pattern.permute.xlu0 0
        %379 = vperm.xlu0 %378, %v313
        %v380 = vpop.permute.xlu0 %379
        %383 = vset.pattern.permute.xlu0 0
        %384 = vperm.xlu0 %383, %v314
        %v385 = vpop.permute.xlu0 %384
        %388 = vset.pattern.permute.xlu0 0
        %389 = vperm.xlu0 %388, %v315
        %v390 = vpop.permute.xlu0 %389
        %393 = vset.pattern.permute.xlu0 0
        %394 = vperm.xlu0 %393, %v316
        %v395 = vpop.permute.xlu0 %394
        %vm397 = vcmask 64512
        %v399 = vsel %vm397, %v285, 0
        %v402 = vsel %vm397, %v286, 0
        %v405 = vsel %vm397, %v287, 0
        %v408 = vsel %vm397, %v288, 0
        %v411 = vsel %vm397, %v289, 0
        %v414 = vsel %vm397, %v290, 0
        %v417 = vsel %vm397, %v291, 0
        %v420 = vsel %vm397, %v292, 0
        %v423 = vsel %vm397, %v293, 0
        %v426 = vsel %vm397, %v294, 0
        %v429 = vsel %vm397, %v295, 0
        %v432 = vsel %vm397, %v296, 0
        %v435 = vsel %vm397, %v297, 0
        %v438 = vsel %vm397, %v298, 0
        %v441 = vsel %vm397, %v299, 0
        %v444 = vsel %vm397, %v300, 0
        %446 = vmatprep.subr.mxu0 0.0
        %447 = vmatpush1.msra.mxu0 %v277
        %448 = vmatprep.subr.mxu0 0.0
        %449 = vmatpush1.msra.mxu0 0.0
        %450 = vmatprep.subr.mxu0 0.0
        %451 = vmatpush1.msra.mxu0 0.0
        %452 = vmatprep.subr.mxu0 0.0
        %453 = vmatpush1.msra.mxu0 0.0
        %454 = vmatprep.subr.mxu0 0.0
        %455 = vmatpush1.msra.mxu0 0.0
        %456 = vmatprep.subr.mxu0 0.0
        %457 = vmatpush1.msra.mxu0 0.0
        %458 = vmatprep.subr.mxu0 0.0
        %459 = vmatpush1.msra.mxu0 0.0
        %460 = vmatprep.subr.mxu0 0.0
        %461 = vmatpush1.msra.mxu0 0.0
        %462 = vmatprep.subr.mxu0 0.0
        %463 = vmatpush1.msra.mxu0 0.0
        %464 = vmatprep.subr.mxu0 0.0
        %465 = vmatpush1.msra.mxu0 0.0
        %466 = vmatprep.subr.mxu0 0.0
        %467 = vmatpush1.msra.mxu0 0.0
        %468 = vmatprep.subr.mxu0 0.0
        %469 = vmatpush1.msra.mxu0 0.0
        %470 = vmatprep.subr.mxu0 0.0
        %471 = vmatpush1.msra.mxu0 0.0
        %472 = vmatprep.subr.mxu0 0.0
        %473 = vmatpush1.msra.mxu0 0.0
        %474 = vmatprep.subr.mxu0 0.0
        %475 = vmatpush1.msra.mxu0 0.0
        %476 = vmatprep.subr.mxu0 0.0
        %477 = vmatpush1.msra.mxu0 0.0
        %478 = vmatprep.subr.mxu0 0.0
        %479 = vmatpush1.msra.mxu0 0.0
        %480 = vmatprep.subr.mxu0 0.0
        %481 = vmatpush1.msra.mxu0 0.0
        %482 = vmatprep.subr.mxu0 0.0
        %483 = vmatpush1.msra.mxu0 0.0
        %484 = vmatprep.subr.mxu0 0.0
        %485 = vmatpush1.msra.mxu0 0.0
        %486 = vmatprep.subr.mxu0 0.0
        %487 = vmatpush1.msra.mxu0 0.0
        %488 = vmatprep.subr.mxu0 0.0
        %489 = vmatpush1.msra.mxu0 0.0
        %490 = vmatprep.subr.mxu0 0.0
        %491 = vmatpush1.msra.mxu0 0.0
        %492 = vmatprep.subr.mxu0 0.0
        %493 = vmatpush1.msra.mxu0 0.0
        %494 = vmatprep.subr.mxu0 0.0
        %495 = vmatpush1.msra.mxu0 0.0
        %496 = vmatprep.subr.mxu0 0.0
        %497 = vmatpush1.msra.mxu0 0.0
        %498 = vmatprep.subr.mxu0 0.0
        %499 = vmatpush1.msra.mxu0 0.0
        %500 = vmatprep.subr.mxu0 0.0
        %501 = vmatpush1.msra.mxu0 0.0
        %502 = vmatprep.subr.mxu0 0.0
        %503 = vmatpush1.msra.mxu0 0.0
        %504 = vmatprep.subr.mxu0 0.0
        %505 = vmatpush1.msra.mxu0 0.0
        %506 = vmatprep.subr.mxu0 0.0
        %507 = vmatpush1.msra.mxu0 0.0
        %508 = vmatprep.subr.mxu0 0.0
        %509 = vmatpush1.msra.mxu0 0.0
        %510 = vmatprep.mubr.f32.mxu0 0.0
        %511 = vmatmul.mubr.f32.gmra.mrb[0].mxu0 %v399
        %v512 = vpop.f32.mrb[0].mxu0
        %v513 = vadd.f32 %v320, %v512
        %v514 = vpop.f32.mrb[0].mxu0
        %515 = vmatprep.mubr.f32.mxu0 0.0
        %516 = vmatmul.mubr.f32.gmra.mrb[0].mxu0 %v402
        %v517 = vpop.f32.mrb[0].mxu0
        %v518 = vadd.f32 %v325, %v517
        %v519 = vpop.f32.mrb[0].mxu0
        %520 = vmatprep.mubr.f32.mxu0 0.0
        %521 = vmatmul.mubr.f32.gmra.mrb[0].mxu0 %v405
        %v522 = vpop.f32.mrb[0].mxu0
        %v523 = vadd.f32 %v330, %v522
        %v524 = vpop.f32.mrb[0].mxu0
        %525 = vmatprep.mubr.f32.mxu0 0.0
        %526 = vmatmul.mubr.f32.gmra.mrb[0].mxu0 %v408
        %v527 = vpop.f32.mrb[0].mxu0
        %v528 = vadd.f32 %v335, %v527
        %v529 = vpop.f32.mrb[0].mxu0
        %530 = vmatprep.mubr.f32.mxu0 0.0
        %531 = vmatmul.mubr.f32.gmra.mrb[0].mxu0 %v411
        %v532 = vpop.f32.mrb[0].mxu0
        %v533 = vadd.f32 %v340, %v532
        %v534 = vpop.f32.mrb[0].mxu0
        %535 = vmatprep.mubr.f32.mxu0 0.0
        %536 = vmatmul.mubr.f32.gmra.mrb[0].mxu0 %v414
        %v537 = vpop.f32.mrb[0].mxu0
        %v538 = vadd.f32 %v345, %v537
        %v539 = vpop.f32.mrb[0].mxu0
        %540 = vmatprep.mubr.f32.mxu0 0.0
        %541 = vmatmul.mubr.f32.gmra.mrb[0].mxu0 %v417
        %v542 = vpop.f32.mrb[0].mxu0
        %v543 = vadd.f32 %v350, %v542
        %v544 = vpop.f32.mrb[0].mxu0
        %545 = vmatprep.mubr.f32.mxu0 0.0
        %546 = vmatmul.mubr.f32.gmra.mrb[0].mxu0 %v420
        %v547 = vpop.f32.mrb[0].mxu0
        %v548 = vadd.f32 %v355, %v547
        %v549 = vpop.f32.mrb[0].mxu0
        %550 = vmatprep.mubr.f32.mxu0 0.0
        %551 = vmatmul.mubr.f32.gmra.mrb[0].mxu0 %v423
        %v552 = vpop.f32.mrb[0].mxu0
        %v553 = vadd.f32 %v360, %v552
        %v554 = vpop.f32.mrb[0].mxu0
        %555 = vmatprep.mubr.f32.mxu0 0.0
        %556 = vmatmul.mubr.f32.gmra.mrb[0].mxu0 %v426
        %v557 = vpop.f32.mrb[0].mxu0
        %v558 = vadd.f32 %v365, %v557
        %v559 = vpop.f32.mrb[0].mxu0
        %560 = vmatprep.mubr.f32.mxu0 0.0
        %561 = vmatmul.mubr.f32.gmra.mrb[0].mxu0 %v429
        %v562 = vpop.f32.mrb[0].mxu0
        %v563 = vadd.f32 %v370, %v562
        %v564 = vpop.f32.mrb[0].mxu0
        %565 = vmatprep.mubr.f32.mxu0 0.0
        %566 = vmatmul.mubr.f32.gmra.mrb[0].mxu0 %v432
        %v567 = vpop.f32.mrb[0].mxu0
        %v568 = vadd.f32 %v375, %v567
        %v569 = vpop.f32.mrb[0].mxu0
        %570 = vmatprep.mubr.f32.mxu0 0.0
        %571 = vmatmul.mubr.f32.gmra.mrb[0].mxu0 %v435
        %v572 = vpop.f32.mrb[0].mxu0
        %v573 = vadd.f32 %v380, %v572
        %v574 = vpop.f32.mrb[0].mxu0
        %575 = vmatprep.mubr.f32.mxu0 0.0
        %576 = vmatmul.mubr.f32.gmra.mrb[0].mxu0 %v438
        %v577 = vpop.f32.mrb[0].mxu0
        %v578 = vadd.f32 %v385, %v577
        %v579 = vpop.f32.mrb[0].mxu0
        %580 = vmatprep.mubr.f32.mxu0 0.0
        %581 = vmatmul.mubr.f32.gmra.mrb[0].mxu0 %v441
        %v582 = vpop.f32.mrb[0].mxu0
        %v583 = vadd.f32 %v390, %v582
        %v584 = vpop.f32.mrb[0].mxu0
        %585 = vmatprep.mubr.f32.mxu0 0.0
        %586 = vmatmul.mubr.f32.gmra.mrb[0].mxu0 %v444
        %v587 = vpop.f32.mrb[0].mxu0
        %v588 = vadd.f32 %v395, %v587
        %v589 = vpop.f32.mrb[0].mxu0
        %590 = vdwg.mxu0
        %591 = vmatprep.subr.mxu0 0.0
        %592 = vmatpush1.msra.mxu0 %v278
        %593 = vmatprep.subr.mxu0 0.0
        %594 = vmatpush1.msra.mxu0 0.0
        %595 = vmatprep.subr.mxu0 0.0
        %596 = vmatpush1.msra.mxu0 0.0
        %597 = vmatprep.subr.mxu0 0.0
        %598 = vmatpush1.msra.mxu0 0.0
        %599 = vmatprep.subr.mxu0 0.0
        %600 = vmatpush1.msra.mxu0 0.0
        %601 = vmatprep.subr.mxu0 0.0
        %602 = vmatpush1.msra.mxu0 0.0
        %603 = vmatprep.subr.mxu0 0.0
        %604 = vmatpush1.msra.mxu0 0.0
        %605 = vmatprep.subr.mxu0 0.0
        %606 = vmatpush1.msra.mxu0 0.0
        %607 = vmatprep.subr.mxu0 0.0
        %608 = vmatpush1.msra.mxu0 0.0
        %609 = vmatprep.subr.mxu0 0.0
        %610 = vmatpush1.msra.mxu0 0.0
        %611 = vmatprep.subr.mxu0 0.0
        %612 = vmatpush1.msra.mxu0 0.0
        %613 = vmatprep.subr.mxu0 0.0
        %614 = vmatpush1.msra.mxu0 0.0
        %615 = vmatprep.subr.mxu0 0.0
        %616 = vmatpush1.msra.mxu0 0.0
        %617 = vmatprep.subr.mxu0 0.0
        %618 = vmatpush1.msra.mxu0 0.0
        %619 = vmatprep.subr.mxu0 0.0
        %620 = vmatpush1.msra.mxu0 0.0
        %621 = vmatprep.subr.mxu0 0.0
        %622 = vmatpush1.msra.mxu0 0.0
        %623 = vmatprep.subr.mxu0 0.0
        %624 = vmatpush1.msra.mxu0 0.0
        %625 = vmatprep.subr.mxu0 0.0
        %626 = vmatpush1.msra.mxu0 0.0
        %627 = vmatprep.subr.mxu0 0.0
        %628 = vmatpush1.msra.mxu0 0.0
        %629 = vmatprep.subr.mxu0 0.0
        %630 = vmatpush1.msra.mxu0 0.0
        %631 = vmatprep.subr.mxu0 0.0
        %632 = vmatpush1.msra.mxu0 0.0
        %633 = vmatprep.subr.mxu0 0.0
        %634 = vmatpush1.msra.mxu0 0.0
        %635 = vmatprep.subr.mxu0 0.0
        %636 = vmatpush1.msra.mxu0 0.0
        %637 = vmatprep.subr.mxu0 0.0
        %638 = vmatpush1.msra.mxu0 0.0
        %639 = vmatprep.subr.mxu0 0.0
        %640 = vmatpush1.msra.mxu0 0.0
        %641 = vmatprep.subr.mxu0 0.0
        %642 = vmatpush1.msra.mxu0 0.0
        %643 = vmatprep.subr.mxu0 0.0
        %644 = vmatpush1.msra.mxu0 0.0
        %645 = vmatprep.subr.mxu0 0.0
        %646 = vmatpush1.msra.mxu0 0.0
        %647 = vmatprep.subr.mxu0 0.0
        %648 = vmatpush1.msra.mxu0 0.0
        %649 = vmatprep.subr.mxu0 0.0
        %650 = vmatpush1.msra.mxu0 0.0
        %651 = vmatprep.subr.mxu0 0.0
        %652 = vmatpush1.msra.mxu0 0.0
        %653 = vmatprep.subr.mxu0 0.0
        %654 = vmatpush1.msra.mxu0 0.0
        %655 = vmatprep.mubr.f32.mxu0 0.0
        %656 = vmatmul.mubr.f32.gmra.mrb[0].mxu0 %v399
        %v657 = vpop.f32.mrb[0].mxu0
        %v658 = vadd.f32 %v320, %v657
        %v659 = vpop.f32.mrb[0].mxu0
        %660 = vmatprep.mubr.f32.mxu0 0.0
        %661 = vmatmul.mubr.f32.gmra.mrb[0].mxu0 %v402
        %v662 = vpop.f32.mrb[0].mxu0
        %v663 = vadd.f32 %v325, %v662
        %v664 = vpop.f32.mrb[0].mxu0
        %665 = vmatprep.mubr.f32.mxu0 0.0
        %666 = vmatmul.mubr.f32.gmra.mrb[0].mxu0 %v405
        %v667 = vpop.f32.mrb[0].mxu0
        %v668 = vadd.f32 %v330, %v667
        %v669 = vpop.f32.mrb[0].mxu0
        %670 = vmatprep.mubr.f32.mxu0 0.0
        %671 = vmatmul.mubr.f32.gmra.mrb[0].mxu0 %v408
        %v672 = vpop.f32.mrb[0].mxu0
        %v673 = vadd.f32 %v335, %v672
        %v674 = vpop.f32.mrb[0].mxu0
        %675 = vmatprep.mubr.f32.mxu0 0.0
        %676 = vmatmul.mubr.f32.gmra.mrb[0].mxu0 %v411
        %v677 = vpop.f32.mrb[0].mxu0
        %v678 = vadd.f32 %v340, %v677
        %v679 = vpop.f32.mrb[0].mxu0
        %680 = vmatprep.mubr.f32.mxu0 0.0
        %681 = vmatmul.mubr.f32.gmra.mrb[0].mxu0 %v414
        %v682 = vpop.f32.mrb[0].mxu0
        %v683 = vadd.f32 %v345, %v682
        %v684 = vpop.f32.mrb[0].mxu0
        %685 = vmatprep.mubr.f32.mxu0 0.0
        %686 = vmatmul.mubr.f32.gmra.mrb[0].mxu0 %v417
        %v687 = vpop.f32.mrb[0].mxu0
        %v688 = vadd.f32 %v350, %v687
        %v689 = vpop.f32.mrb[0].mxu0
        %690 = vmatprep.mubr.f32.mxu0 0.0
        %691 = vmatmul.mubr.f32.gmra.mrb[0].mxu0 %v420
        %v692 = vpop.f32.mrb[0].mxu0
        %v693 = vadd.f32 %v355, %v692
        %v694 = vpop.f32.mrb[0].mxu0
        %695 = vmatprep.mubr.f32.mxu0 0.0
        %696 = vmatmul.mubr.f32.gmra.mrb[0].mxu0 %v423
        %v697 = vpop.f32.mrb[0].mxu0
        %v698 = vadd.f32 %v360, %v697
        %v699 = vpop.f32.mrb[0].mxu0
        %700 = vmatprep.mubr.f32.mxu0 0.0
        %701 = vmatmul.mubr.f32.gmra.mrb[0].mxu0 %v426
        %v702 = vpop.f32.mrb[0].mxu0
        %v703 = vadd.f32 %v365, %v702
        %v704 = vpop.f32.mrb[0].mxu0
        %705 = vmatprep.mubr.f32.mxu0 0.0
        %706 = vmatmul.mubr.f32.gmra.mrb[0].mxu0 %v429
        %v707 = vpop.f32.mrb[0].mxu0
        %v708 = vadd.f32 %v370, %v707
        %v709 = vpop.f32.mrb[0].mxu0
        %710 = vmatprep.mubr.f32.mxu0 0.0
        %711 = vmatmul.mubr.f32.gmra.mrb[0].mxu0 %v432
        %v712 = vpop.f32.mrb[0].mxu0
        %v713 = vadd.f32 %v375, %v712
        %v714 = vpop.f32.mrb[0].mxu0
        %715 = vmatprep.mubr.f32.mxu0 0.0
        %716 = vmatmul.mubr.f32.gmra.mrb[0].mxu0 %v435
        %v717 = vpop.f32.mrb[0].mxu0
        %v718 = vadd.f32 %v380, %v717
        %v719 = vpop.f32.mrb[0].mxu0
        %720 = vmatprep.mubr.f32.mxu0 0.0
        %721 = vmatmul.mubr.f32.gmra.mrb[0].mxu0 %v438
        %v722 = vpop.f32.mrb[0].mxu0
        %v723 = vadd.f32 %v385, %v722
        %v724 = vpop.f32.mrb[0].mxu0
        %725 = vmatprep.mubr.f32.mxu0 0.0
        %726 = vmatmul.mubr.f32.gmra.mrb[0].mxu0 %v441
        %v727 = vpop.f32.mrb[0].mxu0
        %v728 = vadd.f32 %v390, %v727
        %v729 = vpop.f32.mrb[0].mxu0
        %730 = vmatprep.mubr.f32.mxu0 0.0
        %731 = vmatmul.mubr.f32.gmra.mrb[0].mxu0 %v444
        %v732 = vpop.f32.mrb[0].mxu0
        %v733 = vadd.f32 %v395, %v732
        %v734 = vpop.f32.mrb[0].mxu0
        %735 = vdwg.mxu0
        %736 = vmatprep.subr.mxu0 0.0
        %737 = vmatpush1.msra.mxu0 %v279
        %738 = vmatprep.subr.mxu0 0.0
        %739 = vmatpush1.msra.mxu0 0.0
        %740 = vmatprep.subr.mxu0 0.0
        %741 = vmatpush1.msra.mxu0 0.0
        %742 = vmatprep.subr.mxu0 0.0
        %743 = vmatpush1.msra.mxu0 0.0
        %744 = vmatprep.subr.mxu0 0.0
        %745 = vmatpush1.msra.mxu0 0.0
        %746 = vmatprep.subr.mxu0 0.0
        %747 = vmatpush1.msra.mxu0 0.0
        %748 = vmatprep.subr.mxu0 0.0
        %749 = vmatpush1.msra.mxu0 0.0
        %750 = vmatprep.subr.mxu0 0.0
        %751 = vmatpush1.msra.mxu0 0.0
        %752 = vmatprep.subr.mxu0 0.0
        %753 = vmatpush1.msra.mxu0 0.0
        %754 = vmatprep.subr.mxu0 0.0
        %755 = vmatpush1.msra.mxu0 0.0
        %756 = vmatprep.subr.mxu0 0.0
        %757 = vmatpush1.msra.mxu0 0.0
        %758 = vmatprep.subr.mxu0 0.0
        %759 = vmatpush1.msra.mxu0 0.0
        %760 = vmatprep.subr.mxu0 0.0
        %761 = vmatpush1.msra.mxu0 0.0
        %762 = vmatprep.subr.mxu0 0.0
        %763 = vmatpush1.msra.mxu0 0.0
        %764 = vmatprep.subr.mxu0 0.0
        %765 = vmatpush1.msra.mxu0 0.0
        %766 = vmatprep.subr.mxu0 0.0
        %767 = vmatpush1.msra.mxu0 0.0
        %768 = vmatprep.subr.mxu0 0.0
        %769 = vmatpush1.msra.mxu0 0.0
        %770 = vmatprep.subr.mxu0 0.0
        %771 = vmatpush1.msra.mxu0 0.0
        %772 = vmatprep.subr.mxu0 0.0
        %773 = vmatpush1.msra.mxu0 0.0
        %774 = vmatprep.subr.mxu0 0.0
        %775 = vmatpush1.msra.mxu0 0.0
        %776 = vmatprep.subr.mxu0 0.0
        %777 = vmatpush1.msra.mxu0 0.0
        %778 = vmatprep.subr.mxu0 0.0
        %779 = vmatpush1.msra.mxu0 0.0
        %780 = vmatprep.subr.mxu0 0.0
        %781 = vmatpush1.msra.mxu0 0.0
        %782 = vmatprep.subr.mxu0 0.0
        %783 = vmatpush1.msra.mxu0 0.0
        %784 = vmatprep.subr.mxu0 0.0
        %785 = vmatpush1.msra.mxu0 0.0
        %786 = vmatprep.subr.mxu0 0.0
        %787 = vmatpush1.msra.mxu0 0.0
        %788 = vmatprep.subr.mxu0 0.0
        %789 = vmatpush1.msra.mxu0 0.0
        %790 = vmatprep.subr.mxu0 0.0
        %791 = vmatpush1.msra.mxu0 0.0
        %792 = vmatprep.subr.mxu0 0.0
        %793 = vmatpush1.msra.mxu0 0.0
        %794 = vmatprep.subr.mxu0 0.0
        %795 = vmatpush1.msra.mxu0 0.0
        %796 = vmatprep.subr.mxu0 0.0
        %797 = vmatpush1.msra.mxu0 0.0
        %798 = vmatprep.subr.mxu0 0.0
        %799 = vmatpush1.msra.mxu0 0.0
        %800 = vmatprep.mubr.f32.mxu0 0.0
        %801 = vmatmul.mubr.f32.gmra.mrb[0].mxu0 %v399
        %v802 = vpop.f32.mrb[0].mxu0
        %v803 = vadd.f32 %v320, %v802
        %v804 = vpop.f32.mrb[0].mxu0
        %805 = vmatprep.mubr.f32.mxu0 0.0
        %806 = vmatmul.mubr.f32.gmra.mrb[0].mxu0 %v402
        %v807 = vpop.f32.mrb[0].mxu0
        %v808 = vadd.f32 %v325, %v807
        %v809 = vpop.f32.mrb[0].mxu0
        %810 = vmatprep.mubr.f32.mxu0 0.0
        %811 = vmatmul.mubr.f32.gmra.mrb[0].mxu0 %v405
        %v812 = vpop.f32.mrb[0].mxu0
        %v813 = vadd.f32 %v330, %v812
        %v814 = vpop.f32.mrb[0].mxu0
        %815 = vmatprep.mubr.f32.mxu0 0.0
        %816 = vmatmul.mubr.f32.gmra.mrb[0].mxu0 %v408
        %v817 = vpop.f32.mrb[0].mxu0
        %v818 = vadd.f32 %v335, %v817
        %v819 = vpop.f32.mrb[0].mxu0
        %820 = vmatprep.mubr.f32.mxu0 0.0
        %821 = vmatmul.mubr.f32.gmra.mrb[0].mxu0 %v411
        %v822 = vpop.f32.mrb[0].mxu0
        %v823 = vadd.f32 %v340, %v822
        %v824 = vpop.f32.mrb[0].mxu0
        %825 = vmatprep.mubr.f32.mxu0 0.0
        %826 = vmatmul.mubr.f32.gmra.mrb[0].mxu0 %v414
        %v827 = vpop.f32.mrb[0].mxu0
        %v828 = vadd.f32 %v345, %v827
        %v829 = vpop.f32.mrb[0].mxu0
        %830 = vmatprep.mubr.f32.mxu0 0.0
        %831 = vmatmul.mubr.f32.gmra.mrb[0].mxu0 %v417
        %v832 = vpop.f32.mrb[0].mxu0
        %v833 = vadd.f32 %v350, %v832
        %v834 = vpop.f32.mrb[0].mxu0
        %835 = vmatprep.mubr.f32.mxu0 0.0
        %836 = vmatmul.mubr.f32.gmra.mrb[0].mxu0 %v420
        %v837 = vpop.f32.mrb[0].mxu0
        %v838 = vadd.f32 %v355, %v837
        %v839 = vpop.f32.mrb[0].mxu0
        %840 = vmatprep.mubr.f32.mxu0 0.0
        %841 = vmatmul.mubr.f32.gmra.mrb[0].mxu0 %v423
        %v842 = vpop.f32.mrb[0].mxu0
        %v843 = vadd.f32 %v360, %v842
        %v844 = vpop.f32.mrb[0].mxu0
        %845 = vmatprep.mubr.f32.mxu0 0.0
        %846 = vmatmul.mubr.f32.gmra.mrb[0].mxu0 %v426
        %v847 = vpop.f32.mrb[0].mxu0
        %v848 = vadd.f32 %v365, %v847
        %v849 = vpop.f32.mrb[0].mxu0
        %850 = vmatprep.mubr.f32.mxu0 0.0
        %851 = vmatmul.mubr.f32.gmra.mrb[0].mxu0 %v429
        %v852 = vpop.f32.mrb[0].mxu0
        %v853 = vadd.f32 %v370, %v852
        %v854 = vpop.f32.mrb[0].mxu0
        %855 = vmatprep.mubr.f32.mxu0 0.0
        %856 = vmatmul.mubr.f32.gmra.mrb[0].mxu0 %v432
        %v857 = vpop.f32.mrb[0].mxu0
        %v858 = vadd.f32 %v375, %v857
        %v859 = vpop.f32.mrb[0].mxu0
        %860 = vmatprep.mubr.f32.mxu0 0.0
        %861 = vmatmul.mubr.f32.gmra.mrb[0].mxu0 %v435
        %v862 = vpop.f32.mrb[0].mxu0
        %v863 = vadd.f32 %v380, %v862
        %v864 = vpop.f32.mrb[0].mxu0
        %865 = vmatprep.mubr.f32.mxu0 0.0
        %866 = vmatmul.mubr.f32.gmra.mrb[0].mxu0 %v438
        %v867 = vpop.f32.mrb[0].mxu0
        %v868 = vadd.f32 %v385, %v867
        %v869 = vpop.f32.mrb[0].mxu0
        %870 = vmatprep.mubr.f32.mxu0 0.0
        %871 = vmatmul.mubr.f32.gmra.mrb[0].mxu0 %v441
        %v872 = vpop.f32.mrb[0].mxu0
        %v873 = vadd.f32 %v390, %v872
        %v874 = vpop.f32.mrb[0].mxu0
        %875 = vmatprep.mubr.f32.mxu0 0.0
        %876 = vmatmul.mubr.f32.gmra.mrb[0].mxu0 %v444
        %v877 = vpop.f32.mrb[0].mxu0
        %v878 = vadd.f32 %v395, %v877
        %v879 = vpop.f32.mrb[0].mxu0
        %880 = vdwg.mxu0
        %881 = vmatprep.subr.mxu0 0.0
        %882 = vmatpush1.msra.mxu0 %v280
        %883 = vmatprep.subr.mxu0 0.0
        %884 = vmatpush1.msra.mxu0 0.0
        %885 = vmatprep.subr.mxu0 0.0
        %886 = vmatpush1.msra.mxu0 0.0
        %887 = vmatprep.subr.mxu0 0.0
        %888 = vmatpush1.msra.mxu0 0.0
        %889 = vmatprep.subr.mxu0 0.0
        %890 = vmatpush1.msra.mxu0 0.0
        %891 = vmatprep.subr.mxu0 0.0
        %892 = vmatpush1.msra.mxu0 0.0
        %893 = vmatprep.subr.mxu0 0.0
        %894 = vmatpush1.msra.mxu0 0.0
        %895 = vmatprep.subr.mxu0 0.0
        %896 = vmatpush1.msra.mxu0 0.0
        %897 = vmatprep.subr.mxu0 0.0
        %898 = vmatpush1.msra.mxu0 0.0
        %899 = vmatprep.subr.mxu0 0.0
        %900 = vmatpush1.msra.mxu0 0.0
        %901 = vmatprep.subr.mxu0 0.0
        %902 = vmatpush1.msra.mxu0 0.0
        %903 = vmatprep.subr.mxu0 0.0
        %904 = vmatpush1.msra.mxu0 0.0
        %905 = vmatprep.subr.mxu0 0.0
        %906 = vmatpush1.msra.mxu0 0.0
        %907 = vmatprep.subr.mxu0 0.0
        %908 = vmatpush1.msra.mxu0 0.0
        %909 = vmatprep.subr.mxu0 0.0
        %910 = vmatpush1.msra.mxu0 0.0
        %911 = vmatprep.subr.mxu0 0.0
        %912 = vmatpush1.msra.mxu0 0.0
        %913 = vmatprep.subr.mxu0 0.0
        %914 = vmatpush1.msra.mxu0 0.0
        %915 = vmatprep.subr.mxu0 0.0
        %916 = vmatpush1.msra.mxu0 0.0
        %917 = vmatprep.subr.mxu0 0.0
        %918 = vmatpush1.msra.mxu0 0.0
        %919 = vmatprep.subr.mxu0 0.0
        %920 = vmatpush1.msra.mxu0 0.0
        %921 = vmatprep.subr.mxu0 0.0
        %922 = vmatpush1.msra.mxu0 0.0
        %923 = vmatprep.subr.mxu0 0.0
        %924 = vmatpush1.msra.mxu0 0.0
        %925 = vmatprep.subr.mxu0 0.0
        %926 = vmatpush1.msra.mxu0 0.0
        %927 = vmatprep.subr.mxu0 0.0
        %928 = vmatpush1.msra.mxu0 0.0
        %929 = vmatprep.subr.mxu0 0.0
        %930 = vmatpush1.msra.mxu0 0.0
        %931 = vmatprep.subr.mxu0 0.0
        %932 = vmatpush1.msra.mxu0 0.0
        %933 = vmatprep.subr.mxu0 0.0
        %934 = vmatpush1.msra.mxu0 0.0
        %935 = vmatprep.subr.mxu0 0.0
        %936 = vmatpush1.msra.mxu0 0.0
        %937 = vmatprep.subr.mxu0 0.0
        %938 = vmatpush1.msra.mxu0 0.0
        %939 = vmatprep.subr.mxu0 0.0
        %940 = vmatpush1.msra.mxu0 0.0
        %941 = vmatprep.subr.mxu0 0.0
        %942 = vmatpush1.msra.mxu0 0.0
        %943 = vmatprep.subr.mxu0 0.0
        %944 = vmatpush1.msra.mxu0 0.0
        %945 = vmatprep.mubr.f32.mxu0 0.0
        %946 = vmatmul.mubr.f32.gmra.mrb[0].mxu0 %v399
        %v947 = vpop.f32.mrb[0].mxu0
        %v948 = vadd.f32 %v320, %v947
        %v949 = vpop.f32.mrb[0].mxu0
        %950 = vmatprep.mubr.f32.mxu0 0.0
        %951 = vmatmul.mubr.f32.gmra.mrb[0].mxu0 %v402
        %v952 = vpop.f32.mrb[0].mxu0
        %v953 = vadd.f32 %v325, %v952
        %v954 = vpop.f32.mrb[0].mxu0
        %955 = vmatprep.mubr.f32.mxu0 0.0
        %956 = vmatmul.mubr.f32.gmra.mrb[0].mxu0 %v405
        %v957 = vpop.f32.mrb[0].mxu0
        %v958 = vadd.f32 %v330, %v957
        %v959 = vpop.f32.mrb[0].mxu0
        %960 = vmatprep.mubr.f32.mxu0 0.0
        %961 = vmatmul.mubr.f32.gmra.mrb[0].mxu0 %v408
        %v962 = vpop.f32.mrb[0].mxu0
        %v963 = vadd.f32 %v335, %v962
        %v964 = vpop.f32.mrb[0].mxu0
        %965 = vmatprep.mubr.f32.mxu0 0.0
        %966 = vmatmul.mubr.f32.gmra.mrb[0].mxu0 %v411
        %v967 = vpop.f32.mrb[0].mxu0
        %v968 = vadd.f32 %v340, %v967
        %v969 = vpop.f32.mrb[0].mxu0
        %970 = vmatprep.mubr.f32.mxu0 0.0
        %971 = vmatmul.mubr.f32.gmra.mrb[0].mxu0 %v414
        %v972 = vpop.f32.mrb[0].mxu0
        %v973 = vadd.f32 %v345, %v972
        %v974 = vpop.f32.mrb[0].mxu0
        %975 = vmatprep.mubr.f32.mxu0 0.0
        %976 = vmatmul.mubr.f32.gmra.mrb[0].mxu0 %v417
        %v977 = vpop.f32.mrb[0].mxu0
        %v978 = vadd.f32 %v350, %v977
        %v979 = vpop.f32.mrb[0].mxu0
        %980 = vmatprep.mubr.f32.mxu0 0.0
        %981 = vmatmul.mubr.f32.gmra.mrb[0].mxu0 %v420
        %v982 = vpop.f32.mrb[0].mxu0
        %v983 = vadd.f32 %v355, %v982
        %v984 = vpop.f32.mrb[0].mxu0
        %985 = vmatprep.mubr.f32.mxu0 0.0
        %986 = vmatmul.mubr.f32.gmra.mrb[0].mxu0 %v423
        %v987 = vpop.f32.mrb[0].mxu0
        %v988 = vadd.f32 %v360, %v987
        %v989 = vpop.f32.mrb[0].mxu0
        %990 = vmatprep.mubr.f32.mxu0 0.0
        %991 = vmatmul.mubr.f32.gmra.mrb[0].mxu0 %v426
        %v992 = vpop.f32.mrb[0].mxu0
        %v993 = vadd.f32 %v365, %v992
        %v994 = vpop.f32.mrb[0].mxu0
        %995 = vmatprep.mubr.f32.mxu0 0.0
        %996 = vmatmul.mubr.f32.gmra.mrb[0].mxu0 %v429
        %v997 = vpop.f32.mrb[0].mxu0
        %v998 = vadd.f32 %v370, %v997
        %v999 = vpop.f32.mrb[0].mxu0
        %1000 = vmatprep.mubr.f32.mxu0 0.0
        %1001 = vmatmul.mubr.f32.gmra.mrb[0].mxu0 %v432
        %v1002 = vpop.f32.mrb[0].mxu0
        %v1003 = vadd.f32 %v375, %v1002
        %v1004 = vpop.f32.mrb[0].mxu0
        %1005 = vmatprep.mubr.f32.mxu0 0.0
        %1006 = vmatmul.mubr.f32.gmra.mrb[0].mxu0 %v435
        %v1007 = vpop.f32.mrb[0].mxu0
        %v1008 = vadd.f32 %v380, %v1007
        %v1009 = vpop.f32.mrb[0].mxu0
        %1010 = vmatprep.mubr.f32.mxu0 0.0
        %1011 = vmatmul.mubr.f32.gmra.mrb[0].mxu0 %v438
        %v1012 = vpop.f32.mrb[0].mxu0
        %v1013 = vadd.f32 %v385, %v1012
        %v1014 = vpop.f32.mrb[0].mxu0
        %1015 = vmatprep.mubr.f32.mxu0 0.0
        %1016 = vmatmul.mubr.f32.gmra.mrb[0].mxu0 %v441
        %v1017 = vpop.f32.mrb[0].mxu0
        %v1018 = vadd.f32 %v390, %v1017
        %v1019 = vpop.f32.mrb[0].mxu0
        %1020 = vmatprep.mubr.f32.mxu0 0.0
        %1021 = vmatmul.mubr.f32.gmra.mrb[0].mxu0 %v444
        %v1022 = vpop.f32.mrb[0].mxu0
        %v1023 = vadd.f32 %v395, %v1022
        %v1024 = vpop.f32.mrb[0].mxu0
        %1025 = vdwg.mxu0
        %1026 = vmatprep.subr.mxu0 0.0
        %1027 = vmatpush1.msra.mxu0 %v281
        %1028 = vmatprep.subr.mxu0 0.0
        %1029 = vmatpush1.msra.mxu0 0.0
        %1030 = vmatprep.subr.mxu0 0.0
        %1031 = vmatpush1.msra.mxu0 0.0
        %1032 = vmatprep.subr.mxu0 0.0
        %1033 = vmatpush1.msra.mxu0 0.0
        %1034 = vmatprep.subr.mxu0 0.0
        %1035 = vmatpush1.msra.mxu0 0.0
        %1036 = vmatprep.subr.mxu0 0.0
        %1037 = vmatpush1.msra.mxu0 0.0
        %1038 = vmatprep.subr.mxu0 0.0
        %1039 = vmatpush1.msra.mxu0 0.0
        %1040 = vmatprep.subr.mxu0 0.0
        %1041 = vmatpush1.msra.mxu0 0.0
        %1042 = vmatprep.subr.mxu0 0.0
        %1043 = vmatpush1.msra.mxu0 0.0
        %1044 = vmatprep.subr.mxu0 0.0
        %1045 = vmatpush1.msra.mxu0 0.0
        %1046 = vmatprep.subr.mxu0 0.0
        %1047 = vmatpush1.msra.mxu0 0.0
        %1048 = vmatprep.subr.mxu0 0.0
        %1049 = vmatpush1.msra.mxu0 0.0
        %1050 = vmatprep.subr.mxu0 0.0
        %1051 = vmatpush1.msra.mxu0 0.0
        %1052 = vmatprep.subr.mxu0 0.0
        %1053 = vmatpush1.msra.mxu0 0.0
        %1054 = vmatprep.subr.mxu0 0.0
        %1055 = vmatpush1.msra.mxu0 0.0
        %1056 = vmatprep.subr.mxu0 0.0
        %1057 = vmatpush1.msra.mxu0 0.0
        %1058 = vmatprep.subr.mxu0 0.0
        %1059 = vmatpush1.msra.mxu0 0.0
        %1060 = vmatprep.subr.mxu0 0.0
        %1061 = vmatpush1.msra.mxu0 0.0
        %1062 = vmatprep.subr.mxu0 0.0
        %1063 = vmatpush1.msra.mxu0 0.0
        %1064 = vmatprep.subr.mxu0 0.0
        %1065 = vmatpush1.msra.mxu0 0.0
        %1066 = vmatprep.subr.mxu0 0.0
        %1067 = vmatpush1.msra.mxu0 0.0
        %1068 = vmatprep.subr.mxu0 0.0
        %1069 = vmatpush1.msra.mxu0 0.0
        %1070 = vmatprep.subr.mxu0 0.0
        %1071 = vmatpush1.msra.mxu0 0.0
        %1072 = vmatprep.subr.mxu0 0.0
        %1073 = vmatpush1.msra.mxu0 0.0
        %1074 = vmatprep.subr.mxu0 0.0
        %1075 = vmatpush1.msra.mxu0 0.0
        %1076 = vmatprep.subr.mxu0 0.0
        %1077 = vmatpush1.msra.mxu0 0.0
        %1078 = vmatprep.subr.mxu0 0.0
        %1079 = vmatpush1.msra.mxu0 0.0
        %1080 = vmatprep.subr.mxu0 0.0
        %1081 = vmatpush1.msra.mxu0 0.0
        %1082 = vmatprep.subr.mxu0 0.0
        %1083 = vmatpush1.msra.mxu0 0.0
        %1084 = vmatprep.subr.mxu0 0.0
        %1085 = vmatpush1.msra.mxu0 0.0
        %1086 = vmatprep.subr.mxu0 0.0
        %1087 = vmatpush1.msra.mxu0 0.0
        %1088 = vmatprep.subr.mxu0 0.0
        %1089 = vmatpush1.msra.mxu0 0.0
        %1090 = vmatprep.mubr.f32.mxu0 0.0
        %1091 = vmatmul.mubr.f32.gmra.mrb[0].mxu0 %v399
        %v1092 = vpop.f32.mrb[0].mxu0
        %v1093 = vadd.f32 %v320, %v1092
        %v1094 = vpop.f32.mrb[0].mxu0
        %1095 = vmatprep.mubr.f32.mxu0 0.0
        %1096 = vmatmul.mubr.f32.gmra.mrb[0].mxu0 %v402
        %v1097 = vpop.f32.mrb[0].mxu0
        %v1098 = vadd.f32 %v325, %v1097
        %v1099 = vpop.f32.mrb[0].mxu0
        %1100 = vmatprep.mubr.f32.mxu0 0.0
        %1101 = vmatmul.mubr.f32.gmra.mrb[0].mxu0 %v405
        %v1102 = vpop.f32.mrb[0].mxu0
        %v1103 = vadd.f32 %v330, %v1102
        %v1104 = vpop.f32.mrb[0].mxu0
        %1105 = vmatprep.mubr.f32.mxu0 0.0
        %1106 = vmatmul.mubr.f32.gmra.mrb[0].mxu0 %v408
        %v1107 = vpop.f32.mrb[0].mxu0
        %v1108 = vadd.f32 %v335, %v1107
        %v1109 = vpop.f32.mrb[0].mxu0
        %1110 = vmatprep.mubr.f32.mxu0 0.0
        %1111 = vmatmul.mubr.f32.gmra.mrb[0].mxu0 %v411
        %v1112 = vpop.f32.mrb[0].mxu0
        %v1113 = vadd.f32 %v340, %v1112
        %v1114 = vpop.f32.mrb[0].mxu0
        %1115 = vmatprep.mubr.f32.mxu0 0.0
        %1116 = vmatmul.mubr.f32.gmra.mrb[0].mxu0 %v414
        %v1117 = vpop.f32.mrb[0].mxu0
        %v1118 = vadd.f32 %v345, %v1117
        %v1119 = vpop.f32.mrb[0].mxu0
        %1120 = vmatprep.mubr.f32.mxu0 0.0
        %1121 = vmatmul.mubr.f32.gmra.mrb[0].mxu0 %v417
        %v1122 = vpop.f32.mrb[0].mxu0
        %v1123 = vadd.f32 %v350, %v1122
        %v1124 = vpop.f32.mrb[0].mxu0
        %1125 = vmatprep.mubr.f32.mxu0 0.0
        %1126 = vmatmul.mubr.f32.gmra.mrb[0].mxu0 %v420
        %v1127 = vpop.f32.mrb[0].mxu0
        %v1128 = vadd.f32 %v355, %v1127
        %v1129 = vpop.f32.mrb[0].mxu0
        %1130 = vmatprep.mubr.f32.mxu0 0.0
        %1131 = vmatmul.mubr.f32.gmra.mrb[0].mxu0 %v423
        %v1132 = vpop.f32.mrb[0].mxu0
        %v1133 = vadd.f32 %v360, %v1132
        %v1134 = vpop.f32.mrb[0].mxu0
        %1135 = vmatprep.mubr.f32.mxu0 0.0
        %1136 = vmatmul.mubr.f32.gmra.mrb[0].mxu0 %v426
        %v1137 = vpop.f32.mrb[0].mxu0
        %v1138 = vadd.f32 %v365, %v1137
        %v1139 = vpop.f32.mrb[0].mxu0
        %1140 = vmatprep.mubr.f32.mxu0 0.0
        %1141 = vmatmul.mubr.f32.gmra.mrb[0].mxu0 %v429
        %v1142 = vpop.f32.mrb[0].mxu0
        %v1143 = vadd.f32 %v370, %v1142
        %v1144 = vpop.f32.mrb[0].mxu0
        %1145 = vmatprep.mubr.f32.mxu0 0.0
        %1146 = vmatmul.mubr.f32.gmra.mrb[0].mxu0 %v432
        %v1147 = vpop.f32.mrb[0].mxu0
        %v1148 = vadd.f32 %v375, %v1147
        %v1149 = vpop.f32.mrb[0].mxu0
        %1150 = vmatprep.mubr.f32.mxu0 0.0
        %1151 = vmatmul.mubr.f32.gmra.mrb[0].mxu0 %v435
        %v1152 = vpop.f32.mrb[0].mxu0
        %v1153 = vadd.f32 %v380, %v1152
        %v1154 = vpop.f32.mrb[0].mxu0
        %1155 = vmatprep.mubr.f32.mxu0 0.0
        %1156 = vmatmul.mubr.f32.gmra.mrb[0].mxu0 %v438
        %v1157 = vpop.f32.mrb[0].mxu0
        %v1158 = vadd.f32 %v385, %v1157
        %v1159 = vpop.f32.mrb[0].mxu0
        %1160 = vmatprep.mubr.f32.mxu0 0.0
        %1161 = vmatmul.mubr.f32.gmra.mrb[0].mxu0 %v441
        %v1162 = vpop.f32.mrb[0].mxu0
        %v1163 = vadd.f32 %v390, %v1162
        %v1164 = vpop.f32.mrb[0].mxu0
        %1165 = vmatprep.mubr.f32.mxu0 0.0
        %1166 = vmatmul.mubr.f32.gmra.mrb[0].mxu0 %v444
        %v1167 = vpop.f32.mrb[0].mxu0
        %v1168 = vadd.f32 %v395, %v1167
        %v1169 = vpop.f32.mrb[0].mxu0
        %1170 = vdwg.mxu0
        %1171 = vmatprep.subr.mxu0 0.0
        %1172 = vmatpush1.msra.mxu0 %v282
        %1173 = vmatprep.subr.mxu0 0.0
        %1174 = vmatpush1.msra.mxu0 0.0
        %1175 = vmatprep.subr.mxu0 0.0
        %1176 = vmatpush1.msra.mxu0 0.0
        %1177 = vmatprep.subr.mxu0 0.0
        %1178 = vmatpush1.msra.mxu0 0.0
        %1179 = vmatprep.subr.mxu0 0.0
        %1180 = vmatpush1.msra.mxu0 0.0
        %1181 = vmatprep.subr.mxu0 0.0
        %1182 = vmatpush1.msra.mxu0 0.0
        %1183 = vmatprep.subr.mxu0 0.0
        %1184 = vmatpush1.msra.mxu0 0.0
        %1185 = vmatprep.subr.mxu0 0.0
        %1186 = vmatpush1.msra.mxu0 0.0
        %1187 = vmatprep.subr.mxu0 0.0
        %1188 = vmatpush1.msra.mxu0 0.0
        %1189 = vmatprep.subr.mxu0 0.0
        %1190 = vmatpush1.msra.mxu0 0.0
        %1191 = vmatprep.subr.mxu0 0.0
        %1192 = vmatpush1.msra.mxu0 0.0
        %1193 = vmatprep.subr.mxu0 0.0
        %1194 = vmatpush1.msra.mxu0 0.0
        %1195 = vmatprep.subr.mxu0 0.0
        %1196 = vmatpush1.msra.mxu0 0.0
        %1197 = vmatprep.subr.mxu0 0.0
        %1198 = vmatpush1.msra.mxu0 0.0
        %1199 = vmatprep.subr.mxu0 0.0
        %1200 = vmatpush1.msra.mxu0 0.0
        %1201 = vmatprep.subr.mxu0 0.0
        %1202 = vmatpush1.msra.mxu0 0.0
        %1203 = vmatprep.subr.mxu0 0.0
        %1204 = vmatpush1.msra.mxu0 0.0
        %1205 = vmatprep.subr.mxu0 0.0
        %1206 = vmatpush1.msra.mxu0 0.0
        %1207 = vmatprep.subr.mxu0 0.0
        %1208 = vmatpush1.msra.mxu0 0.0
        %1209 = vmatprep.subr.mxu0 0.0
        %1210 = vmatpush1.msra.mxu0 0.0
        %1211 = vmatprep.subr.mxu0 0.0
        %1212 = vmatpush1.msra.mxu0 0.0
        %1213 = vmatprep.subr.mxu0 0.0
        %1214 = vmatpush1.msra.mxu0 0.0
        %1215 = vmatprep.subr.mxu0 0.0
        %1216 = vmatpush1.msra.mxu0 0.0
        %1217 = vmatprep.subr.mxu0 0.0
        %1218 = vmatpush1.msra.mxu0 0.0
        %1219 = vmatprep.subr.mxu0 0.0
        %1220 = vmatpush1.msra.mxu0 0.0
        %1221 = vmatprep.subr.mxu0 0.0
        %1222 = vmatpush1.msra.mxu0 0.0
        %1223 = vmatprep.subr.mxu0 0.0
        %1224 = vmatpush1.msra.mxu0 0.0
        %1225 = vmatprep.subr.mxu0 0.0
        %1226 = vmatpush1.msra.mxu0 0.0
        %1227 = vmatprep.subr.mxu0 0.0
        %1228 = vmatpush1.msra.mxu0 0.0
        %1229 = vmatprep.subr.mxu0 0.0
        %1230 = vmatpush1.msra.mxu0 0.0
        %1231 = vmatprep.subr.mxu0 0.0
        %1232 = vmatpush1.msra.mxu0 0.0
        %1233 = vmatprep.subr.mxu0 0.0
        %1234 = vmatpush1.msra.mxu0 0.0
        %1235 = vmatprep.mubr.f32.mxu0 0.0
        %1236 = vmatmul.mubr.f32.gmra.mrb[0].mxu0 %v399
        %v1237 = vpop.f32.mrb[0].mxu0
        %v1238 = vadd.f32 %v320, %v1237
        %v1239 = vpop.f32.mrb[0].mxu0
        %1240 = vmatprep.mubr.f32.mxu0 0.0
        %1241 = vmatmul.mubr.f32.gmra.mrb[0].mxu0 %v402
        %v1242 = vpop.f32.mrb[0].mxu0
        %v1243 = vadd.f32 %v325, %v1242
        %v1244 = vpop.f32.mrb[0].mxu0
        %1245 = vmatprep.mubr.f32.mxu0 0.0
        %1246 = vmatmul.mubr.f32.gmra.mrb[0].mxu0 %v405
        %v1247 = vpop.f32.mrb[0].mxu0
        %v1248 = vadd.f32 %v330, %v1247
        %v1249 = vpop.f32.mrb[0].mxu0
        %1250 = vmatprep.mubr.f32.mxu0 0.0
        %1251 = vmatmul.mubr.f32.gmra.mrb[0].mxu0 %v408
        %v1252 = vpop.f32.mrb[0].mxu0
        %v1253 = vadd.f32 %v335, %v1252
        %v1254 = vpop.f32.mrb[0].mxu0
        %1255 = vmatprep.mubr.f32.mxu0 0.0
        %1256 = vmatmul.mubr.f32.gmra.mrb[0].mxu0 %v411
        %v1257 = vpop.f32.mrb[0].mxu0
        %v1258 = vadd.f32 %v340, %v1257
        %v1259 = vpop.f32.mrb[0].mxu0
        %1260 = vmatprep.mubr.f32.mxu0 0.0
        %1261 = vmatmul.mubr.f32.gmra.mrb[0].mxu0 %v414
        %v1262 = vpop.f32.mrb[0].mxu0
        %v1263 = vadd.f32 %v345, %v1262
        %v1264 = vpop.f32.mrb[0].mxu0
        %1265 = vmatprep.mubr.f32.mxu0 0.0
        %1266 = vmatmul.mubr.f32.gmra.mrb[0].mxu0 %v417
        %v1267 = vpop.f32.mrb[0].mxu0
        %v1268 = vadd.f32 %v350, %v1267
        %v1269 = vpop.f32.mrb[0].mxu0
        %1270 = vmatprep.mubr.f32.mxu0 0.0
        %1271 = vmatmul.mubr.f32.gmra.mrb[0].mxu0 %v420
        %v1272 = vpop.f32.mrb[0].mxu0
        %v1273 = vadd.f32 %v355, %v1272
        %v1274 = vpop.f32.mrb[0].mxu0
        %1275 = vmatprep.mubr.f32.mxu0 0.0
        %1276 = vmatmul.mubr.f32.gmra.mrb[0].mxu0 %v423
        %v1277 = vpop.f32.mrb[0].mxu0
        %v1278 = vadd.f32 %v360, %v1277
        %v1279 = vpop.f32.mrb[0].mxu0
        %1280 = vmatprep.mubr.f32.mxu0 0.0
        %1281 = vmatmul.mubr.f32.gmra.mrb[0].mxu0 %v426
        %v1282 = vpop.f32.mrb[0].mxu0
        %v1283 = vadd.f32 %v365, %v1282
        %v1284 = vpop.f32.mrb[0].mxu0
        %1285 = vmatprep.mubr.f32.mxu0 0.0
        %1286 = vmatmul.mubr.f32.gmra.mrb[0].mxu0 %v429
        %v1287 = vpop.f32.mrb[0].mxu0
        %v1288 = vadd.f32 %v370, %v1287
        %v1289 = vpop.f32.mrb[0].mxu0
        %1290 = vmatprep.mubr.f32.mxu0 0.0
        %1291 = vmatmul.mubr.f32.gmra.mrb[0].mxu0 %v432
        %v1292 = vpop.f32.mrb[0].mxu0
        %v1293 = vadd.f32 %v375, %v1292
        %v1294 = vpop.f32.mrb[0].mxu0
        %1295 = vmatprep.mubr.f32.mxu0 0.0
        %1296 = vmatmul.mubr.f32.gmra.mrb[0].mxu0 %v435
        %v1297 = vpop.f32.mrb[0].mxu0
        %v1298 = vadd.f32 %v380, %v1297
        %v1299 = vpop.f32.mrb[0].mxu0
        %1300 = vmatprep.mubr.f32.mxu0 0.0
        %1301 = vmatmul.mubr.f32.gmra.mrb[0].mxu0 %v438
        %v1302 = vpop.f32.mrb[0].mxu0
        %v1303 = vadd.f32 %v385, %v1302
        %v1304 = vpop.f32.mrb[0].mxu0
        %1305 = vmatprep.mubr.f32.mxu0 0.0
        %1306 = vmatmul.mubr.f32.gmra.mrb[0].mxu0 %v441
        %v1307 = vpop.f32.mrb[0].mxu0
        %v1308 = vadd.f32 %v390, %v1307
        %v1309 = vpop.f32.mrb[0].mxu0
        %1310 = vmatprep.mubr.f32.mxu0 0.0
        %1311 = vmatmul.mubr.f32.gmra.mrb[0].mxu0 %v444
        %v1312 = vpop.f32.mrb[0].mxu0
        %v1313 = vadd.f32 %v395, %v1312
        %v1314 = vpop.f32.mrb[0].mxu0
        %1315 = vdwg.mxu0
        %1316 = vmatprep.subr.mxu0 0.0
        %1317 = vmatpush1.msra.mxu0 %v283
        %1318 = vmatprep.subr.mxu0 0.0
        %1319 = vmatpush1.msra.mxu0 0.0
        %1320 = vmatprep.subr.mxu0 0.0
        %1321 = vmatpush1.msra.mxu0 0.0
        %1322 = vmatprep.subr.mxu0 0.0
        %1323 = vmatpush1.msra.mxu0 0.0
        %1324 = vmatprep.subr.mxu0 0.0
        %1325 = vmatpush1.msra.mxu0 0.0
        %1326 = vmatprep.subr.mxu0 0.0
        %1327 = vmatpush1.msra.mxu0 0.0
        %1328 = vmatprep.subr.mxu0 0.0
        %1329 = vmatpush1.msra.mxu0 0.0
        %1330 = vmatprep.subr.mxu0 0.0
        %1331 = vmatpush1.msra.mxu0 0.0
        %1332 = vmatprep.subr.mxu0 0.0
        %1333 = vmatpush1.msra.mxu0 0.0
        %1334 = vmatprep.subr.mxu0 0.0
        %1335 = vmatpush1.msra.mxu0 0.0
        %1336 = vmatprep.subr.mxu0 0.0
        %1337 = vmatpush1.msra.mxu0 0.0
        %1338 = vmatprep.subr.mxu0 0.0
        %1339 = vmatpush1.msra.mxu0 0.0
        %1340 = vmatprep.subr.mxu0 0.0
        %1341 = vmatpush1.msra.mxu0 0.0
        %1342 = vmatprep.subr.mxu0 0.0
        %1343 = vmatpush1.msra.mxu0 0.0
        %1344 = vmatprep.subr.mxu0 0.0
        %1345 = vmatpush1.msra.mxu0 0.0
        %1346 = vmatprep.subr.mxu0 0.0
        %1347 = vmatpush1.msra.mxu0 0.0
        %1348 = vmatprep.subr.mxu0 0.0
        %1349 = vmatpush1.msra.mxu0 0.0
        %1350 = vmatprep.subr.mxu0 0.0
        %1351 = vmatpush1.msra.mxu0 0.0
        %1352 = vmatprep.subr.mxu0 0.0
        %1353 = vmatpush1.msra.mxu0 0.0
        %1354 = vmatprep.subr.mxu0 0.0
        %1355 = vmatpush1.msra.mxu0 0.0
        %1356 = vmatprep.subr.mxu0 0.0
        %1357 = vmatpush1.msra.mxu0 0.0
        %1358 = vmatprep.subr.mxu0 0.0
        %1359 = vmatpush1.msra.mxu0 0.0
        %1360 = vmatprep.subr.mxu0 0.0
        %1361 = vmatpush1.msra.mxu0 0.0
        %1362 = vmatprep.subr.mxu0 0.0
        %1363 = vmatpush1.msra.mxu0 0.0
        %1364 = vmatprep.subr.mxu0 0.0
        %1365 = vmatpush1.msra.mxu0 0.0
        %1366 = vmatprep.subr.mxu0 0.0
        %1367 = vmatpush1.msra.mxu0 0.0
        %1368 = vmatprep.subr.mxu0 0.0
        %1369 = vmatpush1.msra.mxu0 0.0
        %1370 = vmatprep.subr.mxu0 0.0
        %1371 = vmatpush1.msra.mxu0 0.0
        %1372 = vmatprep.subr.mxu0 0.0
        %1373 = vmatpush1.msra.mxu0 0.0
        %1374 = vmatprep.subr.mxu0 0.0
        %1375 = vmatpush1.msra.mxu0 0.0
        %1376 = vmatprep.subr.mxu0 0.0
        %1377 = vmatpush1.msra.mxu0 0.0
        %1378 = vmatprep.subr.mxu0 0.0
        %1379 = vmatpush1.msra.mxu0 0.0
        %1380 = vmatprep.mubr.f32.mxu0 0.0
        %1381 = vmatmul.mubr.f32.gmra.mrb[0].mxu0 %v399
        %v1382 = vpop.f32.mrb[0].mxu0
        %v1383 = vadd.f32 %v320, %v1382
        %v1384 = vpop.f32.mrb[0].mxu0
        %1385 = vmatprep.mubr.f32.mxu0 0.0
        %1386 = vmatmul.mubr.f32.gmra.mrb[0].mxu0 %v402
        %v1387 = vpop.f32.mrb[0].mxu0
        %v1388 = vadd.f32 %v325, %v1387
        %v1389 = vpop.f32.mrb[0].mxu0
        %1390 = vmatprep.mubr.f32.mxu0 0.0
        %1391 = vmatmul.mubr.f32.gmra.mrb[0].mxu0 %v405
        %v1392 = vpop.f32.mrb[0].mxu0
        %v1393 = vadd.f32 %v330, %v1392
        %v1394 = vpop.f32.mrb[0].mxu0
        %1395 = vmatprep.mubr.f32.mxu0 0.0
        %1396 = vmatmul.mubr.f32.gmra.mrb[0].mxu0 %v408
        %v1397 = vpop.f32.mrb[0].mxu0
        %v1398 = vadd.f32 %v335, %v1397
        %v1399 = vpop.f32.mrb[0].mxu0
        %1400 = vmatprep.mubr.f32.mxu0 0.0
        %1401 = vmatmul.mubr.f32.gmra.mrb[0].mxu0 %v411
        %v1402 = vpop.f32.mrb[0].mxu0
        %v1403 = vadd.f32 %v340, %v1402
        %v1404 = vpop.f32.mrb[0].mxu0
        %1405 = vmatprep.mubr.f32.mxu0 0.0
        %1406 = vmatmul.mubr.f32.gmra.mrb[0].mxu0 %v414
        %v1407 = vpop.f32.mrb[0].mxu0
        %v1408 = vadd.f32 %v345, %v1407
        %v1409 = vpop.f32.mrb[0].mxu0
        %1410 = vmatprep.mubr.f32.mxu0 0.0
        %1411 = vmatmul.mubr.f32.gmra.mrb[0].mxu0 %v417
        %v1412 = vpop.f32.mrb[0].mxu0
        %v1413 = vadd.f32 %v350, %v1412
        %v1414 = vpop.f32.mrb[0].mxu0
        %1415 = vmatprep.mubr.f32.mxu0 0.0
        %1416 = vmatmul.mubr.f32.gmra.mrb[0].mxu0 %v420
        %v1417 = vpop.f32.mrb[0].mxu0
        %v1418 = vadd.f32 %v355, %v1417
        %v1419 = vpop.f32.mrb[0].mxu0
        %1420 = vmatprep.mubr.f32.mxu0 0.0
        %1421 = vmatmul.mubr.f32.gmra.mrb[0].mxu0 %v423
        %v1422 = vpop.f32.mrb[0].mxu0
        %v1423 = vadd.f32 %v360, %v1422
        %v1424 = vpop.f32.mrb[0].mxu0
        %1425 = vmatprep.mubr.f32.mxu0 0.0
        %1426 = vmatmul.mubr.f32.gmra.mrb[0].mxu0 %v426
        %v1427 = vpop.f32.mrb[0].mxu0
        %v1428 = vadd.f32 %v365, %v1427
        %v1429 = vpop.f32.mrb[0].mxu0
        %1430 = vmatprep.mubr.f32.mxu0 0.0
        %1431 = vmatmul.mubr.f32.gmra.mrb[0].mxu0 %v429
        %v1432 = vpop.f32.mrb[0].mxu0
        %v1433 = vadd.f32 %v370, %v1432
        %v1434 = vpop.f32.mrb[0].mxu0
        %1435 = vmatprep.mubr.f32.mxu0 0.0
        %1436 = vmatmul.mubr.f32.gmra.mrb[0].mxu0 %v432
        %v1437 = vpop.f32.mrb[0].mxu0
        %v1438 = vadd.f32 %v375, %v1437
        %v1439 = vpop.f32.mrb[0].mxu0
        %1440 = vmatprep.mubr.f32.mxu0 0.0
        %1441 = vmatmul.mubr.f32.gmra.mrb[0].mxu0 %v435
        %v1442 = vpop.f32.mrb[0].mxu0
        %v1443 = vadd.f32 %v380, %v1442
        %v1444 = vpop.f32.mrb[0].mxu0
        %1445 = vmatprep.mubr.f32.mxu0 0.0
        %1446 = vmatmul.mubr.f32.gmra.mrb[0].mxu0 %v438
        %v1447 = vpop.f32.mrb[0].mxu0
        %v1448 = vadd.f32 %v385, %v1447
        %v1449 = vpop.f32.mrb[0].mxu0
        %1450 = vmatprep.mubr.f32.mxu0 0.0
        %1451 = vmatmul.mubr.f32.gmra.mrb[0].mxu0 %v441
        %v1452 = vpop.f32.mrb[0].mxu0
        %v1453 = vadd.f32 %v390, %v1452
        %v1454 = vpop.f32.mrb[0].mxu0
        %1455 = vmatprep.mubr.f32.mxu0 0.0
        %1456 = vmatmul.mubr.f32.gmra.mrb[0].mxu0 %v444
        %v1457 = vpop.f32.mrb[0].mxu0
        %v1458 = vadd.f32 %v395, %v1457
        %v1459 = vpop.f32.mrb[0].mxu0
        %1460 = vdwg.mxu0
        %1461 = vmatprep.subr.mxu0 0.0
        %1462 = vmatpush1.msra.mxu0 %v284
        %1463 = vmatprep.subr.mxu0 0.0
        %1464 = vmatpush1.msra.mxu0 0.0
        %1465 = vmatprep.subr.mxu0 0.0
        %1466 = vmatpush1.msra.mxu0 0.0
        %1467 = vmatprep.subr.mxu0 0.0
        %1468 = vmatpush1.msra.mxu0 0.0
        %1469 = vmatprep.subr.mxu0 0.0
        %1470 = vmatpush1.msra.mxu0 0.0
        %1471 = vmatprep.subr.mxu0 0.0
        %1472 = vmatpush1.msra.mxu0 0.0
        %1473 = vmatprep.subr.mxu0 0.0
        %1474 = vmatpush1.msra.mxu0 0.0
        %1475 = vmatprep.subr.mxu0 0.0
        %1476 = vmatpush1.msra.mxu0 0.0
        %1477 = vmatprep.subr.mxu0 0.0
        %1478 = vmatpush1.msra.mxu0 0.0
        %1479 = vmatprep.subr.mxu0 0.0
        %1480 = vmatpush1.msra.mxu0 0.0
        %1481 = vmatprep.subr.mxu0 0.0
        %1482 = vmatpush1.msra.mxu0 0.0
        %1483 = vmatprep.subr.mxu0 0.0
        %1484 = vmatpush1.msra.mxu0 0.0
        %1485 = vmatprep.subr.mxu0 0.0
        %1486 = vmatpush1.msra.mxu0 0.0
        %1487 = vmatprep.subr.mxu0 0.0
        %1488 = vmatpush1.msra.mxu0 0.0
        %1489 = vmatprep.subr.mxu0 0.0
        %1490 = vmatpush1.msra.mxu0 0.0
        %1491 = vmatprep.subr.mxu0 0.0
        %1492 = vmatpush1.msra.mxu0 0.0
        %1493 = vmatprep.subr.mxu0 0.0
        %1494 = vmatpush1.msra.mxu0 0.0
        %1495 = vmatprep.subr.mxu0 0.0
        %1496 = vmatpush1.msra.mxu0 0.0
        %1497 = vmatprep.subr.mxu0 0.0
        %1498 = vmatpush1.msra.mxu0 0.0
        %1499 = vmatprep.subr.mxu0 0.0
        %1500 = vmatpush1.msra.mxu0 0.0
        %1501 = vmatprep.subr.mxu0 0.0
        %1502 = vmatpush1.msra.mxu0 0.0
        %1503 = vmatprep.subr.mxu0 0.0
        %1504 = vmatpush1.msra.mxu0 0.0
        %1505 = vmatprep.subr.mxu0 0.0
        %1506 = vmatpush1.msra.mxu0 0.0
        %1507 = vmatprep.subr.mxu0 0.0
        %1508 = vmatpush1.msra.mxu0 0.0
        %1509 = vmatprep.subr.mxu0 0.0
        %1510 = vmatpush1.msra.mxu0 0.0
        %1511 = vmatprep.subr.mxu0 0.0
        %1512 = vmatpush1.msra.mxu0 0.0
        %1513 = vmatprep.subr.mxu0 0.0
        %1514 = vmatpush1.msra.mxu0 0.0
        %1515 = vmatprep.subr.mxu0 0.0
        %1516 = vmatpush1.msra.mxu0 0.0
        %1517 = vmatprep.subr.mxu0 0.0
        %1518 = vmatpush1.msra.mxu0 0.0
        %1519 = vmatprep.subr.mxu0 0.0
        %1520 = vmatpush1.msra.mxu0 0.0
        %1521 = vmatprep.subr.mxu0 0.0
        %1522 = vmatpush1.msra.mxu0 0.0
        %1523 = vmatprep.subr.mxu0 0.0
        %1524 = vmatpush1.msra.mxu0 0.0
        %1525 = vmatprep.mubr.f32.mxu0 0.0
        %1526 = vmatmul.mubr.f32.gmra.mrb[0].mxu0 %v399
        %v1527 = vpop.f32.mrb[0].mxu0
        %v1528 = vadd.f32 %v320, %v1527
        %v1529 = vpop.f32.mrb[0].mxu0
        %1530 = vmatprep.mubr.f32.mxu0 0.0
        %1531 = vmatmul.mubr.f32.gmra.mrb[0].mxu0 %v402
        %v1532 = vpop.f32.mrb[0].mxu0
        %v1533 = vadd.f32 %v325, %v1532
        %v1534 = vpop.f32.mrb[0].mxu0
        %1535 = vmatprep.mubr.f32.mxu0 0.0
        %1536 = vmatmul.mubr.f32.gmra.mrb[0].mxu0 %v405
        %v1537 = vpop.f32.mrb[0].mxu0
        %v1538 = vadd.f32 %v330, %v1537
        %v1539 = vpop.f32.mrb[0].mxu0
        %1540 = vmatprep.mubr.f32.mxu0 0.0
        %1541 = vmatmul.mubr.f32.gmra.mrb[0].mxu0 %v408
        %v1542 = vpop.f32.mrb[0].mxu0
        %v1543 = vadd.f32 %v335, %v1542
        %v1544 = vpop.f32.mrb[0].mxu0
        %1545 = vmatprep.mubr.f32.mxu0 0.0
        %1546 = vmatmul.mubr.f32.gmra.mrb[0].mxu0 %v411
        %v1547 = vpop.f32.mrb[0].mxu0
        %v1548 = vadd.f32 %v340, %v1547
        %v1549 = vpop.f32.mrb[0].mxu0
        %1550 = vmatprep.mubr.f32.mxu0 0.0
        %1551 = vmatmul.mubr.f32.gmra.mrb[0].mxu0 %v414
        %v1552 = vpop.f32.mrb[0].mxu0
        %v1553 = vadd.f32 %v345, %v1552
        %v1554 = vpop.f32.mrb[0].mxu0
        %1555 = vmatprep.mubr.f32.mxu0 0.0
        %1556 = vmatmul.mubr.f32.gmra.mrb[0].mxu0 %v417
        %v1557 = vpop.f32.mrb[0].mxu0
        %v1558 = vadd.f32 %v350, %v1557
        %v1559 = vpop.f32.mrb[0].mxu0
        %1560 = vmatprep.mubr.f32.mxu0 0.0
        %1561 = vmatmul.mubr.f32.gmra.mrb[0].mxu0 %v420
        %v1562 = vpop.f32.mrb[0].mxu0
        %v1563 = vadd.f32 %v355, %v1562
        %v1564 = vpop.f32.mrb[0].mxu0
        %1565 = vmatprep.mubr.f32.mxu0 0.0
        %1566 = vmatmul.mubr.f32.gmra.mrb[0].mxu0 %v423
        %v1567 = vpop.f32.mrb[0].mxu0
        %v1568 = vadd.f32 %v360, %v1567
        %v1569 = vpop.f32.mrb[0].mxu0
        %1570 = vmatprep.mubr.f32.mxu0 0.0
        %1571 = vmatmul.mubr.f32.gmra.mrb[0].mxu0 %v426
        %v1572 = vpop.f32.mrb[0].mxu0
        %v1573 = vadd.f32 %v365, %v1572
        %v1574 = vpop.f32.mrb[0].mxu0
        %1575 = vmatprep.mubr.f32.mxu0 0.0
        %1576 = vmatmul.mubr.f32.gmra.mrb[0].mxu0 %v429
        %v1577 = vpop.f32.mrb[0].mxu0
        %v1578 = vadd.f32 %v370, %v1577
        %v1579 = vpop.f32.mrb[0].mxu0
        %1580 = vmatprep.mubr.f32.mxu0 0.0
        %1581 = vmatmul.mubr.f32.gmra.mrb[0].mxu0 %v432
        %v1582 = vpop.f32.mrb[0].mxu0
        %v1583 = vadd.f32 %v375, %v1582
        %v1584 = vpop.f32.mrb[0].mxu0
        %1585 = vmatprep.mubr.f32.mxu0 0.0
        %1586 = vmatmul.mubr.f32.gmra.mrb[0].mxu0 %v435
        %v1587 = vpop.f32.mrb[0].mxu0
        %v1588 = vadd.f32 %v380, %v1587
        %v1589 = vpop.f32.mrb[0].mxu0
        %1590 = vmatprep.mubr.f32.mxu0 0.0
        %1591 = vmatmul.mubr.f32.gmra.mrb[0].mxu0 %v438
        %v1592 = vpop.f32.mrb[0].mxu0
        %v1593 = vadd.f32 %v385, %v1592
        %v1594 = vpop.f32.mrb[0].mxu0
        %1595 = vmatprep.mubr.f32.mxu0 0.0
        %1596 = vmatmul.mubr.f32.gmra.mrb[0].mxu0 %v441
        %v1597 = vpop.f32.mrb[0].mxu0
        %v1598 = vadd.f32 %v390, %v1597
        %v1599 = vpop.f32.mrb[0].mxu0
        %1600 = vmatprep.mubr.f32.mxu0 0.0
        %1601 = vmatmul.mubr.f32.gmra.mrb[0].mxu0 %v444
        %v1602 = vpop.f32.mrb[0].mxu0
        %v1603 = vadd.f32 %v395, %v1602
        %v1604 = vpop.f32.mrb[0].mxu0
        %1605 = vdwg.mxu0
        %v1606 = vmul.f32 %v513, %v513
        %v1607 = vmul.f32 %v518, %v518
        %v1608 = vmul.f32 %v523, %v523
        %v1609 = vmul.f32 %v528, %v528
        %v1610 = vmul.f32 %v533, %v533
        %v1611 = vmul.f32 %v538, %v538
        %v1612 = vmul.f32 %v543, %v543
        %v1613 = vmul.f32 %v548, %v548
        %v1614 = vmul.f32 %v553, %v553
        %v1615 = vmul.f32 %v558, %v558
        %v1616 = vmul.f32 %v563, %v563
        %v1617 = vmul.f32 %v568, %v568
        %v1618 = vmul.f32 %v573, %v573
        %v1619 = vmul.f32 %v578, %v578
        %v1620 = vmul.f32 %v583, %v583
        %v1621 = vmul.f32 %v588, %v588
        %v1622 = vmul.f32 %v658, %v658
        %v1623 = vmul.f32 %v663, %v663
        %v1624 = vmul.f32 %v668, %v668
        %v1625 = vmul.f32 %v673, %v673
        %v1626 = vmul.f32 %v678, %v678
        %v1627 = vmul.f32 %v683, %v683
        %v1628 = vmul.f32 %v688, %v688
        %v1629 = vmul.f32 %v693, %v693
        %v1630 = vmul.f32 %v698, %v698
        %v1631 = vmul.f32 %v703, %v703
        %v1632 = vmul.f32 %v708, %v708
        %v1633 = vmul.f32 %v713, %v713
        %v1634 = vmul.f32 %v718, %v718
        %v1635 = vmul.f32 %v723, %v723
        %v1636 = vmul.f32 %v728, %v728
        %v1637 = vmul.f32 %v733, %v733
        %v1638 = vmul.f32 %v803, %v803
        %v1639 = vmul.f32 %v808, %v808
        %v1640 = vmul.f32 %v813, %v813
        %v1641 = vmul.f32 %v818, %v818
        %v1642 = vmul.f32 %v823, %v823
        %v1643 = vmul.f32 %v828, %v828
        %v1644 = vmul.f32 %v833, %v833
        %v1645 = vmul.f32 %v838, %v838
        %v1646 = vmul.f32 %v843, %v843
        %v1647 = vmul.f32 %v848, %v848
        %v1648 = vmul.f32 %v853, %v853
        %v1649 = vmul.f32 %v858, %v858
        %v1650 = vmul.f32 %v863, %v863
        %v1651 = vmul.f32 %v868, %v868
        %v1652 = vmul.f32 %v873, %v873
        %v1653 = vmul.f32 %v878, %v878
        %v1654 = vmul.f32 %v948, %v948
        %v1655 = vmul.f32 %v953, %v953
        %v1656 = vmul.f32 %v958, %v958
        %v1657 = vmul.f32 %v963, %v963
        %v1658 = vmul.f32 %v968, %v968
        %v1659 = vmul.f32 %v973, %v973
        %v1660 = vmul.f32 %v978, %v978
        %v1661 = vmul.f32 %v983, %v983
        %v1662 = vmul.f32 %v988, %v988
        %v1663 = vmul.f32 %v993, %v993
        %v1664 = vmul.f32 %v998, %v998
        %v1665 = vmul.f32 %v1003, %v1003
        %v1666 = vmul.f32 %v1008, %v1008
        %v1667 = vmul.f32 %v1013, %v1013
        %v1668 = vmul.f32 %v1018, %v1018
        %v1669 = vmul.f32 %v1023, %v1023
        %v1670 = vmul.f32 %v1093, %v1093
        %v1671 = vmul.f32 %v1098, %v1098
        %v1672 = vmul.f32 %v1103, %v1103
        %v1673 = vmul.f32 %v1108, %v1108
        %v1674 = vmul.f32 %v1113, %v1113
        %v1675 = vmul.f32 %v1118, %v1118
        %v1676 = vmul.f32 %v1123, %v1123
        %v1677 = vmul.f32 %v1128, %v1128
        %v1678 = vmul.f32 %v1133, %v1133
        %v1679 = vmul.f32 %v1138, %v1138
        %v1680 = vmul.f32 %v1143, %v1143
        %v1681 = vmul.f32 %v1148, %v1148
        %v1682 = vmul.f32 %v1153, %v1153
        %v1683 = vmul.f32 %v1158, %v1158
        %v1684 = vmul.f32 %v1163, %v1163
        %v1685 = vmul.f32 %v1168, %v1168
        %v1686 = vmul.f32 %v1238, %v1238
        %v1687 = vmul.f32 %v1243, %v1243
        %v1688 = vmul.f32 %v1248, %v1248
        %v1689 = vmul.f32 %v1253, %v1253
        %v1690 = vmul.f32 %v1258, %v1258
        %v1691 = vmul.f32 %v1263, %v1263
        %v1692 = vmul.f32 %v1268, %v1268
        %v1693 = vmul.f32 %v1273, %v1273
        %v1694 = vmul.f32 %v1278, %v1278
        %v1695 = vmul.f32 %v1283, %v1283
        %v1696 = vmul.f32 %v1288, %v1288
        %v1697 = vmul.f32 %v1293, %v1293
        %v1698 = vmul.f32 %v1298, %v1298
        %v1699 = vmul.f32 %v1303, %v1303
        %v1700 = vmul.f32 %v1308, %v1308
        %v1701 = vmul.f32 %v1313, %v1313
        %v1702 = vmul.f32 %v1383, %v1383
        %v1703 = vmul.f32 %v1388, %v1388
        %v1704 = vmul.f32 %v1393, %v1393
        %v1705 = vmul.f32 %v1398, %v1398
        %v1706 = vmul.f32 %v1403, %v1403
        %v1707 = vmul.f32 %v1408, %v1408
        %v1708 = vmul.f32 %v1413, %v1413
        %v1709 = vmul.f32 %v1418, %v1418
        %v1710 = vmul.f32 %v1423, %v1423
        %v1711 = vmul.f32 %v1428, %v1428
        %v1712 = vmul.f32 %v1433, %v1433
        %v1713 = vmul.f32 %v1438, %v1438
        %v1714 = vmul.f32 %v1443, %v1443
        %v1715 = vmul.f32 %v1448, %v1448
        %v1716 = vmul.f32 %v1453, %v1453
        %v1717 = vmul.f32 %v1458, %v1458
        %v1718 = vmul.f32 %v1528, %v1528
        %v1719 = vmul.f32 %v1533, %v1533
        %v1720 = vmul.f32 %v1538, %v1538
        %v1721 = vmul.f32 %v1543, %v1543
        %v1722 = vmul.f32 %v1548, %v1548
        %v1723 = vmul.f32 %v1553, %v1553
        %v1724 = vmul.f32 %v1558, %v1558
        %v1725 = vmul.f32 %v1563, %v1563
        %v1726 = vmul.f32 %v1568, %v1568
        %v1727 = vmul.f32 %v1573, %v1573
        %v1728 = vmul.f32 %v1578, %v1578
        %v1729 = vmul.f32 %v1583, %v1583
        %v1730 = vmul.f32 %v1588, %v1588
        %v1731 = vmul.f32 %v1593, %v1593
        %v1732 = vmul.f32 %v1598, %v1598
        %v1733 = vmul.f32 %v1603, %v1603
        %v1734 = vmul.f32 %v513, %v1606
        %v1735 = vmul.f32 %v518, %v1607
        %v1736 = vmul.f32 %v523, %v1608
        %v1737 = vmul.f32 %v528, %v1609
        %v1738 = vmul.f32 %v533, %v1610
        %v1739 = vmul.f32 %v538, %v1611
        %v1740 = vmul.f32 %v543, %v1612
        %v1741 = vmul.f32 %v548, %v1613
        %v1742 = vmul.f32 %v553, %v1614
        %v1743 = vmul.f32 %v558, %v1615
        %v1744 = vmul.f32 %v563, %v1616
        %v1745 = vmul.f32 %v568, %v1617
        %v1746 = vmul.f32 %v573, %v1618
        %v1747 = vmul.f32 %v578, %v1619
        %v1748 = vmul.f32 %v583, %v1620
        %v1749 = vmul.f32 %v588, %v1621
        %v1750 = vmul.f32 %v658, %v1622
        %v1751 = vmul.f32 %v663, %v1623
        %v1752 = vmul.f32 %v668, %v1624
        %v1753 = vmul.f32 %v673, %v1625
        %v1754 = vmul.f32 %v678, %v1626
        %v1755 = vmul.f32 %v683, %v1627
        %v1756 = vmul.f32 %v688, %v1628
        %v1757 = vmul.f32 %v693, %v1629
        %v1758 = vmul.f32 %v698, %v1630
        %v1759 = vmul.f32 %v703, %v1631
        %v1760 = vmul.f32 %v708, %v1632
        %v1761 = vmul.f32 %v713, %v1633
        %v1762 = vmul.f32 %v718, %v1634
        %v1763 = vmul.f32 %v723, %v1635
        %v1764 = vmul.f32 %v728, %v1636
        %v1765 = vmul.f32 %v733, %v1637
        %v1766 = vmul.f32 %v803, %v1638
        %v1767 = vmul.f32 %v808, %v1639
        %v1768 = vmul.f32 %v813, %v1640
        %v1769 = vmul.f32 %v818, %v1641
        %v1770 = vmul.f32 %v823, %v1642
        %v1771 = vmul.f32 %v828, %v1643
        %v1772 = vmul.f32 %v833, %v1644
        %v1773 = vmul.f32 %v838, %v1645
        %v1774 = vmul.f32 %v843, %v1646
        %v1775 = vmul.f32 %v848, %v1647
        %v1776 = vmul.f32 %v853, %v1648
        %v1777 = vmul.f32 %v858, %v1649
        %v1778 = vmul.f32 %v863, %v1650
        %v1779 = vmul.f32 %v868, %v1651
        %v1780 = vmul.f32 %v873, %v1652
        %v1781 = vmul.f32 %v878, %v1653
        %v1782 = vmul.f32 %v948, %v1654
        %v1783 = vmul.f32 %v953, %v1655
        %v1784 = vmul.f32 %v958, %v1656
        %v1785 = vmul.f32 %v963, %v1657
        %v1786 = vmul.f32 %v968, %v1658
        %v1787 = vmul.f32 %v973, %v1659
        %v1788 = vmul.f32 %v978, %v1660
        %v1789 = vmul.f32 %v983, %v1661
        %v1790 = vmul.f32 %v988, %v1662
        %v1791 = vmul.f32 %v993, %v1663
        %v1792 = vmul.f32 %v998, %v1664
        %v1793 = vmul.f32 %v1003, %v1665
        %v1794 = vmul.f32 %v1008, %v1666
        %v1795 = vmul.f32 %v1013, %v1667
        %v1796 = vmul.f32 %v1018, %v1668
        %v1797 = vmul.f32 %v1023, %v1669
        %v1798 = vmul.f32 %v1093, %v1670
        %v1799 = vmul.f32 %v1098, %v1671
        %v1800 = vmul.f32 %v1103, %v1672
        %v1801 = vmul.f32 %v1108, %v1673
        %v1802 = vmul.f32 %v1113, %v1674
        %v1803 = vmul.f32 %v1118, %v1675
        %v1804 = vmul.f32 %v1123, %v1676
        %v1805 = vmul.f32 %v1128, %v1677
        %v1806 = vmul.f32 %v1133, %v1678
        %v1807 = vmul.f32 %v1138, %v1679
        %v1808 = vmul.f32 %v1143, %v1680
        %v1809 = vmul.f32 %v1148, %v1681
        %v1810 = vmul.f32 %v1153, %v1682
        %v1811 = vmul.f32 %v1158, %v1683
        %v1812 = vmul.f32 %v1163, %v1684
        %v1813 = vmul.f32 %v1168, %v1685
        %v1814 = vmul.f32 %v1238, %v1686
        %v1815 = vmul.f32 %v1243, %v1687
        %v1816 = vmul.f32 %v1248, %v1688
        %v1817 = vmul.f32 %v1253, %v1689
        %v1818 = vmul.f32 %v1258, %v1690
        %v1819 = vmul.f32 %v1263, %v1691
        %v1820 = vmul.f32 %v1268, %v1692
        %v1821 = vmul.f32 %v1273, %v1693
        %v1822 = vmul.f32 %v1278, %v1694
        %v1823 = vmul.f32 %v1283, %v1695
        %v1824 = vmul.f32 %v1288, %v1696
        %v1825 = vmul.f32 %v1293, %v1697
        %v1826 = vmul.f32 %v1298, %v1698
        %v1827 = vmul.f32 %v1303, %v1699
        %v1828 = vmul.f32 %v1308, %v1700
        %v1829 = vmul.f32 %v1313, %v1701
        %v1830 = vmul.f32 %v1383, %v1702
        %v1831 = vmul.f32 %v1388, %v1703
        %v1832 = vmul.f32 %v1393, %v1704
        %v1833 = vmul.f32 %v1398, %v1705
        %v1834 = vmul.f32 %v1403, %v1706
        %v1835 = vmul.f32 %v1408, %v1707
        %v1836 = vmul.f32 %v1413, %v1708
        %v1837 = vmul.f32 %v1418, %v1709
        %v1838 = vmul.f32 %v1423, %v1710
        %v1839 = vmul.f32 %v1428, %v1711
        %v1840 = vmul.f32 %v1433, %v1712
        %v1841 = vmul.f32 %v1438, %v1713
        %v1842 = vmul.f32 %v1443, %v1714
        %v1843 = vmul.f32 %v1448, %v1715
        %v1844 = vmul.f32 %v1453, %v1716
        %v1845 = vmul.f32 %v1458, %v1717
        %v1846 = vmul.f32 %v1528, %v1718
        %v1847 = vmul.f32 %v1533, %v1719
        %v1848 = vmul.f32 %v1538, %v1720
        %v1849 = vmul.f32 %v1543, %v1721
        %v1850 = vmul.f32 %v1548, %v1722
        %v1851 = vmul.f32 %v1553, %v1723
        %v1852 = vmul.f32 %v1558, %v1724
        %v1853 = vmul.f32 %v1563, %v1725
        %v1854 = vmul.f32 %v1568, %v1726
        %v1855 = vmul.f32 %v1573, %v1727
        %v1856 = vmul.f32 %v1578, %v1728
        %v1857 = vmul.f32 %v1583, %v1729
        %v1858 = vmul.f32 %v1588, %v1730
        %v1859 = vmul.f32 %v1593, %v1731
        %v1860 = vmul.f32 %v1598, %v1732
        %v1861 = vmul.f32 %v1603, %v1733
        %v1862 = vmul.f32 %v1734, 0.044715
        %v1863 = vmul.f32 %v1735, 0.044715
        %v1864 = vmul.f32 %v1736, 0.044715
        %v1865 = vmul.f32 %v1737, 0.044715
        %v1866 = vmul.f32 %v1738, 0.044715
        %v1867 = vmul.f32 %v1739, 0.044715
        %v1868 = vmul.f32 %v1740, 0.044715
        %v1869 = vmul.f32 %v1741, 0.044715
        %v1870 = vmul.f32 %v1742, 0.044715
        %v1871 = vmul.f32 %v1743, 0.044715
        %v1872 = vmul.f32 %v1744, 0.044715
        %v1873 = vmul.f32 %v1745, 0.044715
        %v1874 = vmul.f32 %v1746, 0.044715
        %v1875 = vmul.f32 %v1747, 0.044715
        %v1876 = vmul.f32 %v1748, 0.044715
        %v1877 = vmul.f32 %v1749, 0.044715
        %v1878 = vmul.f32 %v1750, 0.044715
        %v1879 = vmul.f32 %v1751, 0.044715
        %v1880 = vmul.f32 %v1752, 0.044715
        %v1881 = vmul.f32 %v1753, 0.044715
        %v1882 = vmul.f32 %v1754, 0.044715
        %v1883 = vmul.f32 %v1755, 0.044715
        %v1884 = vmul.f32 %v1756, 0.044715
        %v1885 = vmul.f32 %v1757, 0.044715
        %v1886 = vmul.f32 %v1758, 0.044715
        %v1887 = vmul.f32 %v1759, 0.044715
        %v1888 = vmul.f32 %v1760, 0.044715
        %v1889 = vmul.f32 %v1761, 0.044715
        %v1890 = vmul.f32 %v1762, 0.044715
        %v1891 = vmul.f32 %v1763, 0.044715
        %v1892 = vmul.f32 %v1764, 0.044715
        %v1893 = vmul.f32 %v1765, 0.044715
        %v1894 = vmul.f32 %v1766, 0.044715
        %v1895 = vmul.f32 %v1767, 0.044715
        %v1896 = vmul.f32 %v1768, 0.044715
        %v1897 = vmul.f32 %v1769, 0.044715
        %v1898 = vmul.f32 %v1770, 0.044715
        %v1899 = vmul.f32 %v1771, 0.044715
        %v1900 = vmul.f32 %v1772, 0.044715
        %v1901 = vmul.f32 %v1773, 0.044715
        %v1902 = vmul.f32 %v1774, 0.044715
        %v1903 = vmul.f32 %v1775, 0.044715
        %v1904 = vmul.f32 %v1776, 0.044715
        %v1905 = vmul.f32 %v1777, 0.044715
        %v1906 = vmul.f32 %v1778, 0.044715
        %v1907 = vmul.f32 %v1779, 0.044715
        %v1908 = vmul.f32 %v1780, 0.044715
        %v1909 = vmul.f32 %v1781, 0.044715
        %v1910 = vmul.f32 %v1782, 0.044715
        %v1911 = vmul.f32 %v1783, 0.044715
        %v1912 = vmul.f32 %v1784, 0.044715
        %v1913 = vmul.f32 %v1785, 0.044715
        %v1914 = vmul.f32 %v1786, 0.044715
        %v1915 = vmul.f32 %v1787, 0.044715
        %v1916 = vmul.f32 %v1788, 0.044715
        %v1917 = vmul.f32 %v1789, 0.044715
        %v1918 = vmul.f32 %v1790, 0.044715
        %v1919 = vmul.f32 %v1791, 0.044715
        %v1920 = vmul.f32 %v1792, 0.044715
        %v1921 = vmul.f32 %v1793, 0.044715
        %v1922 = vmul.f32 %v1794, 0.044715
        %v1923 = vmul.f32 %v1795, 0.044715
        %v1924 = vmul.f32 %v1796, 0.044715
        %v1925 = vmul.f32 %v1797, 0.044715
        %v1926 = vmul.f32 %v1798, 0.044715
        %v1927 = vmul.f32 %v1799, 0.044715
        %v1928 = vmul.f32 %v1800, 0.044715
        %v1929 = vmul.f32 %v1801, 0.044715
        %v1930 = vmul.f32 %v1802, 0.044715
        %v1931 = vmul.f32 %v1803, 0.044715
        %v1932 = vmul.f32 %v1804, 0.044715
        %v1933 = vmul.f32 %v1805, 0.044715
        %v1934 = vmul.f32 %v1806, 0.044715
        %v1935 = vmul.f32 %v1807, 0.044715
        %v1936 = vmul.f32 %v1808, 0.044715
        %v1937 = vmul.f32 %v1809, 0.044715
        %v1938 = vmul.f32 %v1810, 0.044715
        %v1939 = vmul.f32 %v1811, 0.044715
        %v1940 = vmul.f32 %v1812, 0.044715
        %v1941 = vmul.f32 %v1813, 0.044715
        %v1942 = vmul.f32 %v1814, 0.044715
        %v1943 = vmul.f32 %v1815, 0.044715
        %v1944 = vmul.f32 %v1816, 0.044715
        %v1945 = vmul.f32 %v1817, 0.044715
        %v1946 = vmul.f32 %v1818, 0.044715
        %v1947 = vmul.f32 %v1819, 0.044715
        %v1948 = vmul.f32 %v1820, 0.044715
        %v1949 = vmul.f32 %v1821, 0.044715
        %v1950 = vmul.f32 %v1822, 0.044715
        %v1951 = vmul.f32 %v1823, 0.044715
        %v1952 = vmul.f32 %v1824, 0.044715
        %v1953 = vmul.f32 %v1825, 0.044715
        %v1954 = vmul.f32 %v1826, 0.044715
        %v1955 = vmul.f32 %v1827, 0.044715
        %v1956 = vmul.f32 %v1828, 0.044715
        %v1957 = vmul.f32 %v1829, 0.044715
        %v1958 = vmul.f32 %v1830, 0.044715
        %v1959 = vmul.f32 %v1831, 0.044715
        %v1960 = vmul.f32 %v1832, 0.044715
        %v1961 = vmul.f32 %v1833, 0.044715
        %v1962 = vmul.f32 %v1834, 0.044715
        %v1963 = vmul.f32 %v1835, 0.044715
        %v1964 = vmul.f32 %v1836, 0.044715
        %v1965 = vmul.f32 %v1837, 0.044715
        %v1966 = vmul.f32 %v1838, 0.044715
        %v1967 = vmul.f32 %v1839, 0.044715
        %v1968 = vmul.f32 %v1840, 0.044715
        %v1969 = vmul.f32 %v1841, 0.044715
        %v1970 = vmul.f32 %v1842, 0.044715
        %v1971 = vmul.f32 %v1843, 0.044715
        %v1972 = vmul.f32 %v1844, 0.044715
        %v1973 = vmul.f32 %v1845, 0.044715
        %v1974 = vmul.f32 %v1846, 0.044715
        %v1975 = vmul.f32 %v1847, 0.044715
        %v1976 = vmul.f32 %v1848, 0.044715
        %v1977 = vmul.f32 %v1849, 0.044715
        %v1978 = vmul.f32 %v1850, 0.044715
        %v1979 = vmul.f32 %v1851, 0.044715
        %v1980 = vmul.f32 %v1852, 0.044715
        %v1981 = vmul.f32 %v1853, 0.044715
        %v1982 = vmul.f32 %v1854, 0.044715
        %v1983 = vmul.f32 %v1855, 0.044715
        %v1984 = vmul.f32 %v1856, 0.044715
        %v1985 = vmul.f32 %v1857, 0.044715
        %v1986 = vmul.f32 %v1858, 0.044715
        %v1987 = vmul.f32 %v1859, 0.044715
        %v1988 = vmul.f32 %v1860, 0.044715
        %v1989 = vmul.f32 %v1861, 0.044715
        %v1990 = vadd.f32 %v513, %v1862
        %v1991 = vadd.f32 %v518, %v1863
        %v1992 = vadd.f32 %v523, %v1864
        %v1993 = vadd.f32 %v528, %v1865
        %v1994 = vadd.f32 %v533, %v1866
        %v1995 = vadd.f32 %v538, %v1867
        %v1996 = vadd.f32 %v543, %v1868
        %v1997 = vadd.f32 %v548, %v1869
        %v1998 = vadd.f32 %v553, %v1870
        %v1999 = vadd.f32 %v558, %v1871
        %v2000 = vadd.f32 %v563, %v1872
        %v2001 = vadd.f32 %v568, %v1873
        %v2002 = vadd.f32 %v573, %v1874
        %v2003 = vadd.f32 %v578, %v1875
        %v2004 = vadd.f32 %v583, %v1876
        %v2005 = vadd.f32 %v588, %v1877
        %v2006 = vadd.f32 %v658, %v1878
        %v2007 = vadd.f32 %v663, %v1879
        %v2008 = vadd.f32 %v668, %v1880
        %v2009 = vadd.f32 %v673, %v1881
        %v2010 = vadd.f32 %v678, %v1882
        %v2011 = vadd.f32 %v683, %v1883
        %v2012 = vadd.f32 %v688, %v1884
        %v2013 = vadd.f32 %v693, %v1885
        %v2014 = vadd.f32 %v698, %v1886
        %v2015 = vadd.f32 %v703, %v1887
        %v2016 = vadd.f32 %v708, %v1888
        %v2017 = vadd.f32 %v713, %v1889
        %v2018 = vadd.f32 %v718, %v1890
        %v2019 = vadd.f32 %v723, %v1891
        %v2020 = vadd.f32 %v728, %v1892
        %v2021 = vadd.f32 %v733, %v1893
        %v2022 = vadd.f32 %v803, %v1894
        %v2023 = vadd.f32 %v808, %v1895
        %v2024 = vadd.f32 %v813, %v1896
        %v2025 = vadd.f32 %v818, %v1897
        %v2026 = vadd.f32 %v823, %v1898
        %v2027 = vadd.f32 %v828, %v1899
        %v2028 = vadd.f32 %v833, %v1900
        %v2029 = vadd.f32 %v838, %v1901
        %v2030 = vadd.f32 %v843, %v1902
        %v2031 = vadd.f32 %v848, %v1903
        %v2032 = vadd.f32 %v853, %v1904
        %v2033 = vadd.f32 %v858, %v1905
        %v2034 = vadd.f32 %v863, %v1906
        %v2035 = vadd.f32 %v868, %v1907
        %v2036 = vadd.f32 %v873, %v1908
        %v2037 = vadd.f32 %v878, %v1909
        %v2038 = vadd.f32 %v948, %v1910
        %v2039 = vadd.f32 %v953, %v1911
        %v2040 = vadd.f32 %v958, %v1912
        %v2041 = vadd.f32 %v963, %v1913
        %v2042 = vadd.f32 %v968, %v1914
        %v2043 = vadd.f32 %v973, %v1915
        %v2044 = vadd.f32 %v978, %v1916
        %v2045 = vadd.f32 %v983, %v1917
        %v2046 = vadd.f32 %v988, %v1918
        %v2047 = vadd.f32 %v993, %v1919
        %v2048 = vadd.f32 %v998, %v1920
        %v2049 = vadd.f32 %v1003, %v1921
        %v2050 = vadd.f32 %v1008, %v1922
        %v2051 = vadd.f32 %v1013, %v1923
        %v2052 = vadd.f32 %v1018, %v1924
        %v2053 = vadd.f32 %v1023, %v1925
        %v2054 = vadd.f32 %v1093, %v1926
        %v2055 = vadd.f32 %v1098, %v1927
        %v2056 = vadd.f32 %v1103, %v1928
        %v2057 = vadd.f32 %v1108, %v1929
        %v2058 = vadd.f32 %v1113, %v1930
        %v2059 = vadd.f32 %v1118, %v1931
        %v2060 = vadd.f32 %v1123, %v1932
        %v2061 = vadd.f32 %v1128, %v1933
        %v2062 = vadd.f32 %v1133, %v1934
        %v2063 = vadd.f32 %v1138, %v1935
        %v2064 = vadd.f32 %v1143, %v1936
        %v2065 = vadd.f32 %v1148, %v1937
        %v2066 = vadd.f32 %v1153, %v1938
        %v2067 = vadd.f32 %v1158, %v1939
        %v2068 = vadd.f32 %v1163, %v1940
        %v2069 = vadd.f32 %v1168, %v1941
        %v2070 = vadd.f32 %v1238, %v1942
        %v2071 = vadd.f32 %v1243, %v1943
        %v2072 = vadd.f32 %v1248, %v1944
        %v2073 = vadd.f32 %v1253, %v1945
        %v2074 = vadd.f32 %v1258, %v1946
        %v2075 = vadd.f32 %v1263, %v1947
        %v2076 = vadd.f32 %v1268, %v1948
        %v2077 = vadd.f32 %v1273, %v1949
        %v2078 = vadd.f32 %v1278, %v1950
        %v2079 = vadd.f32 %v1283, %v1951
        %v2080 = vadd.f32 %v1288, %v1952
        %v2081 = vadd.f32 %v1293, %v1953
        %v2082 = vadd.f32 %v1298, %v1954
        %v2083 = vadd.f32 %v1303, %v1955
        %v2084 = vadd.f32 %v1308, %v1956
        %v2085 = vadd.f32 %v1313, %v1957
        %v2086 = vadd.f32 %v1383, %v1958
        %v2087 = vadd.f32 %v1388, %v1959
        %v2088 = vadd.f32 %v1393, %v1960
        %v2089 = vadd.f32 %v1398, %v1961
        %v2090 = vadd.f32 %v1403, %v1962
        %v2091 = vadd.f32 %v1408, %v1963
        %v2092 = vadd.f32 %v1413, %v1964
        %v2093 = vadd.f32 %v1418, %v1965
        %v2094 = vadd.f32 %v1423, %v1966
        %v2095 = vadd.f32 %v1428, %v1967
        %v2096 = vadd.f32 %v1433, %v1968
        %v2097 = vadd.f32 %v1438, %v1969
        %v2098 = vadd.f32 %v1443, %v1970
        %v2099 = vadd.f32 %v1448, %v1971
        %v2100 = vadd.f32 %v1453, %v1972
        %v2101 = vadd.f32 %v1458, %v1973
        %v2102 = vadd.f32 %v1528, %v1974
        %v2103 = vadd.f32 %v1533, %v1975
        %v2104 = vadd.f32 %v1538, %v1976
        %v2105 = vadd.f32 %v1543, %v1977
        %v2106 = vadd.f32 %v1548, %v1978
        %v2107 = vadd.f32 %v1553, %v1979
        %v2108 = vadd.f32 %v1558, %v1980
        %v2109 = vadd.f32 %v1563, %v1981
        %v2110 = vadd.f32 %v1568, %v1982
        %v2111 = vadd.f32 %v1573, %v1983
        %v2112 = vadd.f32 %v1578, %v1984
        %v2113 = vadd.f32 %v1583, %v1985
        %v2114 = vadd.f32 %v1588, %v1986
        %v2115 = vadd.f32 %v1593, %v1987
        %v2116 = vadd.f32 %v1598, %v1988
        %v2117 = vadd.f32 %v1603, %v1989
        %v2118 = vmul.f32 %v1990, 0.7978846
        %v2119 = vmul.f32 %v1991, 0.7978846
        %v2120 = vmul.f32 %v1992, 0.7978846
        %v2121 = vmul.f32 %v1993, 0.7978846
        %v2122 = vmul.f32 %v1994, 0.7978846
        %v2123 = vmul.f32 %v1995, 0.7978846
        %v2124 = vmul.f32 %v1996, 0.7978846
        %v2125 = vmul.f32 %v1997, 0.7978846
        %v2126 = vmul.f32 %v1998, 0.7978846
        %v2127 = vmul.f32 %v1999, 0.7978846
        %v2128 = vmul.f32 %v2000, 0.7978846
        %v2129 = vmul.f32 %v2001, 0.7978846
        %v2130 = vmul.f32 %v2002, 0.7978846
        %v2131 = vmul.f32 %v2003, 0.7978846
        %v2132 = vmul.f32 %v2004, 0.7978846
        %v2133 = vmul.f32 %v2005, 0.7978846
        %v2134 = vmul.f32 %v2006, 0.7978846
        %v2135 = vmul.f32 %v2007, 0.7978846
        %v2136 = vmul.f32 %v2008, 0.7978846
        %v2137 = vmul.f32 %v2009, 0.7978846
        %v2138 = vmul.f32 %v2010, 0.7978846
        %v2139 = vmul.f32 %v2011, 0.7978846
        %v2140 = vmul.f32 %v2012, 0.7978846
        %v2141 = vmul.f32 %v2013, 0.7978846
        %v2142 = vmul.f32 %v2014, 0.7978846
        %v2143 = vmul.f32 %v2015, 0.7978846
        %v2144 = vmul.f32 %v2016, 0.7978846
        %v2145 = vmul.f32 %v2017, 0.7978846
        %v2146 = vmul.f32 %v2018, 0.7978846
        %v2147 = vmul.f32 %v2019, 0.7978846
        %v2148 = vmul.f32 %v2020, 0.7978846
        %v2149 = vmul.f32 %v2021, 0.7978846
        %v2150 = vmul.f32 %v2022, 0.7978846
        %v2151 = vmul.f32 %v2023, 0.7978846
        %v2152 = vmul.f32 %v2024, 0.7978846
        %v2153 = vmul.f32 %v2025, 0.7978846
        %v2154 = vmul.f32 %v2026, 0.7978846
        %v2155 = vmul.f32 %v2027, 0.7978846
        %v2156 = vmul.f32 %v2028, 0.7978846
        %v2157 = vmul.f32 %v2029, 0.7978846
        %v2158 = vmul.f32 %v2030, 0.7978846
        %v2159 = vmul.f32 %v2031, 0.7978846
        %v2160 = vmul.f32 %v2032, 0.7978846
        %v2161 = vmul.f32 %v2033, 0.7978846
        %v2162 = vmul.f32 %v2034, 0.7978846
        %v2163 = vmul.f32 %v2035, 0.7978846
        %v2164 = vmul.f32 %v2036, 0.7978846
        %v2165 = vmul.f32 %v2037, 0.7978846
        %v2166 = vmul.f32 %v2038, 0.7978846
        %v2167 = vmul.f32 %v2039, 0.7978846
        %v2168 = vmul.f32 %v2040, 0.7978846
        %v2169 = vmul.f32 %v2041, 0.7978846
        %v2170 = vmul.f32 %v2042, 0.7978846
        %v2171 = vmul.f32 %v2043, 0.7978846
        %v2172 = vmul.f32 %v2044, 0.7978846
        %v2173 = vmul.f32 %v2045, 0.7978846
        %v2174 = vmul.f32 %v2046, 0.7978846
        %v2175 = vmul.f32 %v2047, 0.7978846
        %v2176 = vmul.f32 %v2048, 0.7978846
        %v2177 = vmul.f32 %v2049, 0.7978846
        %v2178 = vmul.f32 %v2050, 0.7978846
        %v2179 = vmul.f32 %v2051, 0.7978846
        %v2180 = vmul.f32 %v2052, 0.7978846
        %v2181 = vmul.f32 %v2053, 0.7978846
        %v2182 = vmul.f32 %v2054, 0.7978846
        %v2183 = vmul.f32 %v2055, 0.7978846
        %v2184 = vmul.f32 %v2056, 0.7978846
        %v2185 = vmul.f32 %v2057, 0.7978846
        %v2186 = vmul.f32 %v2058, 0.7978846
        %v2187 = vmul.f32 %v2059, 0.7978846
        %v2188 = vmul.f32 %v2060, 0.7978846
        %v2189 = vmul.f32 %v2061, 0.7978846
        %v2190 = vmul.f32 %v2062, 0.7978846
        %v2191 = vmul.f32 %v2063, 0.7978846
        %v2192 = vmul.f32 %v2064, 0.7978846
        %v2193 = vmul.f32 %v2065, 0.7978846
        %v2194 = vmul.f32 %v2066, 0.7978846
        %v2195 = vmul.f32 %v2067, 0.7978846
        %v2196 = vmul.f32 %v2068, 0.7978846
        %v2197 = vmul.f32 %v2069, 0.7978846
        %v2198 = vmul.f32 %v2070, 0.7978846
        %v2199 = vmul.f32 %v2071, 0.7978846
        %v2200 = vmul.f32 %v2072, 0.7978846
        %v2201 = vmul.f32 %v2073, 0.7978846
        %v2202 = vmul.f32 %v2074, 0.7978846
        %v2203 = vmul.f32 %v2075, 0.7978846
        %v2204 = vmul.f32 %v2076, 0.7978846
        %v2205 = vmul.f32 %v2077, 0.7978846
        %v2206 = vmul.f32 %v2078, 0.7978846
        %v2207 = vmul.f32 %v2079, 0.7978846
        %v2208 = vmul.f32 %v2080, 0.7978846
        %v2209 = vmul.f32 %v2081, 0.7978846
        %v2210 = vmul.f32 %v2082, 0.7978846
        %v2211 = vmul.f32 %v2083, 0.7978846
        %v2212 = vmul.f32 %v2084, 0.7978846
        %v2213 = vmul.f32 %v2085, 0.7978846
        %v2214 = vmul.f32 %v2086, 0.7978846
        %v2215 = vmul.f32 %v2087, 0.7978846
        %v2216 = vmul.f32 %v2088, 0.7978846
        %v2217 = vmul.f32 %v2089, 0.7978846
        %v2218 = vmul.f32 %v2090, 0.7978846
        %v2219 = vmul.f32 %v2091, 0.7978846
        %v2220 = vmul.f32 %v2092, 0.7978846
        %v2221 = vmul.f32 %v2093, 0.7978846
        %v2222 = vmul.f32 %v2094, 0.7978846
        %v2223 = vmul.f32 %v2095, 0.7978846
        %v2224 = vmul.f32 %v2096, 0.7978846
        %v2225 = vmul.f32 %v2097, 0.7978846
        %v2226 = vmul.f32 %v2098, 0.7978846
        %v2227 = vmul.f32 %v2099, 0.7978846
        %v2228 = vmul.f32 %v2100, 0.7978846
        %v2229 = vmul.f32 %v2101, 0.7978846
        %v2230 = vmul.f32 %v2102, 0.7978846
        %v2231 = vmul.f32 %v2103, 0.7978846
        %v2232 = vmul.f32 %v2104, 0.7978846
        %v2233 = vmul.f32 %v2105, 0.7978846
        %v2234 = vmul.f32 %v2106, 0.7978846
        %v2235 = vmul.f32 %v2107, 0.7978846
        %v2236 = vmul.f32 %v2108, 0.7978846
        %v2237 = vmul.f32 %v2109, 0.7978846
        %v2238 = vmul.f32 %v2110, 0.7978846
        %v2239 = vmul.f32 %v2111, 0.7978846
        %v2240 = vmul.f32 %v2112, 0.7978846
        %v2241 = vmul.f32 %v2113, 0.7978846
        %v2242 = vmul.f32 %v2114, 0.7978846
        %v2243 = vmul.f32 %v2115, 0.7978846
        %v2244 = vmul.f32 %v2116, 0.7978846
        %v2245 = vmul.f32 %v2117, 0.7978846
        %v2246 = vtanh.pop %v2118
        %v2247 = vtanh.pop %v2119
        %v2248 = vtanh.pop %v2120
        %v2249 = vtanh.pop %v2121
        %v2250 = vtanh.pop %v2122
        %v2251 = vtanh.pop %v2123
        %v2252 = vtanh.pop %v2124
        %v2253 = vtanh.pop %v2125
        %v2254 = vtanh.pop %v2126
        %v2255 = vtanh.pop %v2127
        %v2256 = vtanh.pop %v2128
        %v2257 = vtanh.pop %v2129
        %v2258 = vtanh.pop %v2130
        %v2259 = vtanh.pop %v2131
        %v2260 = vtanh.pop %v2132
        %v2261 = vtanh.pop %v2133
        %v2262 = vtanh.pop %v2134
        %v2263 = vtanh.pop %v2135
        %v2264 = vtanh.pop %v2136
        %v2265 = vtanh.pop %v2137
        %v2266 = vtanh.pop %v2138
        %v2267 = vtanh.pop %v2139
        %v2268 = vtanh.pop %v2140
        %v2269 = vtanh.pop %v2141
        %v2270 = vtanh.pop %v2142
        %v2271 = vtanh.pop %v2143
        %v2272 = vtanh.pop %v2144
        %v2273 = vtanh.pop %v2145
        %v2274 = vtanh.pop %v2146
        %v2275 = vtanh.pop %v2147
        %v2276 = vtanh.pop %v2148
        %v2277 = vtanh.pop %v2149
        %v2278 = vtanh.pop %v2150
        %v2279 = vtanh.pop %v2151
        %v2280 = vtanh.pop %v2152
        %v2281 = vtanh.pop %v2153
        %v2282 = vtanh.pop %v2154
        %v2283 = vtanh.pop %v2155
        %v2284 = vtanh.pop %v2156
        %v2285 = vtanh.pop %v2157
        %v2286 = vtanh.pop %v2158
        %v2287 = vtanh.pop %v2159
        %v2288 = vtanh.pop %v2160
        %v2289 = vtanh.pop %v2161
        %v2290 = vtanh.pop %v2162
        %v2291 = vtanh.pop %v2163
        %v2292 = vtanh.pop %v2164
        %v2293 = vtanh.pop %v2165
        %v2294 = vtanh.pop %v2166
        %v2295 = vtanh.pop %v2167
        %v2296 = vtanh.pop %v2168
        %v2297 = vtanh.pop %v2169
        %v2298 = vtanh.pop %v2170
        %v2299 = vtanh.pop %v2171
        %v2300 = vtanh.pop %v2172
        %v2301 = vtanh.pop %v2173
        %v2302 = vtanh.pop %v2174
        %v2303 = vtanh.pop %v2175
        %v2304 = vtanh.pop %v2176
        %v2305 = vtanh.pop %v2177
        %v2306 = vtanh.pop %v2178
        %v2307 = vtanh.pop %v2179
        %v2308 = vtanh.pop %v2180
        %v2309 = vtanh.pop %v2181
        %v2310 = vtanh.pop %v2182
        %v2311 = vtanh.pop %v2183
        %v2312 = vtanh.pop %v2184
        %v2313 = vtanh.pop %v2185
        %v2314 = vtanh.pop %v2186
        %v2315 = vtanh.pop %v2187
        %v2316 = vtanh.pop %v2188
        %v2317 = vtanh.pop %v2189
        %v2318 = vtanh.pop %v2190
        %v2319 = vtanh.pop %v2191
        %v2320 = vtanh.pop %v2192
        %v2321 = vtanh.pop %v2193
        %v2322 = vtanh.pop %v2194
        %v2323 = vtanh.pop %v2195
        %v2324 = vtanh.pop %v2196
        %v2325 = vtanh.pop %v2197
        %v2326 = vtanh.pop %v2198
        %v2327 = vtanh.pop %v2199
        %v2328 = vtanh.pop %v2200
        %v2329 = vtanh.pop %v2201
        %v2330 = vtanh.pop %v2202
        %v2331 = vtanh.pop %v2203
        %v2332 = vtanh.pop %v2204
        %v2333 = vtanh.pop %v2205
        %v2334 = vtanh.pop %v2206
        %v2335 = vtanh.pop %v2207
        %v2336 = vtanh.pop %v2208
        %v2337 = vtanh.pop %v2209
        %v2338 = vtanh.pop %v2210
        %v2339 = vtanh.pop %v2211
        %v2340 = vtanh.pop %v2212
        %v2341 = vtanh.pop %v2213
        %v2342 = vtanh.pop %v2214
        %v2343 = vtanh.pop %v2215
        %v2344 = vtanh.pop %v2216
        %v2345 = vtanh.pop %v2217
        %v2346 = vtanh.pop %v2218
        %v2347 = vtanh.pop %v2219
        %v2348 = vtanh.pop %v2220
        %v2349 = vtanh.pop %v2221
        %v2350 = vtanh.pop %v2222
        %v2351 = vtanh.pop %v2223
        %v2352 = vtanh.pop %v2224
        %v2353 = vtanh.pop %v2225
        %v2354 = vtanh.pop %v2226
        %v2355 = vtanh.pop %v2227
        %v2356 = vtanh.pop %v2228
        %v2357 = vtanh.pop %v2229
        %v2358 = vtanh.pop %v2230
        %v2359 = vtanh.pop %v2231
        %v2360 = vtanh.pop %v2232
        %v2361 = vtanh.pop %v2233
        %v2362 = vtanh.pop %v2234
        %v2363 = vtanh.pop %v2235
        %v2364 = vtanh.pop %v2236
        %v2365 = vtanh.pop %v2237
        %v2366 = vtanh.pop %v2238
        %v2367 = vtanh.pop %v2239
        %v2368 = vtanh.pop %v2240
        %v2369 = vtanh.pop %v2241
        %v2370 = vtanh.pop %v2242
        %v2371 = vtanh.pop %v2243
        %v2372 = vtanh.pop %v2244
        %v2373 = vtanh.pop %v2245
        %v2374 = vadd.f32 %v2246, 1.0
        %v2375 = vadd.f32 %v2247, 1.0
        %v2376 = vadd.f32 %v2248, 1.0
        %v2377 = vadd.f32 %v2249, 1.0
        %v2378 = vadd.f32 %v2250, 1.0
        %v2379 = vadd.f32 %v2251, 1.0
        %v2380 = vadd.f32 %v2252, 1.0
        %v2381 = vadd.f32 %v2253, 1.0
        %v2382 = vadd.f32 %v2254, 1.0
        %v2383 = vadd.f32 %v2255, 1.0
        %v2384 = vadd.f32 %v2256, 1.0
        %v2385 = vadd.f32 %v2257, 1.0
        %v2386 = vadd.f32 %v2258, 1.0
        %v2387 = vadd.f32 %v2259, 1.0
        %v2388 = vadd.f32 %v2260, 1.0
        %v2389 = vadd.f32 %v2261, 1.0
        %v2390 = vadd.f32 %v2262, 1.0
        %v2391 = vadd.f32 %v2263, 1.0
        %v2392 = vadd.f32 %v2264, 1.0
        %v2393 = vadd.f32 %v2265, 1.0
        %v2394 = vadd.f32 %v2266, 1.0
        %v2395 = vadd.f32 %v2267, 1.0
        %v2396 = vadd.f32 %v2268, 1.0
        %v2397 = vadd.f32 %v2269, 1.0
        %v2398 = vadd.f32 %v2270, 1.0
        %v2399 = vadd.f32 %v2271, 1.0
        %v2400 = vadd.f32 %v2272, 1.0
        %v2401 = vadd.f32 %v2273, 1.0
        %v2402 = vadd.f32 %v2274, 1.0
        %v2403 = vadd.f32 %v2275, 1.0
        %v2404 = vadd.f32 %v2276, 1.0
        %v2405 = vadd.f32 %v2277, 1.0
        %v2406 = vadd.f32 %v2278, 1.0
        %v2407 = vadd.f32 %v2279, 1.0
        %v2408 = vadd.f32 %v2280, 1.0
        %v2409 = vadd.f32 %v2281, 1.0
        %v2410 = vadd.f32 %v2282, 1.0
        %v2411 = vadd.f32 %v2283, 1.0
        %v2412 = vadd.f32 %v2284, 1.0
        %v2413 = vadd.f32 %v2285, 1.0
        %v2414 = vadd.f32 %v2286, 1.0
        %v2415 = vadd.f32 %v2287, 1.0
        %v2416 = vadd.f32 %v2288, 1.0
        %v2417 = vadd.f32 %v2289, 1.0
        %v2418 = vadd.f32 %v2290, 1.0
        %v2419 = vadd.f32 %v2291, 1.0
        %v2420 = vadd.f32 %v2292, 1.0
        %v2421 = vadd.f32 %v2293, 1.0
        %v2422 = vadd.f32 %v2294, 1.0
        %v2423 = vadd.f32 %v2295, 1.0
        %v2424 = vadd.f32 %v2296, 1.0
        %v2425 = vadd.f32 %v2297, 1.0
        %v2426 = vadd.f32 %v2298, 1.0
        %v2427 = vadd.f32 %v2299, 1.0
        %v2428 = vadd.f32 %v2300, 1.0
        %v2429 = vadd.f32 %v2301, 1.0
        %v2430 = vadd.f32 %v2302, 1.0
        %v2431 = vadd.f32 %v2303, 1.0
        %v2432 = vadd.f32 %v2304, 1.0
        %v2433 = vadd.f32 %v2305, 1.0
        %v2434 = vadd.f32 %v2306, 1.0
        %v2435 = vadd.f32 %v2307, 1.0
        %v2436 = vadd.f32 %v2308, 1.0
        %v2437 = vadd.f32 %v2309, 1.0
        %v2438 = vadd.f32 %v2310, 1.0
        %v2439 = vadd.f32 %v2311, 1.0
        %v2440 = vadd.f32 %v2312, 1.0
        %v2441 = vadd.f32 %v2313, 1.0
        %v2442 = vadd.f32 %v2314, 1.0
        %v2443 = vadd.f32 %v2315, 1.0
        %v2444 = vadd.f32 %v2316, 1.0
        %v2445 = vadd.f32 %v2317, 1.0
        %v2446 = vadd.f32 %v2318, 1.0
        %v2447 = vadd.f32 %v2319, 1.0
        %v2448 = vadd.f32 %v2320, 1.0
        %v2449 = vadd.f32 %v2321, 1.0
        %v2450 = vadd.f32 %v2322, 1.0
        %v2451 = vadd.f32 %v2323, 1.0
        %v2452 = vadd.f32 %v2324, 1.0
        %v2453 = vadd.f32 %v2325, 1.0
        %v2454 = vadd.f32 %v2326, 1.0
        %v2455 = vadd.f32 %v2327, 1.0
        %v2456 = vadd.f32 %v2328, 1.0
        %v2457 = vadd.f32 %v2329, 1.0
        %v2458 = vadd.f32 %v2330, 1.0
        %v2459 = vadd.f32 %v2331, 1.0
        %v2460 = vadd.f32 %v2332, 1.0
        %v2461 = vadd.f32 %v2333, 1.0
        %v2462 = vadd.f32 %v2334, 1.0
        %v2463 = vadd.f32 %v2335, 1.0
        %v2464 = vadd.f32 %v2336, 1.0
        %v2465 = vadd.f32 %v2337, 1.0
        %v2466 = vadd.f32 %v2338, 1.0
        %v2467 = vadd.f32 %v2339, 1.0
        %v2468 = vadd.f32 %v2340, 1.0
        %v2469 = vadd.f32 %v2341, 1.0
        %v2470 = vadd.f32 %v2342, 1.0
        %v2471 = vadd.f32 %v2343, 1.0
        %v2472 = vadd.f32 %v2344, 1.0
        %v2473 = vadd.f32 %v2345, 1.0
        %v2474 = vadd.f32 %v2346, 1.0
        %v2475 = vadd.f32 %v2347, 1.0
        %v2476 = vadd.f32 %v2348, 1.0
        %v2477 = vadd.f32 %v2349, 1.0
        %v2478 = vadd.f32 %v2350, 1.0
        %v2479 = vadd.f32 %v2351, 1.0
        %v2480 = vadd.f32 %v2352, 1.0
        %v2481 = vadd.f32 %v2353, 1.0
        %v2482 = vadd.f32 %v2354, 1.0
        %v2483 = vadd.f32 %v2355, 1.0
        %v2484 = vadd.f32 %v2356, 1.0
        %v2485 = vadd.f32 %v2357, 1.0
        %v2486 = vadd.f32 %v2358, 1.0
        %v2487 = vadd.f32 %v2359, 1.0
        %v2488 = vadd.f32 %v2360, 1.0
        %v2489 = vadd.f32 %v2361, 1.0
        %v2490 = vadd.f32 %v2362, 1.0
        %v2491 = vadd.f32 %v2363, 1.0
        %v2492 = vadd.f32 %v2364, 1.0
        %v2493 = vadd.f32 %v2365, 1.0
        %v2494 = vadd.f32 %v2366, 1.0
        %v2495 = vadd.f32 %v2367, 1.0
        %v2496 = vadd.f32 %v2368, 1.0
        %v2497 = vadd.f32 %v2369, 1.0
        %v2498 = vadd.f32 %v2370, 1.0
        %v2499 = vadd.f32 %v2371, 1.0
        %v2500 = vadd.f32 %v2372, 1.0
        %v2501 = vadd.f32 %v2373, 1.0
        %v2502 = vmul.f32 %v2374, 0.5
        %v2503 = vmul.f32 %v2375, 0.5
        %v2504 = vmul.f32 %v2376, 0.5
        %v2505 = vmul.f32 %v2377, 0.5
        %v2506 = vmul.f32 %v2378, 0.5
        %v2507 = vmul.f32 %v2379, 0.5
        %v2508 = vmul.f32 %v2380, 0.5
        %v2509 = vmul.f32 %v2381, 0.5
        %v2510 = vmul.f32 %v2382, 0.5
        %v2511 = vmul.f32 %v2383, 0.5
        %v2512 = vmul.f32 %v2384, 0.5
        %v2513 = vmul.f32 %v2385, 0.5
        %v2514 = vmul.f32 %v2386, 0.5
        %v2515 = vmul.f32 %v2387, 0.5
        %v2516 = vmul.f32 %v2388, 0.5
        %v2517 = vmul.f32 %v2389, 0.5
        %v2518 = vmul.f32 %v2390, 0.5
        %v2519 = vmul.f32 %v2391, 0.5
        %v2520 = vmul.f32 %v2392, 0.5
        %v2521 = vmul.f32 %v2393, 0.5
        %v2522 = vmul.f32 %v2394, 0.5
        %v2523 = vmul.f32 %v2395, 0.5
        %v2524 = vmul.f32 %v2396, 0.5
        %v2525 = vmul.f32 %v2397, 0.5
        %v2526 = vmul.f32 %v2398, 0.5
        %v2527 = vmul.f32 %v2399, 0.5
        %v2528 = vmul.f32 %v2400, 0.5
        %v2529 = vmul.f32 %v2401, 0.5
        %v2530 = vmul.f32 %v2402, 0.5
        %v2531 = vmul.f32 %v2403, 0.5
        %v2532 = vmul.f32 %v2404, 0.5
        %v2533 = vmul.f32 %v2405, 0.5
        %v2534 = vmul.f32 %v2406, 0.5
        %v2535 = vmul.f32 %v2407, 0.5
        %v2536 = vmul.f32 %v2408, 0.5
        %v2537 = vmul.f32 %v2409, 0.5
        %v2538 = vmul.f32 %v2410, 0.5
        %v2539 = vmul.f32 %v2411, 0.5
        %v2540 = vmul.f32 %v2412, 0.5
        %v2541 = vmul.f32 %v2413, 0.5
        %v2542 = vmul.f32 %v2414, 0.5
        %v2543 = vmul.f32 %v2415, 0.5
        %v2544 = vmul.f32 %v2416, 0.5
        %v2545 = vmul.f32 %v2417, 0.5
        %v2546 = vmul.f32 %v2418, 0.5
        %v2547 = vmul.f32 %v2419, 0.5
        %v2548 = vmul.f32 %v2420, 0.5
        %v2549 = vmul.f32 %v2421, 0.5
        %v2550 = vmul.f32 %v2422, 0.5
        %v2551 = vmul.f32 %v2423, 0.5
        %v2552 = vmul.f32 %v2424, 0.5
        %v2553 = vmul.f32 %v2425, 0.5
        %v2554 = vmul.f32 %v2426, 0.5
        %v2555 = vmul.f32 %v2427, 0.5
        %v2556 = vmul.f32 %v2428, 0.5
        %v2557 = vmul.f32 %v2429, 0.5
        %v2558 = vmul.f32 %v2430, 0.5
        %v2559 = vmul.f32 %v2431, 0.5
        %v2560 = vmul.f32 %v2432, 0.5
        %v2561 = vmul.f32 %v2433, 0.5
        %v2562 = vmul.f32 %v2434, 0.5
        %v2563 = vmul.f32 %v2435, 0.5
        %v2564 = vmul.f32 %v2436, 0.5
        %v2565 = vmul.f32 %v2437, 0.5
        %v2566 = vmul.f32 %v2438, 0.5
        %v2567 = vmul.f32 %v2439, 0.5
        %v2568 = vmul.f32 %v2440, 0.5
        %v2569 = vmul.f32 %v2441, 0.5
        %v2570 = vmul.f32 %v2442, 0.5
        %v2571 = vmul.f32 %v2443, 0.5
        %v2572 = vmul.f32 %v2444, 0.5
        %v2573 = vmul.f32 %v2445, 0.5
        %v2574 = vmul.f32 %v2446, 0.5
        %v2575 = vmul.f32 %v2447, 0.5
        %v2576 = vmul.f32 %v2448, 0.5
        %v2577 = vmul.f32 %v2449, 0.5
        %v2578 = vmul.f32 %v2450, 0.5
        %v2579 = vmul.f32 %v2451, 0.5
        %v2580 = vmul.f32 %v2452, 0.5
        %v2581 = vmul.f32 %v2453, 0.5
        %v2582 = vmul.f32 %v2454, 0.5
        %v2583 = vmul.f32 %v2455, 0.5
        %v2584 = vmul.f32 %v2456, 0.5
        %v2585 = vmul.f32 %v2457, 0.5
        %v2586 = vmul.f32 %v2458, 0.5
        %v2587 = vmul.f32 %v2459, 0.5
        %v2588 = vmul.f32 %v2460, 0.5
        %v2589 = vmul.f32 %v2461, 0.5
        %v2590 = vmul.f32 %v2462, 0.5
        %v2591 = vmul.f32 %v2463, 0.5
        %v2592 = vmul.f32 %v2464, 0.5
        %v2593 = vmul.f32 %v2465, 0.5
        %v2594 = vmul.f32 %v2466, 0.5
        %v2595 = vmul.f32 %v2467, 0.5
        %v2596 = vmul.f32 %v2468, 0.5
        %v2597 = vmul.f32 %v2469, 0.5
        %v2598 = vmul.f32 %v2470, 0.5
        %v2599 = vmul.f32 %v2471, 0.5
        %v2600 = vmul.f32 %v2472, 0.5
        %v2601 = vmul.f32 %v2473, 0.5
        %v2602 = vmul.f32 %v2474, 0.5
        %v2603 = vmul.f32 %v2475, 0.5
        %v2604 = vmul.f32 %v2476, 0.5
        %v2605 = vmul.f32 %v2477, 0.5
        %v2606 = vmul.f32 %v2478, 0.5
        %v2607 = vmul.f32 %v2479, 0.5
        %v2608 = vmul.f32 %v2480, 0.5
        %v2609 = vmul.f32 %v2481, 0.5
        %v2610 = vmul.f32 %v2482, 0.5
        %v2611 = vmul.f32 %v2483, 0.5
        %v2612 = vmul.f32 %v2484, 0.5
        %v2613 = vmul.f32 %v2485, 0.5
        %v2614 = vmul.f32 %v2486, 0.5
        %v2615 = vmul.f32 %v2487, 0.5
        %v2616 = vmul.f32 %v2488, 0.5
        %v2617 = vmul.f32 %v2489, 0.5
        %v2618 = vmul.f32 %v2490, 0.5
        %v2619 = vmul.f32 %v2491, 0.5
        %v2620 = vmul.f32 %v2492, 0.5
        %v2621 = vmul.f32 %v2493, 0.5
        %v2622 = vmul.f32 %v2494, 0.5
        %v2623 = vmul.f32 %v2495, 0.5
        %v2624 = vmul.f32 %v2496, 0.5
        %v2625 = vmul.f32 %v2497, 0.5
        %v2626 = vmul.f32 %v2498, 0.5
        %v2627 = vmul.f32 %v2499, 0.5
        %v2628 = vmul.f32 %v2500, 0.5
        %v2629 = vmul.f32 %v2501, 0.5
        %v2630 = vmul.f32 %v513, %v2502
        %v2631 = vmul.f32 %v518, %v2503
        %v2632 = vmul.f32 %v523, %v2504
        %v2633 = vmul.f32 %v528, %v2505
        %v2634 = vmul.f32 %v533, %v2506
        %v2635 = vmul.f32 %v538, %v2507
        %v2636 = vmul.f32 %v543, %v2508
        %v2637 = vmul.f32 %v548, %v2509
        %v2638 = vmul.f32 %v553, %v2510
        %v2639 = vmul.f32 %v558, %v2511
        %v2640 = vmul.f32 %v563, %v2512
        %v2641 = vmul.f32 %v568, %v2513
        %v2642 = vmul.f32 %v573, %v2514
        %v2643 = vmul.f32 %v578, %v2515
        %v2644 = vmul.f32 %v583, %v2516
        %v2645 = vmul.f32 %v588, %v2517
        %v2646 = vmul.f32 %v658, %v2518
        %v2647 = vmul.f32 %v663, %v2519
        %v2648 = vmul.f32 %v668, %v2520
        %v2649 = vmul.f32 %v673, %v2521
        %v2650 = vmul.f32 %v678, %v2522
        %v2651 = vmul.f32 %v683, %v2523
        %v2652 = vmul.f32 %v688, %v2524
        %v2653 = vmul.f32 %v693, %v2525
        %v2654 = vmul.f32 %v698, %v2526
        %v2655 = vmul.f32 %v703, %v2527
        %v2656 = vmul.f32 %v708, %v2528
        %v2657 = vmul.f32 %v713, %v2529
        %v2658 = vmul.f32 %v718, %v2530
        %v2659 = vmul.f32 %v723, %v2531
        %v2660 = vmul.f32 %v728, %v2532
        %v2661 = vmul.f32 %v733, %v2533
        %v2662 = vmul.f32 %v803, %v2534
        %v2663 = vmul.f32 %v808, %v2535
        %v2664 = vmul.f32 %v813, %v2536
        %v2665 = vmul.f32 %v818, %v2537
        %v2666 = vmul.f32 %v823, %v2538
        %v2667 = vmul.f32 %v828, %v2539
        %v2668 = vmul.f32 %v833, %v2540
        %v2669 = vmul.f32 %v838, %v2541
        %v2670 = vmul.f32 %v843, %v2542
        %v2671 = vmul.f32 %v848, %v2543
        %v2672 = vmul.f32 %v853, %v2544
        %v2673 = vmul.f32 %v858, %v2545
        %v2674 = vmul.f32 %v863, %v2546
        %v2675 = vmul.f32 %v868, %v2547
        %v2676 = vmul.f32 %v873, %v2548
        %v2677 = vmul.f32 %v878, %v2549
        %v2678 = vmul.f32 %v948, %v2550
        %v2679 = vmul.f32 %v953, %v2551
        %v2680 = vmul.f32 %v958, %v2552
        %v2681 = vmul.f32 %v963, %v2553
        %v2682 = vmul.f32 %v968, %v2554
        %v2683 = vmul.f32 %v973, %v2555
        %v2684 = vmul.f32 %v978, %v2556
        %v2685 = vmul.f32 %v983, %v2557
        %v2686 = vmul.f32 %v988, %v2558
        %v2687 = vmul.f32 %v993, %v2559
        %v2688 = vmul.f32 %v998, %v2560
        %v2689 = vmul.f32 %v1003, %v2561
        %v2690 = vmul.f32 %v1008, %v2562
        %v2691 = vmul.f32 %v1013, %v2563
        %v2692 = vmul.f32 %v1018, %v2564
        %v2693 = vmul.f32 %v1023, %v2565
        %v2694 = vmul.f32 %v1093, %v2566
        %v2695 = vmul.f32 %v1098, %v2567
        %v2696 = vmul.f32 %v1103, %v2568
        %v2697 = vmul.f32 %v1108, %v2569
        %v2698 = vmul.f32 %v1113, %v2570
        %v2699 = vmul.f32 %v1118, %v2571
        %v2700 = vmul.f32 %v1123, %v2572
        %v2701 = vmul.f32 %v1128, %v2573
        %v2702 = vmul.f32 %v1133, %v2574
        %v2703 = vmul.f32 %v1138, %v2575
        %v2704 = vmul.f32 %v1143, %v2576
        %v2705 = vmul.f32 %v1148, %v2577
        %v2706 = vmul.f32 %v1153, %v2578
        %v2707 = vmul.f32 %v1158, %v2579
        %v2708 = vmul.f32 %v1163, %v2580
        %v2709 = vmul.f32 %v1168, %v2581
        %v2710 = vmul.f32 %v1238, %v2582
        %v2711 = vmul.f32 %v1243, %v2583
        %v2712 = vmul.f32 %v1248, %v2584
        %v2713 = vmul.f32 %v1253, %v2585
        %v2714 = vmul.f32 %v1258, %v2586
        %v2715 = vmul.f32 %v1263, %v2587
        %v2716 = vmul.f32 %v1268, %v2588
        %v2717 = vmul.f32 %v1273, %v2589
        %v2718 = vmul.f32 %v1278, %v2590
        %v2719 = vmul.f32 %v1283, %v2591
        %v2720 = vmul.f32 %v1288, %v2592
        %v2721 = vmul.f32 %v1293, %v2593
        %v2722 = vmul.f32 %v1298, %v2594
        %v2723 = vmul.f32 %v1303, %v2595
        %v2724 = vmul.f32 %v1308, %v2596
        %v2725 = vmul.f32 %v1313, %v2597
        %v2726 = vmul.f32 %v1383, %v2598
        %v2727 = vmul.f32 %v1388, %v2599
        %v2728 = vmul.f32 %v1393, %v2600
        %v2729 = vmul.f32 %v1398, %v2601
        %v2730 = vmul.f32 %v1403, %v2602
        %v2731 = vmul.f32 %v1408, %v2603
        %v2732 = vmul.f32 %v1413, %v2604
        %v2733 = vmul.f32 %v1418, %v2605
        %v2734 = vmul.f32 %v1423, %v2606
        %v2735 = vmul.f32 %v1428, %v2607
        %v2736 = vmul.f32 %v1433, %v2608
        %v2737 = vmul.f32 %v1438, %v2609
        %v2738 = vmul.f32 %v1443, %v2610
        %v2739 = vmul.f32 %v1448, %v2611
        %v2740 = vmul.f32 %v1453, %v2612
        %v2741 = vmul.f32 %v1458, %v2613
        %v2742 = vmul.f32 %v1528, %v2614
        %v2743 = vmul.f32 %v1533, %v2615
        %v2744 = vmul.f32 %v1538, %v2616
        %v2745 = vmul.f32 %v1543, %v2617
        %v2746 = vmul.f32 %v1548, %v2618
        %v2747 = vmul.f32 %v1553, %v2619
        %v2748 = vmul.f32 %v1558, %v2620
        %v2749 = vmul.f32 %v1563, %v2621
        %v2750 = vmul.f32 %v1568, %v2622
        %v2751 = vmul.f32 %v1573, %v2623
        %v2752 = vmul.f32 %v1578, %v2624
        %v2753 = vmul.f32 %v1583, %v2625
        %v2754 = vmul.f32 %v1588, %v2626
        %v2755 = vmul.f32 %v1593, %v2627
        %v2756 = vmul.f32 %v1598, %v2628
        %v2757 = vmul.f32 %v1603, %v2629
        %v2758 = vld [vmem:[#allocation2] sm:$0xff]
        %2759 = vadd.xlane.f32.xlu0 %v2630
        %v2760 = vpop.xlane.xlu0 %2759
        %2761 = vadd.xlane.f32.xlu0 %v2631
        %v2762 = vpop.xlane.xlu0 %2761
        %2763 = vadd.xlane.f32.xlu0 %v2632
        %v2764 = vpop.xlane.xlu0 %2763
        %2765 = vadd.xlane.f32.xlu0 %v2633
        %v2766 = vpop.xlane.xlu0 %2765
        %2767 = vadd.xlane.f32.xlu0 %v2634
        %v2768 = vpop.xlane.xlu0 %2767
        %2769 = vadd.xlane.f32.xlu0 %v2635
        %v2770 = vpop.xlane.xlu0 %2769
        %2771 = vadd.xlane.f32.xlu0 %v2636
        %v2772 = vpop.xlane.xlu0 %2771
        %2773 = vadd.xlane.f32.xlu0 %v2637
        %v2774 = vpop.xlane.xlu0 %2773
        %2775 = vadd.xlane.f32.xlu0 %v2638
        %v2776 = vpop.xlane.xlu0 %2775
        %2777 = vadd.xlane.f32.xlu0 %v2639
        %v2778 = vpop.xlane.xlu0 %2777
        %2779 = vadd.xlane.f32.xlu0 %v2640
        %v2780 = vpop.xlane.xlu0 %2779
        %2781 = vadd.xlane.f32.xlu0 %v2641
        %v2782 = vpop.xlane.xlu0 %2781
        %2783 = vadd.xlane.f32.xlu0 %v2642
        %v2784 = vpop.xlane.xlu0 %2783
        %2785 = vadd.xlane.f32.xlu0 %v2643
        %v2786 = vpop.xlane.xlu0 %2785
        %2787 = vadd.xlane.f32.xlu0 %v2644
        %v2788 = vpop.xlane.xlu0 %2787
        %2789 = vadd.xlane.f32.xlu0 %v2645
        %v2790 = vpop.xlane.xlu0 %2789
        %2791 = vadd.xlane.f32.xlu0 %v2646
        %v2792 = vpop.xlane.xlu0 %2791
        %2793 = vadd.xlane.f32.xlu0 %v2647
        %v2794 = vpop.xlane.xlu0 %2793
        %2795 = vadd.xlane.f32.xlu0 %v2648
        %v2796 = vpop.xlane.xlu0 %2795
        %2797 = vadd.xlane.f32.xlu0 %v2649
        %v2798 = vpop.xlane.xlu0 %2797
        %2799 = vadd.xlane.f32.xlu0 %v2650
        %v2800 = vpop.xlane.xlu0 %2799
        %2801 = vadd.xlane.f32.xlu0 %v2651
        %v2802 = vpop.xlane.xlu0 %2801
        %2803 = vadd.xlane.f32.xlu0 %v2652
        %v2804 = vpop.xlane.xlu0 %2803
        %2805 = vadd.xlane.f32.xlu0 %v2653
        %v2806 = vpop.xlane.xlu0 %2805
        %2807 = vadd.xlane.f32.xlu0 %v2654
        %v2808 = vpop.xlane.xlu0 %2807
        %2809 = vadd.xlane.f32.xlu0 %v2655
        %v2810 = vpop.xlane.xlu0 %2809
        %2811 = vadd.xlane.f32.xlu0 %v2656
        %v2812 = vpop.xlane.xlu0 %2811
        %2813 = vadd.xlane.f32.xlu0 %v2657
        %v2814 = vpop.xlane.xlu0 %2813
        %2815 = vadd.xlane.f32.xlu0 %v2658
        %v2816 = vpop.xlane.xlu0 %2815
        %2817 = vadd.xlane.f32.xlu0 %v2659
        %v2818 = vpop.xlane.xlu0 %2817
        %2819 = vadd.xlane.f32.xlu0 %v2660
        %v2820 = vpop.xlane.xlu0 %2819
        %2821 = vadd.xlane.f32.xlu0 %v2661
        %v2822 = vpop.xlane.xlu0 %2821
        %2823 = vadd.xlane.f32.xlu0 %v2662
        %v2824 = vpop.xlane.xlu0 %2823
        %2825 = vadd.xlane.f32.xlu0 %v2663
        %v2826 = vpop.xlane.xlu0 %2825
        %2827 = vadd.xlane.f32.xlu0 %v2664
        %v2828 = vpop.xlane.xlu0 %2827
        %2829 = vadd.xlane.f32.xlu0 %v2665
        %v2830 = vpop.xlane.xlu0 %2829
        %2831 = vadd.xlane.f32.xlu0 %v2666
        %v2832 = vpop.xlane.xlu0 %2831
        %2833 = vadd.xlane.f32.xlu0 %v2667
        %v2834 = vpop.xlane.xlu0 %2833
        %2835 = vadd.xlane.f32.xlu0 %v2668
        %v2836 = vpop.xlane.xlu0 %2835
        %2837 = vadd.xlane.f32.xlu0 %v2669
        %v2838 = vpop.xlane.xlu0 %2837
        %2839 = vadd.xlane.f32.xlu0 %v2670
        %v2840 = vpop.xlane.xlu0 %2839
        %2841 = vadd.xlane.f32.xlu0 %v2671
        %v2842 = vpop.xlane.xlu0 %2841
        %2843 = vadd.xlane.f32.xlu0 %v2672
        %v2844 = vpop.xlane.xlu0 %2843
        %2845 = vadd.xlane.f32.xlu0 %v2673
        %v2846 = vpop.xlane.xlu0 %2845
        %2847 = vadd.xlane.f32.xlu0 %v2674
        %v2848 = vpop.xlane.xlu0 %2847
        %2849 = vadd.xlane.f32.xlu0 %v2675
        %v2850 = vpop.xlane.xlu0 %2849
        %2851 = vadd.xlane.f32.xlu0 %v2676
        %v2852 = vpop.xlane.xlu0 %2851
        %2853 = vadd.xlane.f32.xlu0 %v2677
        %v2854 = vpop.xlane.xlu0 %2853
        %2855 = vadd.xlane.f32.xlu0 %v2678
        %v2856 = vpop.xlane.xlu0 %2855
        %2857 = vadd.xlane.f32.xlu0 %v2679
        %v2858 = vpop.xlane.xlu0 %2857
        %2859 = vadd.xlane.f32.xlu0 %v2680
        %v2860 = vpop.xlane.xlu0 %2859
        %2861 = vadd.xlane.f32.xlu0 %v2681
        %v2862 = vpop.xlane.xlu0 %2861
        %2863 = vadd.xlane.f32.xlu0 %v2682
        %v2864 = vpop.xlane.xlu0 %2863
        %2865 = vadd.xlane.f32.xlu0 %v2683
        %v2866 = vpop.xlane.xlu0 %2865
        %2867 = vadd.xlane.f32.xlu0 %v2684
        %v2868 = vpop.xlane.xlu0 %2867
        %2869 = vadd.xlane.f32.xlu0 %v2685
        %v2870 = vpop.xlane.xlu0 %2869
        %2871 = vadd.xlane.f32.xlu0 %v2686
        %v2872 = vpop.xlane.xlu0 %2871
        %2873 = vadd.xlane.f32.xlu0 %v2687
        %v2874 = vpop.xlane.xlu0 %2873
        %2875 = vadd.xlane.f32.xlu0 %v2688
        %v2876 = vpop.xlane.xlu0 %2875
        %2877 = vadd.xlane.f32.xlu0 %v2689
        %v2878 = vpop.xlane.xlu0 %2877
        %2879 = vadd.xlane.f32.xlu0 %v2690
        %v2880 = vpop.xlane.xlu0 %2879
        %2881 = vadd.xlane.f32.xlu0 %v2691
        %v2882 = vpop.xlane.xlu0 %2881
        %2883 = vadd.xlane.f32.xlu0 %v2692
        %v2884 = vpop.xlane.xlu0 %2883
        %2885 = vadd.xlane.f32.xlu0 %v2693
        %v2886 = vpop.xlane.xlu0 %2885
        %2887 = vadd.xlane.f32.xlu0 %v2694
        %v2888 = vpop.xlane.xlu0 %2887
        %2889 = vadd.xlane.f32.xlu0 %v2695
        %v2890 = vpop.xlane.xlu0 %2889
        %2891 = vadd.xlane.f32.xlu0 %v2696
        %v2892 = vpop.xlane.xlu0 %2891
        %2893 = vadd.xlane.f32.xlu0 %v2697
        %v2894 = vpop.xlane.xlu0 %2893
        %2895 = vadd.xlane.f32.xlu0 %v2698
        %v2896 = vpop.xlane.xlu0 %2895
        %2897 = vadd.xlane.f32.xlu0 %v2699
        %v2898 = vpop.xlane.xlu0 %2897
        %2899 = vadd.xlane.f32.xlu0 %v2700
        %v2900 = vpop.xlane.xlu0 %2899
        %2901 = vadd.xlane.f32.xlu0 %v2701
        %v2902 = vpop.xlane.xlu0 %2901
        %2903 = vadd.xlane.f32.xlu0 %v2702
        %v2904 = vpop.xlane.xlu0 %2903
        %2905 = vadd.xlane.f32.xlu0 %v2703
        %v2906 = vpop.xlane.xlu0 %2905
        %2907 = vadd.xlane.f32.xlu0 %v2704
        %v2908 = vpop.xlane.xlu0 %2907
        %2909 = vadd.xlane.f32.xlu0 %v2705
        %v2910 = vpop.xlane.xlu0 %2909
        %2911 = vadd.xlane.f32.xlu0 %v2706
        %v2912 = vpop.xlane.xlu0 %2911
        %2913 = vadd.xlane.f32.xlu0 %v2707
        %v2914 = vpop.xlane.xlu0 %2913
        %2915 = vadd.xlane.f32.xlu0 %v2708
        %v2916 = vpop.xlane.xlu0 %2915
        %2917 = vadd.xlane.f32.xlu0 %v2709
        %v2918 = vpop.xlane.xlu0 %2917
        %2919 = vadd.xlane.f32.xlu0 %v2710
        %v2920 = vpop.xlane.xlu0 %2919
        %2921 = vadd.xlane.f32.xlu0 %v2711
        %v2922 = vpop.xlane.xlu0 %2921
        %2923 = vadd.xlane.f32.xlu0 %v2712
        %v2924 = vpop.xlane.xlu0 %2923
        %2925 = vadd.xlane.f32.xlu0 %v2713
        %v2926 = vpop.xlane.xlu0 %2925
        %2927 = vadd.xlane.f32.xlu0 %v2714
        %v2928 = vpop.xlane.xlu0 %2927
        %2929 = vadd.xlane.f32.xlu0 %v2715
        %v2930 = vpop.xlane.xlu0 %2929
        %2931 = vadd.xlane.f32.xlu0 %v2716
        %v2932 = vpop.xlane.xlu0 %2931
        %2933 = vadd.xlane.f32.xlu0 %v2717
        %v2934 = vpop.xlane.xlu0 %2933
        %2935 = vadd.xlane.f32.xlu0 %v2718
        %v2936 = vpop.xlane.xlu0 %2935
        %2937 = vadd.xlane.f32.xlu0 %v2719
        %v2938 = vpop.xlane.xlu0 %2937
        %2939 = vadd.xlane.f32.xlu0 %v2720
        %v2940 = vpop.xlane.xlu0 %2939
        %2941 = vadd.xlane.f32.xlu0 %v2721
        %v2942 = vpop.xlane.xlu0 %2941
        %2943 = vadd.xlane.f32.xlu0 %v2722
        %v2944 = vpop.xlane.xlu0 %2943
        %2945 = vadd.xlane.f32.xlu0 %v2723
        %v2946 = vpop.xlane.xlu0 %2945
        %2947 = vadd.xlane.f32.xlu0 %v2724
        %v2948 = vpop.xlane.xlu0 %2947
        %2949 = vadd.xlane.f32.xlu0 %v2725
        %v2950 = vpop.xlane.xlu0 %2949
        %2951 = vadd.xlane.f32.xlu0 %v2726
        %v2952 = vpop.xlane.xlu0 %2951
        %2953 = vadd.xlane.f32.xlu0 %v2727
        %v2954 = vpop.xlane.xlu0 %2953
        %2955 = vadd.xlane.f32.xlu0 %v2728
        %v2956 = vpop.xlane.xlu0 %2955
        %2957 = vadd.xlane.f32.xlu0 %v2729
        %v2958 = vpop.xlane.xlu0 %2957
        %2959 = vadd.xlane.f32.xlu0 %v2730
        %v2960 = vpop.xlane.xlu0 %2959
        %2961 = vadd.xlane.f32.xlu0 %v2731
        %v2962 = vpop.xlane.xlu0 %2961
        %2963 = vadd.xlane.f32.xlu0 %v2732
        %v2964 = vpop.xlane.xlu0 %2963
        %2965 = vadd.xlane.f32.xlu0 %v2733
        %v2966 = vpop.xlane.xlu0 %2965
        %2967 = vadd.xlane.f32.xlu0 %v2734
        %v2968 = vpop.xlane.xlu0 %2967
        %2969 = vadd.xlane.f32.xlu0 %v2735
        %v2970 = vpop.xlane.xlu0 %2969
        %2971 = vadd.xlane.f32.xlu0 %v2736
        %v2972 = vpop.xlane.xlu0 %2971
        %2973 = vadd.xlane.f32.xlu0 %v2737
        %v2974 = vpop.xlane.xlu0 %2973
        %2975 = vadd.xlane.f32.xlu0 %v2738
        %v2976 = vpop.xlane.xlu0 %2975
        %2977 = vadd.xlane.f32.xlu0 %v2739
        %v2978 = vpop.xlane.xlu0 %2977
        %2979 = vadd.xlane.f32.xlu0 %v2740
        %v2980 = vpop.xlane.xlu0 %2979
        %2981 = vadd.xlane.f32.xlu0 %v2741
        %v2982 = vpop.xlane.xlu0 %2981
        %2983 = vadd.xlane.f32.xlu0 %v2742
        %v2984 = vpop.xlane.xlu0 %2983
        %2985 = vadd.xlane.f32.xlu0 %v2743
        %v2986 = vpop.xlane.xlu0 %2985
        %2987 = vadd.xlane.f32.xlu0 %v2744
        %v2988 = vpop.xlane.xlu0 %2987
        %2989 = vadd.xlane.f32.xlu0 %v2745
        %v2990 = vpop.xlane.xlu0 %2989
        %2991 = vadd.xlane.f32.xlu0 %v2746
        %v2992 = vpop.xlane.xlu0 %2991
        %2993 = vadd.xlane.f32.xlu0 %v2747
        %v2994 = vpop.xlane.xlu0 %2993
        %2995 = vadd.xlane.f32.xlu0 %v2748
        %v2996 = vpop.xlane.xlu0 %2995
        %2997 = vadd.xlane.f32.xlu0 %v2749
        %v2998 = vpop.xlane.xlu0 %2997
        %2999 = vadd.xlane.f32.xlu0 %v2750
        %v3000 = vpop.xlane.xlu0 %2999
        %3001 = vadd.xlane.f32.xlu0 %v2751
        %v3002 = vpop.xlane.xlu0 %3001
        %3003 = vadd.xlane.f32.xlu0 %v2752
        %v3004 = vpop.xlane.xlu0 %3003
        %3005 = vadd.xlane.f32.xlu0 %v2753
        %v3006 = vpop.xlane.xlu0 %3005
        %3007 = vadd.xlane.f32.xlu0 %v2754
        %v3008 = vpop.xlane.xlu0 %3007
        %3009 = vadd.xlane.f32.xlu0 %v2755
        %v3010 = vpop.xlane.xlu0 %3009
        %3011 = vadd.xlane.f32.xlu0 %v2756
        %v3012 = vpop.xlane.xlu0 %3011
        %3013 = vadd.xlane.f32.xlu0 %v2757
        %v3014 = vpop.xlane.xlu0 %3013
        %v3143 = vlaneseq
        %v3144 = vand.u32 %v3143, 127
        %v3145 = vlaneseq
        %v3146 = vshrl.u32 %v3145, 7
        %v3147 = vsub.s32 %v3144, %v3146
        %v3148 = vrot.slane %v2760, %v3147
        %v3149 = vadd.s32 %v3144, 4294967288
        %v3150 = vlaneseq
        %v3151 = vshrl.u32 %v3150, 7
        %v3152 = vsub.s32 %v3149, %v3151
        %v3153 = vrot.slane %v2762, %v3152
        %vm3154 = vcmask 130112
        %v3155 = vsel %vm3154, %v3153, %v3148
        %v3156 = vadd.s32 %v3144, 4294967280
        %v3157 = vlaneseq
        %v3158 = vshrl.u32 %v3157, 7
        %v3159 = vsub.s32 %v3156, %v3158
        %v3160 = vrot.slane %v2764, %v3159
        %vm3161 = vcmask 195712
        %v3162 = vsel %vm3161, %v3160, %v3155
        %v3163 = vadd.s32 %v3144, 4294967272
        %v3164 = vlaneseq
        %v3165 = vshrl.u32 %v3164, 7
        %v3166 = vsub.s32 %v3163, %v3165
        %v3167 = vrot.slane %v2766, %v3166
        %vm3168 = vcmask 261312
        %v3169 = vsel %vm3168, %v3167, %v3162
        %v3170 = vadd.s32 %v3144, 4294967264
        %v3171 = vlaneseq
        %v3172 = vshrl.u32 %v3171, 7
        %v3173 = vsub.s32 %v3170, %v3172
        %v3174 = vrot.slane %v2768, %v3173
        %vm3175 = vcmask 326912
        %v3176 = vsel %vm3175, %v3174, %v3169
        %v3177 = vadd.s32 %v3144, 4294967256
        %v3178 = vlaneseq
        %v3179 = vshrl.u32 %v3178, 7
        %v3180 = vsub.s32 %v3177, %v3179
        %v3181 = vrot.slane %v2770, %v3180
        %vm3182 = vcmask 392512
        %v3183 = vsel %vm3182, %v3181, %v3176
        %v3184 = vadd.s32 %v3144, 4294967248
        %v3185 = vlaneseq
        %v3186 = vshrl.u32 %v3185, 7
        %v3187 = vsub.s32 %v3184, %v3186
        %v3188 = vrot.slane %v2772, %v3187
        %vm3189 = vcmask 458112
        %v3190 = vsel %vm3189, %v3188, %v3183
        %v3191 = vadd.s32 %v3144, 4294967240
        %v3192 = vlaneseq
        %v3193 = vshrl.u32 %v3192, 7
        %v3194 = vsub.s32 %v3191, %v3193
        %v3195 = vrot.slane %v2774, %v3194
        %vm3196 = vcmask 523712
        %v3197 = vsel %vm3196, %v3195, %v3190
        %v3198 = vadd.s32 %v3144, 4294967232
        %v3199 = vlaneseq
        %v3200 = vshrl.u32 %v3199, 7
        %v3201 = vsub.s32 %v3198, %v3200
        %v3202 = vrot.slane %v2776, %v3201
        %vm3203 = vcmask 589312
        %v3204 = vsel %vm3203, %v3202, %v3197
        %v3205 = vadd.s32 %v3144, 4294967224
        %v3206 = vlaneseq
        %v3207 = vshrl.u32 %v3206, 7
        %v3208 = vsub.s32 %v3205, %v3207
        %v3209 = vrot.slane %v2778, %v3208
        %vm3210 = vcmask 654912
        %v3211 = vsel %vm3210, %v3209, %v3204
        %v3212 = vadd.s32 %v3144, 4294967216
        %v3213 = vlaneseq
        %v3214 = vshrl.u32 %v3213, 7
        %v3215 = vsub.s32 %v3212, %v3214
        %v3216 = vrot.slane %v2780, %v3215
        %vm3217 = vcmask 720512
        %v3218 = vsel %vm3217, %v3216, %v3211
        %v3219 = vadd.s32 %v3144, 4294967208
        %v3220 = vlaneseq
        %v3221 = vshrl.u32 %v3220, 7
        %v3222 = vsub.s32 %v3219, %v3221
        %v3223 = vrot.slane %v2782, %v3222
        %vm3224 = vcmask 786112
        %v3225 = vsel %vm3224, %v3223, %v3218
        %v3226 = vadd.s32 %v3144, 4294967200
        %v3227 = vlaneseq
        %v3228 = vshrl.u32 %v3227, 7
        %v3229 = vsub.s32 %v3226, %v3228
        %v3230 = vrot.slane %v2784, %v3229
        %vm3231 = vcmask 851712
        %v3232 = vsel %vm3231, %v3230, %v3225
        %v3233 = vadd.s32 %v3144, 4294967192
        %v3234 = vlaneseq
        %v3235 = vshrl.u32 %v3234, 7
        %v3236 = vsub.s32 %v3233, %v3235
        %v3237 = vrot.slane %v2786, %v3236
        %vm3238 = vcmask 917312
        %v3239 = vsel %vm3238, %v3237, %v3232
        %v3240 = vadd.s32 %v3144, 4294967184
        %v3241 = vlaneseq
        %v3242 = vshrl.u32 %v3241, 7
        %v3243 = vsub.s32 %v3240, %v3242
        %v3244 = vrot.slane %v2788, %v3243
        %vm3245 = vcmask 982912
        %v3246 = vsel %vm3245, %v3244, %v3239
        %v3247 = vadd.s32 %v3144, 4294967176
        %v3248 = vlaneseq
        %v3249 = vshrl.u32 %v3248, 7
        %v3250 = vsub.s32 %v3247, %v3249
        %v3251 = vrot.slane %v2790, %v3250
        %vm3252 = vcmask 1048512
        %v3253 = vsel %vm3252, %v3251, %v3246
        %v3254 = vlaneseq
        %v3255 = vshrl.u32 %v3254, 7
        %v3256 = vsub.s32 %v3144, %v3255
        %v3257 = vrot.slane %v2792, %v3256
        %v3258 = vlaneseq
        %v3259 = vshrl.u32 %v3258, 7
        %v3260 = vsub.s32 %v3149, %v3259
        %v3261 = vrot.slane %v2794, %v3260
        %v3262 = vsel %vm3154, %v3261, %v3257
        %v3263 = vlaneseq
        %v3264 = vshrl.u32 %v3263, 7
        %v3265 = vsub.s32 %v3156, %v3264
        %v3266 = vrot.slane %v2796, %v3265
        %v3267 = vsel %vm3161, %v3266, %v3262
        %v3268 = vlaneseq
        %v3269 = vshrl.u32 %v3268, 7
        %v3270 = vsub.s32 %v3163, %v3269
        %v3271 = vrot.slane %v2798, %v3270
        %v3272 = vsel %vm3168, %v3271, %v3267
        %v3273 = vlaneseq
        %v3274 = vshrl.u32 %v3273, 7
        %v3275 = vsub.s32 %v3170, %v3274
        %v3276 = vrot.slane %v2800, %v3275
        %v3277 = vsel %vm3175, %v3276, %v3272
        %v3278 = vlaneseq
        %v3279 = vshrl.u32 %v3278, 7
        %v3280 = vsub.s32 %v3177, %v3279
        %v3281 = vrot.slane %v2802, %v3280
        %v3282 = vsel %vm3182, %v3281, %v3277
        %v3283 = vlaneseq
        %v3284 = vshrl.u32 %v3283, 7
        %v3285 = vsub.s32 %v3184, %v3284
        %v3286 = vrot.slane %v2804, %v3285
        %v3287 = vsel %vm3189, %v3286, %v3282
        %v3288 = vlaneseq
        %v3289 = vshrl.u32 %v3288, 7
        %v3290 = vsub.s32 %v3191, %v3289
        %v3291 = vrot.slane %v2806, %v3290
        %v3292 = vsel %vm3196, %v3291, %v3287
        %v3293 = vlaneseq
        %v3294 = vshrl.u32 %v3293, 7
        %v3295 = vsub.s32 %v3198, %v3294
        %v3296 = vrot.slane %v2808, %v3295
        %v3297 = vsel %vm3203, %v3296, %v3292
        %v3298 = vlaneseq
        %v3299 = vshrl.u32 %v3298, 7
        %v3300 = vsub.s32 %v3205, %v3299
        %v3301 = vrot.slane %v2810, %v3300
        %v3302 = vsel %vm3210, %v3301, %v3297
        %v3303 = vlaneseq
        %v3304 = vshrl.u32 %v3303, 7
        %v3305 = vsub.s32 %v3212, %v3304
        %v3306 = vrot.slane %v2812, %v3305
        %v3307 = vsel %vm3217, %v3306, %v3302
        %v3308 = vlaneseq
        %v3309 = vshrl.u32 %v3308, 7
        %v3310 = vsub.s32 %v3219, %v3309
        %v3311 = vrot.slane %v2814, %v3310
        %v3312 = vsel %vm3224, %v3311, %v3307
        %v3313 = vlaneseq
        %v3314 = vshrl.u32 %v3313, 7
        %v3315 = vsub.s32 %v3226, %v3314
        %v3316 = vrot.slane %v2816, %v3315
        %v3317 = vsel %vm3231, %v3316, %v3312
        %v3318 = vlaneseq
        %v3319 = vshrl.u32 %v3318, 7
        %v3320 = vsub.s32 %v3233, %v3319
        %v3321 = vrot.slane %v2818, %v3320
        %v3322 = vsel %vm3238, %v3321, %v3317
        %v3323 = vlaneseq
        %v3324 = vshrl.u32 %v3323, 7
        %v3325 = vsub.s32 %v3240, %v3324
        %v3326 = vrot.slane %v2820, %v3325
        %v3327 = vsel %vm3245, %v3326, %v3322
        %v3328 = vlaneseq
        %v3329 = vshrl.u32 %v3328, 7
        %v3330 = vsub.s32 %v3247, %v3329
        %v3331 = vrot.slane %v2822, %v3330
        %v3332 = vsel %vm3252, %v3331, %v3327
        %v3333 = vlaneseq
        %v3334 = vshrl.u32 %v3333, 7
        %v3335 = vsub.s32 %v3144, %v3334
        %v3336 = vrot.slane %v2824, %v3335
        %v3337 = vlaneseq
        %v3338 = vshrl.u32 %v3337, 7
        %v3339 = vsub.s32 %v3149, %v3338
        %v3340 = vrot.slane %v2826, %v3339
        %v3341 = vsel %vm3154, %v3340, %v3336
        %v3342 = vlaneseq
        %v3343 = vshrl.u32 %v3342, 7
        %v3344 = vsub.s32 %v3156, %v3343
        %v3345 = vrot.slane %v2828, %v3344
        %v3346 = vsel %vm3161, %v3345, %v3341
        %v3347 = vlaneseq
        %v3348 = vshrl.u32 %v3347, 7
        %v3349 = vsub.s32 %v3163, %v3348
        %v3350 = vrot.slane %v2830, %v3349
        %v3351 = vsel %vm3168, %v3350, %v3346
        %v3352 = vlaneseq
        %v3353 = vshrl.u32 %v3352, 7
        %v3354 = vsub.s32 %v3170, %v3353
        %v3355 = vrot.slane %v2832, %v3354
        %v3356 = vsel %vm3175, %v3355, %v3351
        %v3357 = vlaneseq
        %v3358 = vshrl.u32 %v3357, 7
        %v3359 = vsub.s32 %v3177, %v3358
        %v3360 = vrot.slane %v2834, %v3359
        %v3361 = vsel %vm3182, %v3360, %v3356
        %v3362 = vlaneseq
        %v3363 = vshrl.u32 %v3362, 7
        %v3364 = vsub.s32 %v3184, %v3363
        %v3365 = vrot.slane %v2836, %v3364
        %v3366 = vsel %vm3189, %v3365, %v3361
        %v3367 = vlaneseq
        %v3368 = vshrl.u32 %v3367, 7
        %v3369 = vsub.s32 %v3191, %v3368
        %v3370 = vrot.slane %v2838, %v3369
        %v3371 = vsel %vm3196, %v3370, %v3366
        %v3372 = vlaneseq
        %v3373 = vshrl.u32 %v3372, 7
        %v3374 = vsub.s32 %v3198, %v3373
        %v3375 = vrot.slane %v2840, %v3374
        %v3376 = vsel %vm3203, %v3375, %v3371
        %v3377 = vlaneseq
        %v3378 = vshrl.u32 %v3377, 7
        %v3379 = vsub.s32 %v3205, %v3378
        %v3380 = vrot.slane %v2842, %v3379
        %v3381 = vsel %vm3210, %v3380, %v3376
        %v3382 = vlaneseq
        %v3383 = vshrl.u32 %v3382, 7
        %v3384 = vsub.s32 %v3212, %v3383
        %v3385 = vrot.slane %v2844, %v3384
        %v3386 = vsel %vm3217, %v3385, %v3381
        %v3387 = vlaneseq
        %v3388 = vshrl.u32 %v3387, 7
        %v3389 = vsub.s32 %v3219, %v3388
        %v3390 = vrot.slane %v2846, %v3389
        %v3391 = vsel %vm3224, %v3390, %v3386
        %v3392 = vlaneseq
        %v3393 = vshrl.u32 %v3392, 7
        %v3394 = vsub.s32 %v3226, %v3393
        %v3395 = vrot.slane %v2848, %v3394
        %v3396 = vsel %vm3231, %v3395, %v3391
        %v3397 = vlaneseq
        %v3398 = vshrl.u32 %v3397, 7
        %v3399 = vsub.s32 %v3233, %v3398
        %v3400 = vrot.slane %v2850, %v3399
        %v3401 = vsel %vm3238, %v3400, %v3396
        %v3402 = vlaneseq
        %v3403 = vshrl.u32 %v3402, 7
        %v3404 = vsub.s32 %v3240, %v3403
        %v3405 = vrot.slane %v2852, %v3404
        %v3406 = vsel %vm3245, %v3405, %v3401
        %v3407 = vlaneseq
        %v3408 = vshrl.u32 %v3407, 7
        %v3409 = vsub.s32 %v3247, %v3408
        %v3410 = vrot.slane %v2854, %v3409
        %v3411 = vsel %vm3252, %v3410, %v3406
        %v3412 = vlaneseq
        %v3413 = vshrl.u32 %v3412, 7
        %v3414 = vsub.s32 %v3144, %v3413
        %v3415 = vrot.slane %v2856, %v3414
        %v3416 = vlaneseq
        %v3417 = vshrl.u32 %v3416, 7
        %v3418 = vsub.s32 %v3149, %v3417
        %v3419 = vrot.slane %v2858, %v3418
        %v3420 = vsel %vm3154, %v3419, %v3415
        %v3421 = vlaneseq
        %v3422 = vshrl.u32 %v3421, 7
        %v3423 = vsub.s32 %v3156, %v3422
        %v3424 = vrot.slane %v2860, %v3423
        %v3425 = vsel %vm3161, %v3424, %v3420
        %v3426 = vlaneseq
        %v3427 = vshrl.u32 %v3426, 7
        %v3428 = vsub.s32 %v3163, %v3427
        %v3429 = vrot.slane %v2862, %v3428
        %v3430 = vsel %vm3168, %v3429, %v3425
        %v3431 = vlaneseq
        %v3432 = vshrl.u32 %v3431, 7
        %v3433 = vsub.s32 %v3170, %v3432
        %v3434 = vrot.slane %v2864, %v3433
        %v3435 = vsel %vm3175, %v3434, %v3430
        %v3436 = vlaneseq
        %v3437 = vshrl.u32 %v3436, 7
        %v3438 = vsub.s32 %v3177, %v3437
        %v3439 = vrot.slane %v2866, %v3438
        %v3440 = vsel %vm3182, %v3439, %v3435
        %v3441 = vlaneseq
        %v3442 = vshrl.u32 %v3441, 7
        %v3443 = vsub.s32 %v3184, %v3442
        %v3444 = vrot.slane %v2868, %v3443
        %v3445 = vsel %vm3189, %v3444, %v3440
        %v3446 = vlaneseq
        %v3447 = vshrl.u32 %v3446, 7
        %v3448 = vsub.s32 %v3191, %v3447
        %v3449 = vrot.slane %v2870, %v3448
        %v3450 = vsel %vm3196, %v3449, %v3445
        %v3451 = vlaneseq
        %v3452 = vshrl.u32 %v3451, 7
        %v3453 = vsub.s32 %v3198, %v3452
        %v3454 = vrot.slane %v2872, %v3453
        %v3455 = vsel %vm3203, %v3454, %v3450
        %v3456 = vlaneseq
        %v3457 = vshrl.u32 %v3456, 7
        %v3458 = vsub.s32 %v3205, %v3457
        %v3459 = vrot.slane %v2874, %v3458
        %v3460 = vsel %vm3210, %v3459, %v3455
        %v3461 = vlaneseq
        %v3462 = vshrl.u32 %v3461, 7
        %v3463 = vsub.s32 %v3212, %v3462
        %v3464 = vrot.slane %v2876, %v3463
        %v3465 = vsel %vm3217, %v3464, %v3460
        %v3466 = vlaneseq
        %v3467 = vshrl.u32 %v3466, 7
        %v3468 = vsub.s32 %v3219, %v3467
        %v3469 = vrot.slane %v2878, %v3468
        %v3470 = vsel %vm3224, %v3469, %v3465
        %v3471 = vlaneseq
        %v3472 = vshrl.u32 %v3471, 7
        %v3473 = vsub.s32 %v3226, %v3472
        %v3474 = vrot.slane %v2880, %v3473
        %v3475 = vsel %vm3231, %v3474, %v3470
        %v3476 = vlaneseq
        %v3477 = vshrl.u32 %v3476, 7
        %v3478 = vsub.s32 %v3233, %v3477
        %v3479 = vrot.slane %v2882, %v3478
        %v3480 = vsel %vm3238, %v3479, %v3475
        %v3481 = vlaneseq
        %v3482 = vshrl.u32 %v3481, 7
        %v3483 = vsub.s32 %v3240, %v3482
        %v3484 = vrot.slane %v2884, %v3483
        %v3485 = vsel %vm3245, %v3484, %v3480
        %v3486 = vlaneseq
        %v3487 = vshrl.u32 %v3486, 7
        %v3488 = vsub.s32 %v3247, %v3487
        %v3489 = vrot.slane %v2886, %v3488
        %v3490 = vsel %vm3252, %v3489, %v3485
        %v3491 = vlaneseq
        %v3492 = vshrl.u32 %v3491, 7
        %v3493 = vsub.s32 %v3144, %v3492
        %v3494 = vrot.slane %v2888, %v3493
        %v3495 = vlaneseq
        %v3496 = vshrl.u32 %v3495, 7
        %v3497 = vsub.s32 %v3149, %v3496
        %v3498 = vrot.slane %v2890, %v3497
        %v3499 = vsel %vm3154, %v3498, %v3494
        %v3500 = vlaneseq
        %v3501 = vshrl.u32 %v3500, 7
        %v3502 = vsub.s32 %v3156, %v3501
        %v3503 = vrot.slane %v2892, %v3502
        %v3504 = vsel %vm3161, %v3503, %v3499
        %v3505 = vlaneseq
        %v3506 = vshrl.u32 %v3505, 7
        %v3507 = vsub.s32 %v3163, %v3506
        %v3508 = vrot.slane %v2894, %v3507
        %v3509 = vsel %vm3168, %v3508, %v3504
        %v3510 = vlaneseq
        %v3511 = vshrl.u32 %v3510, 7
        %v3512 = vsub.s32 %v3170, %v3511
        %v3513 = vrot.slane %v2896, %v3512
        %v3514 = vsel %vm3175, %v3513, %v3509
        %v3515 = vlaneseq
        %v3516 = vshrl.u32 %v3515, 7
        %v3517 = vsub.s32 %v3177, %v3516
        %v3518 = vrot.slane %v2898, %v3517
        %v3519 = vsel %vm3182, %v3518, %v3514
        %v3520 = vlaneseq
        %v3521 = vshrl.u32 %v3520, 7
        %v3522 = vsub.s32 %v3184, %v3521
        %v3523 = vrot.slane %v2900, %v3522
        %v3524 = vsel %vm3189, %v3523, %v3519
        %v3525 = vlaneseq
        %v3526 = vshrl.u32 %v3525, 7
        %v3527 = vsub.s32 %v3191, %v3526
        %v3528 = vrot.slane %v2902, %v3527
        %v3529 = vsel %vm3196, %v3528, %v3524
        %v3530 = vlaneseq
        %v3531 = vshrl.u32 %v3530, 7
        %v3532 = vsub.s32 %v3198, %v3531
        %v3533 = vrot.slane %v2904, %v3532
        %v3534 = vsel %vm3203, %v3533, %v3529
        %v3535 = vlaneseq
        %v3536 = vshrl.u32 %v3535, 7
        %v3537 = vsub.s32 %v3205, %v3536
        %v3538 = vrot.slane %v2906, %v3537
        %v3539 = vsel %vm3210, %v3538, %v3534
        %v3540 = vlaneseq
        %v3541 = vshrl.u32 %v3540, 7
        %v3542 = vsub.s32 %v3212, %v3541
        %v3543 = vrot.slane %v2908, %v3542
        %v3544 = vsel %vm3217, %v3543, %v3539
        %v3545 = vlaneseq
        %v3546 = vshrl.u32 %v3545, 7
        %v3547 = vsub.s32 %v3219, %v3546
        %v3548 = vrot.slane %v2910, %v3547
        %v3549 = vsel %vm3224, %v3548, %v3544
        %v3550 = vlaneseq
        %v3551 = vshrl.u32 %v3550, 7
        %v3552 = vsub.s32 %v3226, %v3551
        %v3553 = vrot.slane %v2912, %v3552
        %v3554 = vsel %vm3231, %v3553, %v3549
        %v3555 = vlaneseq
        %v3556 = vshrl.u32 %v3555, 7
        %v3557 = vsub.s32 %v3233, %v3556
        %v3558 = vrot.slane %v2914, %v3557
        %v3559 = vsel %vm3238, %v3558, %v3554
        %v3560 = vlaneseq
        %v3561 = vshrl.u32 %v3560, 7
        %v3562 = vsub.s32 %v3240, %v3561
        %v3563 = vrot.slane %v2916, %v3562
        %v3564 = vsel %vm3245, %v3563, %v3559
        %v3565 = vlaneseq
        %v3566 = vshrl.u32 %v3565, 7
        %v3567 = vsub.s32 %v3247, %v3566
        %v3568 = vrot.slane %v2918, %v3567
        %v3569 = vsel %vm3252, %v3568, %v3564
        %v3570 = vlaneseq
        %v3571 = vshrl.u32 %v3570, 7
        %v3572 = vsub.s32 %v3144, %v3571
        %v3573 = vrot.slane %v2920, %v3572
        %v3574 = vlaneseq
        %v3575 = vshrl.u32 %v3574, 7
        %v3576 = vsub.s32 %v3149, %v3575
        %v3577 = vrot.slane %v2922, %v3576
        %v3578 = vsel %vm3154, %v3577, %v3573
        %v3579 = vlaneseq
        %v3580 = vshrl.u32 %v3579, 7
        %v3581 = vsub.s32 %v3156, %v3580
        %v3582 = vrot.slane %v2924, %v3581
        %v3583 = vsel %vm3161, %v3582, %v3578
        %v3584 = vlaneseq
        %v3585 = vshrl.u32 %v3584, 7
        %v3586 = vsub.s32 %v3163, %v3585
        %v3587 = vrot.slane %v2926, %v3586
        %v3588 = vsel %vm3168, %v3587, %v3583
        %v3589 = vlaneseq
        %v3590 = vshrl.u32 %v3589, 7
        %v3591 = vsub.s32 %v3170, %v3590
        %v3592 = vrot.slane %v2928, %v3591
        %v3593 = vsel %vm3175, %v3592, %v3588
        %v3594 = vlaneseq
        %v3595 = vshrl.u32 %v3594, 7
        %v3596 = vsub.s32 %v3177, %v3595
        %v3597 = vrot.slane %v2930, %v3596
        %v3598 = vsel %vm3182, %v3597, %v3593
        %v3599 = vlaneseq
        %v3600 = vshrl.u32 %v3599, 7
        %v3601 = vsub.s32 %v3184, %v3600
        %v3602 = vrot.slane %v2932, %v3601
        %v3603 = vsel %vm3189, %v3602, %v3598
        %v3604 = vlaneseq
        %v3605 = vshrl.u32 %v3604, 7
        %v3606 = vsub.s32 %v3191, %v3605
        %v3607 = vrot.slane %v2934, %v3606
        %v3608 = vsel %vm3196, %v3607, %v3603
        %v3609 = vlaneseq
        %v3610 = vshrl.u32 %v3609, 7
        %v3611 = vsub.s32 %v3198, %v3610
        %v3612 = vrot.slane %v2936, %v3611
        %v3613 = vsel %vm3203, %v3612, %v3608
        %v3614 = vlaneseq
        %v3615 = vshrl.u32 %v3614, 7
        %v3616 = vsub.s32 %v3205, %v3615
        %v3617 = vrot.slane %v2938, %v3616
        %v3618 = vsel %vm3210, %v3617, %v3613
        %v3619 = vlaneseq
        %v3620 = vshrl.u32 %v3619, 7
        %v3621 = vsub.s32 %v3212, %v3620
        %v3622 = vrot.slane %v2940, %v3621
        %v3623 = vsel %vm3217, %v3622, %v3618
        %v3624 = vlaneseq
        %v3625 = vshrl.u32 %v3624, 7
        %v3626 = vsub.s32 %v3219, %v3625
        %v3627 = vrot.slane %v2942, %v3626
        %v3628 = vsel %vm3224, %v3627, %v3623
        %v3629 = vlaneseq
        %v3630 = vshrl.u32 %v3629, 7
        %v3631 = vsub.s32 %v3226, %v3630
        %v3632 = vrot.slane %v2944, %v3631
        %v3633 = vsel %vm3231, %v3632, %v3628
        %v3634 = vlaneseq
        %v3635 = vshrl.u32 %v3634, 7
        %v3636 = vsub.s32 %v3233, %v3635
        %v3637 = vrot.slane %v2946, %v3636
        %v3638 = vsel %vm3238, %v3637, %v3633
        %v3639 = vlaneseq
        %v3640 = vshrl.u32 %v3639, 7
        %v3641 = vsub.s32 %v3240, %v3640
        %v3642 = vrot.slane %v2948, %v3641
        %v3643 = vsel %vm3245, %v3642, %v3638
        %v3644 = vlaneseq
        %v3645 = vshrl.u32 %v3644, 7
        %v3646 = vsub.s32 %v3247, %v3645
        %v3647 = vrot.slane %v2950, %v3646
        %v3648 = vsel %vm3252, %v3647, %v3643
        %v3649 = vlaneseq
        %v3650 = vshrl.u32 %v3649, 7
        %v3651 = vsub.s32 %v3144, %v3650
        %v3652 = vrot.slane %v2952, %v3651
        %v3653 = vlaneseq
        %v3654 = vshrl.u32 %v3653, 7
        %v3655 = vsub.s32 %v3149, %v3654
        %v3656 = vrot.slane %v2954, %v3655
        %v3657 = vsel %vm3154, %v3656, %v3652
        %v3658 = vlaneseq
        %v3659 = vshrl.u32 %v3658, 7
        %v3660 = vsub.s32 %v3156, %v3659
        %v3661 = vrot.slane %v2956, %v3660
        %v3662 = vsel %vm3161, %v3661, %v3657
        %v3663 = vlaneseq
        %v3664 = vshrl.u32 %v3663, 7
        %v3665 = vsub.s32 %v3163, %v3664
        %v3666 = vrot.slane %v2958, %v3665
        %v3667 = vsel %vm3168, %v3666, %v3662
        %v3668 = vlaneseq
        %v3669 = vshrl.u32 %v3668, 7
        %v3670 = vsub.s32 %v3170, %v3669
        %v3671 = vrot.slane %v2960, %v3670
        %v3672 = vsel %vm3175, %v3671, %v3667
        %v3673 = vlaneseq
        %v3674 = vshrl.u32 %v3673, 7
        %v3675 = vsub.s32 %v3177, %v3674
        %v3676 = vrot.slane %v2962, %v3675
        %v3677 = vsel %vm3182, %v3676, %v3672
        %v3678 = vlaneseq
        %v3679 = vshrl.u32 %v3678, 7
        %v3680 = vsub.s32 %v3184, %v3679
        %v3681 = vrot.slane %v2964, %v3680
        %v3682 = vsel %vm3189, %v3681, %v3677
        %v3683 = vlaneseq
        %v3684 = vshrl.u32 %v3683, 7
        %v3685 = vsub.s32 %v3191, %v3684
        %v3686 = vrot.slane %v2966, %v3685
        %v3687 = vsel %vm3196, %v3686, %v3682
        %v3688 = vlaneseq
        %v3689 = vshrl.u32 %v3688, 7
        %v3690 = vsub.s32 %v3198, %v3689
        %v3691 = vrot.slane %v2968, %v3690
        %v3692 = vsel %vm3203, %v3691, %v3687
        %v3693 = vlaneseq
        %v3694 = vshrl.u32 %v3693, 7
        %v3695 = vsub.s32 %v3205, %v3694
        %v3696 = vrot.slane %v2970, %v3695
        %v3697 = vsel %vm3210, %v3696, %v3692
        %v3698 = vlaneseq
        %v3699 = vshrl.u32 %v3698, 7
        %v3700 = vsub.s32 %v3212, %v3699
        %v3701 = vrot.slane %v2972, %v3700
        %v3702 = vsel %vm3217, %v3701, %v3697
        %v3703 = vlaneseq
        %v3704 = vshrl.u32 %v3703, 7
        %v3705 = vsub.s32 %v3219, %v3704
        %v3706 = vrot.slane %v2974, %v3705
        %v3707 = vsel %vm3224, %v3706, %v3702
        %v3708 = vlaneseq
        %v3709 = vshrl.u32 %v3708, 7
        %v3710 = vsub.s32 %v3226, %v3709
        %v3711 = vrot.slane %v2976, %v3710
        %v3712 = vsel %vm3231, %v3711, %v3707
        %v3713 = vlaneseq
        %v3714 = vshrl.u32 %v3713, 7
        %v3715 = vsub.s32 %v3233, %v3714
        %v3716 = vrot.slane %v2978, %v3715
        %v3717 = vsel %vm3238, %v3716, %v3712
        %v3718 = vlaneseq
        %v3719 = vshrl.u32 %v3718, 7
        %v3720 = vsub.s32 %v3240, %v3719
        %v3721 = vrot.slane %v2980, %v3720
        %v3722 = vsel %vm3245, %v3721, %v3717
        %v3723 = vlaneseq
        %v3724 = vshrl.u32 %v3723, 7
        %v3725 = vsub.s32 %v3247, %v3724
        %v3726 = vrot.slane %v2982, %v3725
        %v3727 = vsel %vm3252, %v3726, %v3722
        %v3728 = vlaneseq
        %v3729 = vshrl.u32 %v3728, 7
        %v3730 = vsub.s32 %v3144, %v3729
        %v3731 = vrot.slane %v2984, %v3730
        %v3732 = vlaneseq
        %v3733 = vshrl.u32 %v3732, 7
        %v3734 = vsub.s32 %v3149, %v3733
        %v3735 = vrot.slane %v2986, %v3734
        %v3736 = vsel %vm3154, %v3735, %v3731
        %v3737 = vlaneseq
        %v3738 = vshrl.u32 %v3737, 7
        %v3739 = vsub.s32 %v3156, %v3738
        %v3740 = vrot.slane %v2988, %v3739
        %v3741 = vsel %vm3161, %v3740, %v3736
        %v3742 = vlaneseq
        %v3743 = vshrl.u32 %v3742, 7
        %v3744 = vsub.s32 %v3163, %v3743
        %v3745 = vrot.slane %v2990, %v3744
        %v3746 = vsel %vm3168, %v3745, %v3741
        %v3747 = vlaneseq
        %v3748 = vshrl.u32 %v3747, 7
        %v3749 = vsub.s32 %v3170, %v3748
        %v3750 = vrot.slane %v2992, %v3749
        %v3751 = vsel %vm3175, %v3750, %v3746
        %v3752 = vlaneseq
        %v3753 = vshrl.u32 %v3752, 7
        %v3754 = vsub.s32 %v3177, %v3753
        %v3755 = vrot.slane %v2994, %v3754
        %v3756 = vsel %vm3182, %v3755, %v3751
        %v3757 = vlaneseq
        %v3758 = vshrl.u32 %v3757, 7
        %v3759 = vsub.s32 %v3184, %v3758
        %v3760 = vrot.slane %v2996, %v3759
        %v3761 = vsel %vm3189, %v3760, %v3756
        %v3762 = vlaneseq
        %v3763 = vshrl.u32 %v3762, 7
        %v3764 = vsub.s32 %v3191, %v3763
        %v3765 = vrot.slane %v2998, %v3764
        %v3766 = vsel %vm3196, %v3765, %v3761
        %v3767 = vlaneseq
        %v3768 = vshrl.u32 %v3767, 7
        %v3769 = vsub.s32 %v3198, %v3768
        %v3770 = vrot.slane %v3000, %v3769
        %v3771 = vsel %vm3203, %v3770, %v3766
        %v3772 = vlaneseq
        %v3773 = vshrl.u32 %v3772, 7
        %v3774 = vsub.s32 %v3205, %v3773
        %v3775 = vrot.slane %v3002, %v3774
        %v3776 = vsel %vm3210, %v3775, %v3771
        %v3777 = vlaneseq
        %v3778 = vshrl.u32 %v3777, 7
        %v3779 = vsub.s32 %v3212, %v3778
        %v3780 = vrot.slane %v3004, %v3779
        %v3781 = vsel %vm3217, %v3780, %v3776
        %v3782 = vlaneseq
        %v3783 = vshrl.u32 %v3782, 7
        %v3784 = vsub.s32 %v3219, %v3783
        %v3785 = vrot.slane %v3006, %v3784
        %v3786 = vsel %vm3224, %v3785, %v3781
        %v3787 = vlaneseq
        %v3788 = vshrl.u32 %v3787, 7
        %v3789 = vsub.s32 %v3226, %v3788
        %v3790 = vrot.slane %v3008, %v3789
        %v3791 = vsel %vm3231, %v3790, %v3786
        %v3792 = vlaneseq
        %v3793 = vshrl.u32 %v3792, 7
        %v3794 = vsub.s32 %v3233, %v3793
        %v3795 = vrot.slane %v3010, %v3794
        %v3796 = vsel %vm3238, %v3795, %v3791
        %v3797 = vlaneseq
        %v3798 = vshrl.u32 %v3797, 7
        %v3799 = vsub.s32 %v3240, %v3798
        %v3800 = vrot.slane %v3012, %v3799
        %v3801 = vsel %vm3245, %v3800, %v3796
        %v3802 = vlaneseq
        %v3803 = vshrl.u32 %v3802, 7
        %v3804 = vsub.s32 %v3247, %v3803
        %v3805 = vrot.slane %v3014, %v3804
        %v3806 = vsel %vm3252, %v3805, %v3801
        %vm3807 = vcmask 1041409
        %v3808 = vsel %vm3807, %v3332, %v3253
        %vm3809 = vcmask 1042434
        %v3810 = vsel %vm3809, %v3411, %v3808
        %vm3811 = vcmask 1043459
        %v3812 = vsel %vm3811, %v3490, %v3810
        %vm3813 = vcmask 1044484
        %v3814 = vsel %vm3813, %v3569, %v3812
        %vm3815 = vcmask 1045509
        %v3816 = vsel %vm3815, %v3648, %v3814
        %vm3817 = vcmask 1046534
        %v3818 = vsel %vm3817, %v3727, %v3816
        %vm3819 = vcmask 1047559
        %v3820 = vsel %vm3819, %v3806, %v3818
        %v3822 = vadd.f32 %v2758, %v3820
        %3823 = vst [vmem:[#allocation2] sm:$0xff] %v3822
        // Predicated region
        $region45: #{tpu_custom_call.1} parent=39 // pred_check
          %p3824 = pneg %p248
        $region46: #{tpu_custom_call.1} parent=39 // pred_check_branch
          %3826 = sbr.rel (%p3824) target = $region48
        $region47: #{tpu_custom_call.1} parent=39 // pred_region
          %v3827 = vld [vmem:[#allocation2] sm:$0xff]
          %v3828 = vmul.f32 %v3827, 0.0078125
          %v3829 = vld [vmem:[%s3] sm:$0xff]
          %v3830 = vld [vmem:[%s3 + $0x8] sm:$0xff]
          %v3831 = vld [vmem:[%s3 + $0x10] sm:$0xff]
          %v3832 = vld [vmem:[%s3 + $0x18] sm:$0xff]
          %v3833 = vld [vmem:[%s3 + $0x20] sm:$0xff]
          %v3834 = vld [vmem:[%s3 + $0x28] sm:$0xff]
          %v3835 = vld [vmem:[%s3 + $0x30] sm:$0xff]
          %v3836 = vld [vmem:[%s3 + $0x38] sm:$0xff]
          %v3837 = vld [vmem:[%s3 + $0x40] sm:$0xff]
          %v3838 = vld [vmem:[%s3 + $0x48] sm:$0xff]
          %v3839 = vld [vmem:[%s3 + $0x50] sm:$0xff]
          %v3840 = vld [vmem:[%s3 + $0x58] sm:$0xff]
          %v3841 = vld [vmem:[%s3 + $0x60] sm:$0xff]
          %v3842 = vld [vmem:[%s3 + $0x68] sm:$0xff]
          %v3843 = vld [vmem:[%s3 + $0x70] sm:$0xff]
          %v3844 = vld [vmem:[%s3 + $0x78] sm:$0xff]
          %v3845 = vld [vmem:[%s4] sm:$0x1]
          %v3847 = vlaneseq
          %v3848 = vshrl.u32 %v3847, 7
          %v3849 = vsub.s32 0, %v3848
          %v3850 = vrot.slane %v3845, %v3849
          %3852 = vmatprep.subr.mxu0 0.0
          %3853 = vmatpush1.msra.mxu0 %v3829
          %3854 = vmatprep.subr.mxu0 0.0
          %3855 = vmatpush1.msra.mxu0 %v3830
          %3856 = vmatprep.subr.mxu0 0.0
          %3857 = vmatpush1.msra.mxu0 %v3831
          %3858 = vmatprep.subr.mxu0 0.0
          %3859 = vmatpush1.msra.mxu0 %v3832
          %3860 = vmatprep.subr.mxu0 0.0
          %3861 = vmatpush1.msra.mxu0 %v3833
          %3862 = vmatprep.subr.mxu0 0.0
          %3863 = vmatpush1.msra.mxu0 %v3834
          %3864 = vmatprep.subr.mxu0 0.0
          %3865 = vmatpush1.msra.mxu0 %v3835
          %3866 = vmatprep.subr.mxu0 0.0
          %3867 = vmatpush1.msra.mxu0 %v3836
          %3868 = vmatprep.subr.mxu0 0.0
          %3869 = vmatpush1.msra.mxu0 %v3837
          %3870 = vmatprep.subr.mxu0 0.0
          %3871 = vmatpush1.msra.mxu0 %v3838
          %3872 = vmatprep.subr.mxu0 0.0
          %3873 = vmatpush1.msra.mxu0 %v3839
          %3874 = vmatprep.subr.mxu0 0.0
          %3875 = vmatpush1.msra.mxu0 %v3840
          %3876 = vmatprep.subr.mxu0 0.0
          %3877 = vmatpush1.msra.mxu0 %v3841
          %3878 = vmatprep.subr.mxu0 0.0
          %3879 = vmatpush1.msra.mxu0 %v3842
          %3880 = vmatprep.subr.mxu0 0.0
          %3881 = vmatpush1.msra.mxu0 %v3843
          %3882 = vmatprep.subr.mxu0 0.0
          %3883 = vmatpush1.msra.mxu0 %v3844
          %3884 = vmatprep.subr.mxu0 0.0
          %3885 = vmatpush1.msra.mxu0 0.0
          %3886 = vmatprep.subr.mxu0 0.0
          %3887 = vmatpush1.msra.mxu0 0.0
          %3888 = vmatprep.subr.mxu0 0.0
          %3889 = vmatpush1.msra.mxu0 0.0
          %3890 = vmatprep.subr.mxu0 0.0
          %3891 = vmatpush1.msra.mxu0 0.0
          %3892 = vmatprep.subr.mxu0 0.0
          %3893 = vmatpush1.msra.mxu0 0.0
          %3894 = vmatprep.subr.mxu0 0.0
          %3895 = vmatpush1.msra.mxu0 0.0
          %3896 = vmatprep.subr.mxu0 0.0
          %3897 = vmatpush1.msra.mxu0 0.0
          %3898 = vmatprep.subr.mxu0 0.0
          %3899 = vmatpush1.msra.mxu0 0.0
          %3900 = vmatprep.subr.mxu0 0.0
          %3901 = vmatpush1.msra.mxu0 0.0
          %3902 = vmatprep.subr.mxu0 0.0
          %3903 = vmatpush1.msra.mxu0 0.0
          %3904 = vmatprep.subr.mxu0 0.0
          %3905 = vmatpush1.msra.mxu0 0.0
          %3906 = vmatprep.subr.mxu0 0.0
          %3907 = vmatpush1.msra.mxu0 0.0
          %3908 = vmatprep.subr.mxu0 0.0
          %3909 = vmatpush1.msra.mxu0 0.0
          %3910 = vmatprep.subr.mxu0 0.0
          %3911 = vmatpush1.msra.mxu0 0.0
          %3912 = vmatprep.subr.mxu0 0.0
          %3913 = vmatpush1.msra.mxu0 0.0
          %3914 = vmatprep.subr.mxu0 0.0
          %3915 = vmatpush1.msra.mxu0 0.0
          %3916 = vmatprep.mubr.f32.mxu0 0.0
          %3917 = vmatmul.mubr.f32.gmra.mrb[0].mxu0 %v3828
          %v3918 = vpop.f32.mrb[0].mxu0
          %v3919 = vadd.f32 %v3850, %v3918
          %v3920 = vpop.f32.mrb[0].mxu0
          %3921 = vdwg.mxu0
          %3922 = vst [vmem:[%s238] sm:$0xff] %v3919
        $region48: #{tpu_custom_call.1} parent=39 // pred_fallthru
          _
        %s3923 = sand.u32 %s151, 1
        %s3924 = scalar_lea.sflag [#allocation5], %s3923
        %s3925 = sand.u32 %s151, 1
        %s3926 = smul.addr %s3925, 8
        %s3927 = scalar_lea.vmem [#allocation4], %s3926
        // Predicated region
        $region49: #{tpu_custom_call.1} parent=39 // pred_check
          %p3928 = pneg %p161
        $region50: #{tpu_custom_call.1} parent=39 // pred_check_branch
          %3930 = sbr.rel (%p3928) target = $region52
        $region51: #{tpu_custom_call.1} parent=39 // pred_region
          %s3932 = ssub.s32 128, 128
          %3933 = vsyncadd %s3924, %s3932
          %s3934 = smul.addr %s23, 128
          %s3935 = scalar_lea.hbm %s5, %s3934
          %s3937 = sshll.u32 %s3927, 4
          %s3938 = int_to_ptr.vmem [resolvable:$true] %s3937
          %3940 = dma.vmem_to_hbm [thread:$0]  %s3938, 128, %s3935, %s3924
        $region52: #{tpu_custom_call.1} parent=39 // pred_fallthru
          _
      $region40: #{tpu_custom_call.1} parent=5 // pred_fallthru
        _
      %p3941 = scmp.le.s32.totalorder 2, %s14
      // Predicated region
      $region53: #{tpu_custom_call.1} parent=5 // pred_check
        %p3942 = pneg %p3941
      $region54: #{tpu_custom_call.1} parent=5 // pred_check_branch
        %3944 = sbr.rel (%p3942) target = $region56
      $region55: #{tpu_custom_call.1} parent=5 // pred_region
        %s3945 = ssub.s32 %s14, 2
        // Predicated region
        $region57: #{tpu_custom_call.1} parent=55 // pred_check
          %p3946 = pneg %p167
        $region58: #{tpu_custom_call.1} parent=55 // pred_check_branch
          %3948 = sbr.rel (%p3946) target = $region60
        $region59: #{tpu_custom_call.1} parent=55 // pred_region
          %s3949 = sand.u32 %s152, 1
          %s3950 = scalar_lea.sflag [#allocation5], %s3949
          %s3951 = sand.u32 %s152, 1
          %s3952 = smul.addr %s3951, 8
          %s3953 = scalar_lea.vmem [#allocation4], %s3952
          %3954 = dma.done %s3950, 128
        $region60: #{tpu_custom_call.1} parent=55 // pred_fallthru
          _
      $region56: #{tpu_custom_call.1} parent=5 // pred_fallthru
        _
    $region6: #{tpu_custom_call.1} parent=1 // loop_footer
      %s18 = sadd.s32 1, %s14
    $region7: #{tpu_custom_call.1} parent=1 // loop_footer_branch
      %13 = sbr.rel target = $region3
    $region8: #{tpu_custom_call.1} parent=1 // loop_exit
      _
    %3955 = vsyncpa [#allocation5], 1
    %s3956 = scalar_lea.sflag [#allocation5], 1
    %3957 = vsyncpa %s3956, 1

</llo_original>
